<compile_context>
chip_gen: v7x
topology: tpu7x:2x2x1
jax: 0.10.0
libtpu: 0.0.40
codegen_flags: <defaults>
</compile_context>

<pallas_src>
import functools
import math

import jax
import jax.numpy as jnp
from jax import lax
from jax.experimental import pallas as pl
from jax.experimental.pallas import tpu as pltpu


# TODO(synk): nn.Dropout is treated as identity (eval-mode forward); training-mode
# dropout would need pltpu.prng_seed / pltpu.prng_random_bits.
# TODO(synk): for production sizes (S >= 1024, d_ff ~ 4096) on v7x, add a query-
# tile grid axis and d_ff-chunked FFN accumulation so the (S, d_ff) hidden and
# (S, S) scores never live in VMEM at full size; not needed at these test shapes.
# TODO(synk): for D < 128 a lane-dense output packing (several rows per store
# slab) would avoid masked vst; moot once D is a multiple of 128.
def _encoder_layer_kernel(
    x_ref, mask_ref,
    g1_ref, be1_ref,          # LayerNorm 0 (a_2, b_2)
    wqkv_ref, bqkv_ref,       # fused Q/K/V projection: (D, 3D) bf16, (1, 3D) f32
    wo_ref, bo_ref,           # output projection:      (D, D) bf16,  (1, D) f32
    g2_ref, be2_ref,          # LayerNorm 1 (a_2, b_2)
    w1_ref, bf1_ref,          # FFN first linear:       (D, d_ff) bf16, (1, d_ff) f32
    w2_ref, bf2_ref,          # FFN second linear:      (d_ff, D) bf16, (1, D) f32
    o_ref,
    *, n_heads, eps):
    f32 = jnp.float32
    bf16 = jnp.bfloat16

    x = x_ref[0].astype(f32)                  # (S, D)
    m = mask_ref[0].astype(f32)               # (1, S)  — key-position mask
    S, D = x.shape
    d_k = D // n_heads
    inv_sqrt_dk = 1.0 / math.sqrt(d_k)

    def layer_norm(v, g, b):
        mean = jnp.mean(v, axis=-1, keepdims=True)
        # torch.Tensor.std is the unbiased estimator (divide by D-1).
        var = jnp.sum((v - mean) ** 2, axis=-1, keepdims=True) * (1.0 / (D - 1))
        std = jnp.sqrt(var)
        inv = pl.reciprocal(std + eps, approx=True)     # EUP; frees VALU slots
        return g * (v - mean) * inv + b

    # ---- sublayer 0: pre-norm -> multi-head self-attention -> residual ----
    n1 = layer_norm(x, g1_ref[...], be1_ref[...])                       # (S, D)
    # Fused QKV projection: one wide MXU matmul, bf16 operands / f32 accumulate.
    qkv = jnp.dot(n1.astype(bf16), wqkv_ref[...],
                  preferred_element_type=f32) + bqkv_ref[...]           # (S, 3D)

    # Hoisted out of the head loop: additive mask bias and query pre-scale.
    bias = jnp.where(m == 0.0, -1e9, 0.0)                               # (1, S)
    q = (qkv[:, :D] * inv_sqrt_dk).astype(bf16)
    k = qkv[:, D:2 * D].astype(bf16)
    v = qkv[:, 2 * D:].astype(bf16)

    # Per-head attention; the head concat is folded into the output projection:
    #   attn_proj = sum_h softmax(q_h k_h^T + bias) v_h @ Wo^T[h*d_k:(h+1)*d_k, :]
    attn_proj = jnp.zeros((S, D), f32)
    for h in range(n_heads):                  # static unrolled loop over heads
        sl = slice(h * d_k, (h + 1) * d_k)
        sc = lax.dot_general(q[:, sl], k[:, sl],
                             (((1,), (1,)), ((), ())),
                             preferred_element_type=f32) + bias          # (S, S)
        sc = sc - jnp.max(sc, axis=-1, keepdims=True)
        p = jnp.exp(sc)
        p = p * pl.reciprocal(jnp.sum(p, axis=-1, keepdims=True), approx=True)
        head = jnp.dot(p.astype(bf16), v[:, sl],
                       preferred_element_type=f32)                       # (S, d_k)
        attn_proj = attn_proj + jnp.dot(head.astype(bf16), wo_ref[sl, :],
                                        preferred_element_type=f32)      # (S, D)
    x1 = x + attn_proj + bo_ref[...]          # dropout == identity (eval)

    # ---- sublayer 1: pre-norm -> position-wise feed-forward -> residual ----
    n2 = layer_norm(x1, g2_ref[...], be2_ref[...])
    hid = jnp.dot(n2.astype(bf16), w1_ref[...],
                  preferred_element_type=f32) + bf1_ref[...]
    hid = jnp.maximum(hid, 0.0)
    ffn = jnp.dot(hid.astype(bf16), w2_ref[...],
                  preferred_element_type=f32) + bf2_ref[...]

    o_ref[0] = (x1 + ffn).astype(o_ref.dtype)


def _vmem_cap_bytes():
    """Per-generation VMEM cap for the scoped limit."""
    try:
        kind = jax.devices()[0].device_kind.lower()
    except Exception:
        kind = ""
    if any(t in kind for t in ("v2", "v3", "v4", "v5", "v6")):
        return 100 * 1024 * 1024     # 128 MiB physical VMEM
    return 56 * 1024 * 1024          # v7x-class: 64 MiB physical VMEM


def encoder_layer_forward(x, mask, params, *, n_heads, eps=1e-6):
    """x: (B, S, D) f32; mask: (B, 1, S) (nonzero = attend); params: PyTorch-layout weights."""
    B, S, D = x.shape
    assert D % n_heads == 0
    (g1, be1, wq, bq, wk, bk, wv, bv, wo, bo, g2, be2, w1, bf1, w2, bf2) = params
    d_ff = w1.shape[0]
    f32 = jnp.float32
    bf16 = jnp.bfloat16

    # Fuse Q/K/V projections into a single (D, 3D) operand (pre-transposed).
    # Matmul weights are stored bf16 (MXU-native, halves resident VMEM);
    # biases / LayerNorm params stay f32.
    wqkv_t = jnp.concatenate([wq.T, wk.T, wv.T], axis=1).astype(bf16)   # (D, 3D)
    bqkv = jnp.concatenate([bq, bk, bv]).reshape(1, 3 * D).astype(f32)
    wo_t = wo.T.astype(bf16)                                            # (D, D)
    w1_t = w1.T.astype(bf16)                                            # (D, d_ff)
    w2_t = w2.T.astype(bf16)                                            # (d_ff, D)

    g1_2 = g1.reshape(1, D).astype(f32)
    be1_2 = be1.reshape(1, D).astype(f32)
    g2_2 = g2.reshape(1, D).astype(f32)
    be2_2 = be2.reshape(1, D).astype(f32)
    bo_2 = bo.reshape(1, D).astype(f32)
    bf1_2 = bf1.reshape(1, d_ff).astype(f32)
    bf2_2 = bf2.reshape(1, D).astype(f32)
    mask_f = mask.astype(f32)

    kernel = functools.partial(_encoder_layer_kernel, n_heads=n_heads, eps=eps)

    weight_args = (g1_2, be1_2, wqkv_t, bqkv, wo_t, bo_2,
                   g2_2, be2_2, w1_t, bf1_2, w2_t, bf2_2)

    # --- VMEM budget: resident weights (assume 2 buffers worst case) +
    #     double-buffered x/mask/out blocks + in-kernel intermediates. ---
    weight_bytes = sum(int(a.size) * a.dtype.itemsize for a in weight_args)
    block_bytes = 2 * 4 * (2 * S * D + S)                 # x + out + mask, 2 bufs
    inter_bytes = (4 * (S * 3 * D)                        # qkv (f32)
                   + 2 * (S * 3 * D)                      # bf16 q/k/v copies
                   + 4 * (2 * S * S)                      # scores + probs (f32)
                   + 4 * (2 * S * D)                      # attn accumulator, x1
                   + 4 * (S * d_ff)                       # FFN hidden (f32)
                   + 4 * (2 * S * D))                     # n1/n2 + slack
    vmem_limit = min(_vmem_cap_bytes(),
                     max(16 * 1024 * 1024,
                         int(1.25 * (2 * weight_bytes + block_bytes + inter_bytes))
                         + (2 << 20)))

    def _const_spec(shape, single_buffer):
        index_map = lambda i, _z=(0,) * len(shape): _z
        if single_buffer:
            # Constant-index blocks never change -> one resident buffer is enough.
            return pl.BlockSpec(shape, index_map, pipeline_mode=pl.Buffered(1))
        return pl.BlockSpec(shape, index_map)

    def _make_call(single_buffer):
        in_specs = [
            pl.BlockSpec((1, S, D), lambda i: (i, 0, 0)),        # x
            pl.BlockSpec((1, 1, S), lambda i: (i, 0, 0)),        # mask
            _const_spec((1, D), single_buffer),                  # ln0 gamma
            _const_spec((1, D), single_buffer),                  # ln0 beta
            _const_spec((D, 3 * D), single_buffer),              # Wqkv^T (bf16)
            _const_spec((1, 3 * D), single_buffer),              # bqkv
            _const_spec((D, D), single_buffer),                  # Wo^T (bf16)
            _const_spec((1, D), single_buffer),                  # bo
            _const_spec((1, D), single_buffer),                  # ln1 gamma
            _const_spec((1, D), single_buffer),                  # ln1 beta
            _const_spec((D, d_ff), single_buffer),               # W1^T (bf16)
            _const_spec((1, d_ff), single_buffer),               # b1
            _const_spec((d_ff, D), single_buffer),               # W2^T (bf16)
            _const_spec((1, D), single_buffer),                  # b2
        ]
        return pl.pallas_call(
            kernel,
            out_shape=jax.ShapeDtypeStruct((B, S, D), x.dtype),
            grid_spec=pltpu.PrefetchScalarGridSpec(
                num_scalar_prefetch=0,
                grid=(B,),
                in_specs=in_specs,
                out_specs=pl.BlockSpec((1, S, D), lambda i: (i, 0, 0)),
            ),
            compiler_params=pltpu.CompilerParams(
                dimension_semantics=("parallel",),   # batch axis -> both TCs on v7x
                vmem_limit_bytes=vmem_limit,
            ),
        )

    args = (x, mask_f) + weight_args
    try:
        out = _make_call(True)(*args)
        jax.block_until_ready(out)
    except Exception:
        # This JAX build rejected pipeline_mode=pl.Buffered(1); use defaults.
        out = _make_call(False)(*args)
        jax.block_until_ready(out)
    return out


def encoder_layer_reference(x, mask, params, *, n_heads, eps=1e-6):
    """Pure-JAX f32 reference matching the PyTorch module exactly (eval mode)."""
    (g1, be1, wq, bq, wk, bk, wv, bv, wo, bo, g2, be2, w1, bf1, w2, bf2) = params
    B, S, D = x.shape
    d_k = D // n_heads

    def layer_norm(v, g, b):
        mean = jnp.mean(v, axis=-1, keepdims=True)
        var = jnp.sum((v - mean) ** 2, axis=-1, keepdims=True) / (D - 1)
        return g * (v - mean) / (jnp.sqrt(var) + eps) + b

    n1 = layer_norm(x, g1, be1)
    q = n1 @ wq.T + bq
    k = n1 @ wk.T + bk
    v = n1 @ wv.T + bv

    def split(t):
        return t.reshape(B, S, n_heads, d_k).transpose(0, 2, 1, 3)

    qh, kh, vh = split(q), split(k), split(v)
    scores = (qh @ kh.transpose(0, 1, 3, 2)) / math.sqrt(d_k)
    m = mask[:, None, :, :]                       # (B, 1, 1, S)
    scores = jnp.where(m == 0, -1e9, scores)
    p = jax.nn.softmax(scores, axis=-1)
    a = (p @ vh).transpose(0, 2, 1, 3).reshape(B, S, D)
    x1 = x + (a @ wo.T + bo)

    n2 = layer_norm(x1, g2, be2)
    ffn = jnp.maximum(n2 @ w1.T + bf1, 0.0) @ w2.T + bf2
    return x1 + ffn


if __name__ == "__main__":
    B, S, D, H, DFF = 2, 8, 32, 4, 128

    key = jax.random.PRNGKey(0)
    keys = jax.random.split(key, 14)

    def linear_init(kw, kb, out_f, in_f):
        bound = 1.0 / math.sqrt(in_f)
        w = jax.random.uniform(kw, (out_f, in_f), minval=-bound, maxval=bound,
                               dtype=jnp.float32)
        b = jax.random.uniform(kb, (out_f,), minval=-bound, maxval=bound,
                               dtype=jnp.float32)
        return w, b

    x = jax.random.normal(keys[0], (B, S, D), dtype=jnp.float32)
    mask = jnp.ones((B, 1, S), dtype=jnp.float32)
    mask = mask.at[1, 0, S - 2:].set(0.0)        # pad out last two keys of batch 1

    wq, bq = linear_init(keys[1], keys[2], D, D)
    wk, bk = linear_init(keys[3], keys[4], D, D)
    wv, bv = linear_init(keys[5], keys[6], D, D)
    wo, bo = linear_init(keys[7], keys[8], D, D)
    w1, bf1 = linear_init(keys[9], keys[10], DFF, D)
    w2, bf2 = linear_init(keys[11], keys[12], D, DFF)

    # LayerNorm params as initialized by the module (a_2 = ones, b_2 = zeros).
    g1 = jnp.ones((D,), jnp.float32)
    be1 = jnp.zeros((D,), jnp.float32)
    g2 = jnp.ones((D,), jnp.float32)
    be2 = jnp.zeros((D,), jnp.float32)

    params = (g1, be1, wq, bq, wk, bk, wv, bv, wo, bo, g2, be2, w1, bf1, w2, bf2)

    out = encoder_layer_forward(x, mask, params, n_heads=H)
    jax.block_until_ready(out)

    ref = encoder_layer_reference(x, mask, params, n_heads=H)
    assert out.shape == (B, S, D)
    # Tolerance relaxed vs the pure-f32 reference: kernel uses bf16 matmul
    # operands (f32 accumulation) and approx EUP reciprocals, per perf review.
    assert jnp.allclose(out, ref, atol=2e-2, rtol=2e-2), (
        float(jnp.max(jnp.abs(out - ref))))

    print("KERNEL_OK")
</pallas_src>

<mosaic_0001>
module attributes {stable_mosaic.version = 11 : i64} {
  func.func @_encoder_layer_kernel(%arg0: i32, %arg1: memref<1x8x32xf32, #tpu.memory_space<vmem>>, %arg2: memref<1x1x8xf32, #tpu.memory_space<vmem>>, %arg3: memref<1x32xf32, #tpu.memory_space<vmem>>, %arg4: memref<1x32xf32, #tpu.memory_space<vmem>>, %arg5: memref<32x96xbf16, #tpu.memory_space<vmem>>, %arg6: memref<1x96xf32, #tpu.memory_space<vmem>>, %arg7: memref<32x32xbf16, #tpu.memory_space<vmem>>, %arg8: memref<1x32xf32, #tpu.memory_space<vmem>>, %arg9: memref<1x32xf32, #tpu.memory_space<vmem>>, %arg10: memref<1x32xf32, #tpu.memory_space<vmem>>, %arg11: memref<32x128xbf16, #tpu.memory_space<vmem>>, %arg12: memref<1x128xf32, #tpu.memory_space<vmem>>, %arg13: memref<128x32xbf16, #tpu.memory_space<vmem>>, %arg14: memref<1x32xf32, #tpu.memory_space<vmem>>, %arg15: memref<1x8x32xf32, #tpu.memory_space<vmem>>) attributes {dimension_semantics = [#tpu.dimension_semantics<parallel>], iteration_bounds = array<i64: 2>, scalar_prefetch = 0 : i64, scratch_operands = 0 : i64, tpu.core_type = #tpu.core_type<tc>, window_params = [{transform_indices = @transform_0, window_bounds = array<i64: 1, 8, 32>}, {transform_indices = @transform_1, window_bounds = array<i64: 1, 1, 8>}, {pipeline_mode = #tpu.pipeline_mode<synchronous>, transform_indices = @transform_2, window_bounds = array<i64: 1, 32>}, {pipeline_mode = #tpu.pipeline_mode<synchronous>, transform_indices = @transform_3, window_bounds = array<i64: 1, 32>}, {pipeline_mode = #tpu.pipeline_mode<synchronous>, transform_indices = @transform_4, window_bounds = array<i64: 32, 96>}, {pipeline_mode = #tpu.pipeline_mode<synchronous>, transform_indices = @transform_5, window_bounds = array<i64: 1, 96>}, {pipeline_mode = #tpu.pipeline_mode<synchronous>, transform_indices = @transform_6, window_bounds = array<i64: 32, 32>}, {pipeline_mode = #tpu.pipeline_mode<synchronous>, transform_indices = @transform_7, window_bounds = array<i64: 1, 32>}, {pipeline_mode = #tpu.pipeline_mode<synchronous>, transform_indices = @transform_8, window_bounds = array<i64: 1, 32>}, {pipeline_mode = #tpu.pipeline_mode<synchronous>, transform_indices = @transform_9, window_bounds = array<i64: 1, 32>}, {pipeline_mode = #tpu.pipeline_mode<synchronous>, transform_indices = @transform_10, window_bounds = array<i64: 32, 128>}, {pipeline_mode = #tpu.pipeline_mode<synchronous>, transform_indices = @transform_11, window_bounds = array<i64: 1, 128>}, {pipeline_mode = #tpu.pipeline_mode<synchronous>, transform_indices = @transform_12, window_bounds = array<i64: 128, 32>}, {pipeline_mode = #tpu.pipeline_mode<synchronous>, transform_indices = @transform_13, window_bounds = array<i64: 1, 32>}, {transform_indices = @transform_14, window_bounds = array<i64: 1, 8, 32>}]} {
    %c0 = arith.constant 0 : index
    %c0_0 = arith.constant 0 : index
    %c0_1 = arith.constant 0 : index
    %0 = vector.load %arg1[%c0, %c0_0, %c0_1] : memref<1x8x32xf32, #tpu.memory_space<vmem>>, vector<1x8x32xf32>
    %1 = vector.shape_cast %0 : vector<1x8x32xf32> to vector<8x32xf32>
    %c0_2 = arith.constant 0 : index
    %c0_3 = arith.constant 0 : index
    %c0_4 = arith.constant 0 : index
    %2 = vector.load %arg2[%c0_2, %c0_3, %c0_4] : memref<1x1x8xf32, #tpu.memory_space<vmem>>, vector<1x1x8xf32>
    %3 = vector.shape_cast %2 : vector<1x1x8xf32> to vector<1x8xf32>
    %c0_5 = arith.constant 0 : index
    %c0_6 = arith.constant 0 : index
    %4 = vector.load %arg3[%c0_5, %c0_6] : memref<1x32xf32, #tpu.memory_space<vmem>>, vector<1x32xf32>
    %c0_7 = arith.constant 0 : index
    %c0_8 = arith.constant 0 : index
    %5 = vector.load %arg4[%c0_7, %c0_8] : memref<1x32xf32, #tpu.memory_space<vmem>>, vector<1x32xf32>
    %cst = arith.constant dense<0.000000e+00> : vector<8xf32>
    %6 = vector.multi_reduction <add>, %1, %cst [1] : vector<8x32xf32> to vector<8xf32>
    %7 = vector.shape_cast %6 : vector<8xf32> to vector<8x1xf32>
    %cst_9 = arith.constant 3.200000e+01 : f32
    %8 = vector.broadcast %cst_9 : f32 to vector<8x1xf32>
    %9 = arith.divf %7, %8 : vector<8x1xf32>
    %10 = vector.broadcast %9 : vector<8x1xf32> to vector<8x32xf32>
    %11 = arith.subf %1, %10 : vector<8x32xf32>
    %12 = arith.mulf %11, %11 : vector<8x32xf32>
    %cst_10 = arith.constant dense<0.000000e+00> : vector<8xf32>
    %13 = vector.multi_reduction <add>, %12, %cst_10 [1] : vector<8x32xf32> to vector<8xf32>
    %14 = vector.shape_cast %13 : vector<8xf32> to vector<8x1xf32>
    %cst_11 = arith.constant 0.0322580636 : f32
    %15 = vector.broadcast %cst_11 : f32 to vector<8x1xf32>
    %16 = arith.mulf %14, %15 : vector<8x1xf32>
    %17 = math.sqrt %16 : vector<8x1xf32>
    %cst_12 = arith.constant 9.99999997E-7 : f32
    %18 = vector.broadcast %cst_12 : f32 to vector<8x1xf32>
    %19 = arith.addf %17, %18 : vector<8x1xf32>
    %20 = tpu.reciprocal %19 {approx = true} : vector<8x1xf32> -> vector<8x1xf32>
    %21 = vector.broadcast %9 : vector<8x1xf32> to vector<8x32xf32>
    %22 = arith.subf %1, %21 : vector<8x32xf32>
    %23 = vector.broadcast %4 : vector<1x32xf32> to vector<8x32xf32>
    %24 = arith.mulf %23, %22 : vector<8x32xf32>
    %25 = vector.broadcast %20 : vector<8x1xf32> to vector<8x32xf32>
    %26 = arith.mulf %24, %25 : vector<8x32xf32>
    %27 = vector.broadcast %5 : vector<1x32xf32> to vector<8x32xf32>
    %28 = arith.addf %26, %27 : vector<8x32xf32>
    %29 = arith.truncf %28 : vector<8x32xf32> to vector<8x32xbf16>
    %c0_13 = arith.constant 0 : index
    %c0_14 = arith.constant 0 : index
    %30 = vector.load %arg5[%c0_13, %c0_14] : memref<32x96xbf16, #tpu.memory_space<vmem>>, vector<32x96xbf16>
    %cst_15 = arith.constant dense<0.000000e+00> : vector<8x96xf32>
    %31 = tpu.matmul %29, %30, %cst_15 {dimension_numbers = #tpu.dot_dimension_numbers<[1], [0], [0], [1], [0, 0, 1, 1], [], []>} : vector<8x32xbf16>, vector<32x96xbf16>, vector<8x96xf32> -> vector<8x96xf32>
    %c0_16 = arith.constant 0 : index
    %c0_17 = arith.constant 0 : index
    %32 = vector.load %arg6[%c0_16, %c0_17] : memref<1x96xf32, #tpu.memory_space<vmem>>, vector<1x96xf32>
    %33 = vector.broadcast %32 : vector<1x96xf32> to vector<8x96xf32>
    %34 = arith.addf %31, %33 : vector<8x96xf32>
    %cst_18 = arith.constant 0.000000e+00 : f32
    %35 = vector.broadcast %cst_18 : f32 to vector<1x8xf32>
    %36 = arith.cmpf oeq, %3, %35 : vector<1x8xf32>
    %cst_19 = arith.constant -1.000000e+09 : f32
    %cst_20 = arith.constant 0.000000e+00 : f32
    %37 = vector.broadcast %cst_19 : f32 to vector<1x8xf32>
    %38 = vector.broadcast %cst_20 : f32 to vector<1x8xf32>
    %39 = arith.select %36, %37, %38 : vector<1x8xi1>, vector<1x8xf32>
    %40 = vector.extract_strided_slice %34 {offsets = [0, 0], sizes = [8, 32], strides = [1, 1]} : vector<8x96xf32> to vector<8x32xf32>
    %cst_21 = arith.constant 0.353553385 : f32
    %41 = vector.broadcast %cst_21 : f32 to vector<8x32xf32>
    %42 = arith.mulf %40, %41 : vector<8x32xf32>
    %43 = arith.truncf %42 : vector<8x32xf32> to vector<8x32xbf16>
    %44 = vector.extract_strided_slice %34 {offsets = [0, 32], sizes = [8, 32], strides = [1, 1]} : vector<8x96xf32> to vector<8x32xf32>
    %45 = arith.truncf %44 : vector<8x32xf32> to vector<8x32xbf16>
    %46 = vector.extract_strided_slice %34 {offsets = [0, 64], sizes = [8, 32], strides = [1, 1]} : vector<8x96xf32> to vector<8x32xf32>
    %47 = arith.truncf %46 : vector<8x32xf32> to vector<8x32xbf16>
    %cst_22 = arith.constant 0.000000e+00 : f32
    %48 = vector.broadcast %cst_22 : f32 to vector<8x32xf32>
    %49 = vector.extract_strided_slice %43 {offsets = [0, 0], sizes = [8, 8], strides = [1, 1]} : vector<8x32xbf16> to vector<8x8xbf16>
    %50 = vector.extract_strided_slice %45 {offsets = [0, 0], sizes = [8, 8], strides = [1, 1]} : vector<8x32xbf16> to vector<8x8xbf16>
    %cst_23 = arith.constant dense<0.000000e+00> : vector<8x8xf32>
    %51 = tpu.matmul %49, %50, %cst_23 {dimension_numbers = #tpu.dot_dimension_numbers<[1], [1], [0], [0], [0, 0, 1, 0], [], []>} : vector<8x8xbf16>, vector<8x8xbf16>, vector<8x8xf32> -> vector<8x8xf32>
    %52 = vector.broadcast %39 : vector<1x8xf32> to vector<8x8xf32>
    %53 = arith.addf %51, %52 : vector<8x8xf32>
    %cst_24 = arith.constant dense<0xFF800000> : vector<8xf32>
    %54 = vector.multi_reduction <maximumf>, %53, %cst_24 [1] : vector<8x8xf32> to vector<8xf32>
    %55 = vector.shape_cast %54 : vector<8xf32> to vector<8x1xf32>
    %56 = vector.broadcast %55 : vector<8x1xf32> to vector<8x8xf32>
    %57 = arith.subf %53, %56 : vector<8x8xf32>
    %58 = math.exp %57 : vector<8x8xf32>
    %cst_25 = arith.constant dense<0.000000e+00> : vector<8xf32>
    %59 = vector.multi_reduction <add>, %58, %cst_25 [1] : vector<8x8xf32> to vector<8xf32>
    %60 = vector.shape_cast %59 : vector<8xf32> to vector<8x1xf32>
    %61 = tpu.reciprocal %60 {approx = true} : vector<8x1xf32> -> vector<8x1xf32>
    %62 = vector.broadcast %61 : vector<8x1xf32> to vector<8x8xf32>
    %63 = arith.mulf %58, %62 : vector<8x8xf32>
    %64 = arith.truncf %63 : vector<8x8xf32> to vector<8x8xbf16>
    %65 = vector.extract_strided_slice %47 {offsets = [0, 0], sizes = [8, 8], strides = [1, 1]} : vector<8x32xbf16> to vector<8x8xbf16>
    %cst_26 = arith.constant dense<0.000000e+00> : vector<8x8xf32>
    %66 = tpu.matmul %64, %65, %cst_26 {dimension_numbers = #tpu.dot_dimension_numbers<[1], [0], [0], [1], [0, 0, 1, 1], [], []>} : vector<8x8xbf16>, vector<8x8xbf16>, vector<8x8xf32> -> vector<8x8xf32>
    %67 = arith.truncf %66 : vector<8x8xf32> to vector<8x8xbf16>
    %c0_27 = arith.constant 0 : index
    %c0_28 = arith.constant 0 : index
    %68 = vector.load %arg7[%c0_27, %c0_28] : memref<32x32xbf16, #tpu.memory_space<vmem>>, vector<8x32xbf16>
    %cst_29 = arith.constant dense<0.000000e+00> : vector<8x32xf32>
    %69 = tpu.matmul %67, %68, %cst_29 {dimension_numbers = #tpu.dot_dimension_numbers<[1], [0], [0], [1], [0, 0, 1, 1], [], []>} : vector<8x8xbf16>, vector<8x32xbf16>, vector<8x32xf32> -> vector<8x32xf32>
    %70 = arith.addf %48, %69 : vector<8x32xf32>
    %71 = vector.extract_strided_slice %43 {offsets = [0, 8], sizes = [8, 8], strides = [1, 1]} : vector<8x32xbf16> to vector<8x8xbf16>
    %72 = vector.extract_strided_slice %45 {offsets = [0, 8], sizes = [8, 8], strides = [1, 1]} : vector<8x32xbf16> to vector<8x8xbf16>
    %cst_30 = arith.constant dense<0.000000e+00> : vector<8x8xf32>
    %73 = tpu.matmul %71, %72, %cst_30 {dimension_numbers = #tpu.dot_dimension_numbers<[1], [1], [0], [0], [0, 0, 1, 0], [], []>} : vector<8x8xbf16>, vector<8x8xbf16>, vector<8x8xf32> -> vector<8x8xf32>
    %74 = vector.broadcast %39 : vector<1x8xf32> to vector<8x8xf32>
    %75 = arith.addf %73, %74 : vector<8x8xf32>
    %cst_31 = arith.constant dense<0xFF800000> : vector<8xf32>
    %76 = vector.multi_reduction <maximumf>, %75, %cst_31 [1] : vector<8x8xf32> to vector<8xf32>
    %77 = vector.shape_cast %76 : vector<8xf32> to vector<8x1xf32>
    %78 = vector.broadcast %77 : vector<8x1xf32> to vector<8x8xf32>
    %79 = arith.subf %75, %78 : vector<8x8xf32>
    %80 = math.exp %79 : vector<8x8xf32>
    %cst_32 = arith.constant dense<0.000000e+00> : vector<8xf32>
    %81 = vector.multi_reduction <add>, %80, %cst_32 [1] : vector<8x8xf32> to vector<8xf32>
    %82 = vector.shape_cast %81 : vector<8xf32> to vector<8x1xf32>
    %83 = tpu.reciprocal %82 {approx = true} : vector<8x1xf32> -> vector<8x1xf32>
    %84 = vector.broadcast %83 : vector<8x1xf32> to vector<8x8xf32>
    %85 = arith.mulf %80, %84 : vector<8x8xf32>
    %86 = arith.truncf %85 : vector<8x8xf32> to vector<8x8xbf16>
    %87 = vector.extract_strided_slice %47 {offsets = [0, 8], sizes = [8, 8], strides = [1, 1]} : vector<8x32xbf16> to vector<8x8xbf16>
    %cst_33 = arith.constant dense<0.000000e+00> : vector<8x8xf32>
    %88 = tpu.matmul %86, %87, %cst_33 {dimension_numbers = #tpu.dot_dimension_numbers<[1], [0], [0], [1], [0, 0, 1, 1], [], []>} : vector<8x8xbf16>, vector<8x8xbf16>, vector<8x8xf32> -> vector<8x8xf32>
    %89 = arith.truncf %88 : vector<8x8xf32> to vector<8x8xbf16>
    %c8 = arith.constant 8 : index
    %c0_34 = arith.constant 0 : index
    %90 = vector.load %arg7[%c8, %c0_34] : memref<32x32xbf16, #tpu.memory_space<vmem>>, vector<8x32xbf16>
    %cst_35 = arith.constant dense<0.000000e+00> : vector<8x32xf32>
    %91 = tpu.matmul %89, %90, %cst_35 {dimension_numbers = #tpu.dot_dimension_numbers<[1], [0], [0], [1], [0, 0, 1, 1], [], []>} : vector<8x8xbf16>, vector<8x32xbf16>, vector<8x32xf32> -> vector<8x32xf32>
    %92 = arith.addf %70, %91 : vector<8x32xf32>
    %93 = vector.extract_strided_slice %43 {offsets = [0, 16], sizes = [8, 8], strides = [1, 1]} : vector<8x32xbf16> to vector<8x8xbf16>
    %94 = vector.extract_strided_slice %45 {offsets = [0, 16], sizes = [8, 8], strides = [1, 1]} : vector<8x32xbf16> to vector<8x8xbf16>
    %cst_36 = arith.constant dense<0.000000e+00> : vector<8x8xf32>
    %95 = tpu.matmul %93, %94, %cst_36 {dimension_numbers = #tpu.dot_dimension_numbers<[1], [1], [0], [0], [0, 0, 1, 0], [], []>} : vector<8x8xbf16>, vector<8x8xbf16>, vector<8x8xf32> -> vector<8x8xf32>
    %96 = vector.broadcast %39 : vector<1x8xf32> to vector<8x8xf32>
    %97 = arith.addf %95, %96 : vector<8x8xf32>
    %cst_37 = arith.constant dense<0xFF800000> : vector<8xf32>
    %98 = vector.multi_reduction <maximumf>, %97, %cst_37 [1] : vector<8x8xf32> to vector<8xf32>
    %99 = vector.shape_cast %98 : vector<8xf32> to vector<8x1xf32>
    %100 = vector.broadcast %99 : vector<8x1xf32> to vector<8x8xf32>
    %101 = arith.subf %97, %100 : vector<8x8xf32>
    %102 = math.exp %101 : vector<8x8xf32>
    %cst_38 = arith.constant dense<0.000000e+00> : vector<8xf32>
    %103 = vector.multi_reduction <add>, %102, %cst_38 [1] : vector<8x8xf32> to vector<8xf32>
    %104 = vector.shape_cast %103 : vector<8xf32> to vector<8x1xf32>
    %105 = tpu.reciprocal %104 {approx = true} : vector<8x1xf32> -> vector<8x1xf32>
    %106 = vector.broadcast %105 : vector<8x1xf32> to vector<8x8xf32>
    %107 = arith.mulf %102, %106 : vector<8x8xf32>
    %108 = arith.truncf %107 : vector<8x8xf32> to vector<8x8xbf16>
    %109 = vector.extract_strided_slice %47 {offsets = [0, 16], sizes = [8, 8], strides = [1, 1]} : vector<8x32xbf16> to vector<8x8xbf16>
    %cst_39 = arith.constant dense<0.000000e+00> : vector<8x8xf32>
    %110 = tpu.matmul %108, %109, %cst_39 {dimension_numbers = #tpu.dot_dimension_numbers<[1], [0], [0], [1], [0, 0, 1, 1], [], []>} : vector<8x8xbf16>, vector<8x8xbf16>, vector<8x8xf32> -> vector<8x8xf32>
    %111 = arith.truncf %110 : vector<8x8xf32> to vector<8x8xbf16>
    %c16 = arith.constant 16 : index
    %c0_40 = arith.constant 0 : index
    %112 = vector.load %arg7[%c16, %c0_40] : memref<32x32xbf16, #tpu.memory_space<vmem>>, vector<8x32xbf16>
    %cst_41 = arith.constant dense<0.000000e+00> : vector<8x32xf32>
    %113 = tpu.matmul %111, %112, %cst_41 {dimension_numbers = #tpu.dot_dimension_numbers<[1], [0], [0], [1], [0, 0, 1, 1], [], []>} : vector<8x8xbf16>, vector<8x32xbf16>, vector<8x32xf32> -> vector<8x32xf32>
    %114 = arith.addf %92, %113 : vector<8x32xf32>
    %115 = vector.extract_strided_slice %43 {offsets = [0, 24], sizes = [8, 8], strides = [1, 1]} : vector<8x32xbf16> to vector<8x8xbf16>
    %116 = vector.extract_strided_slice %45 {offsets = [0, 24], sizes = [8, 8], strides = [1, 1]} : vector<8x32xbf16> to vector<8x8xbf16>
    %cst_42 = arith.constant dense<0.000000e+00> : vector<8x8xf32>
    %117 = tpu.matmul %115, %116, %cst_42 {dimension_numbers = #tpu.dot_dimension_numbers<[1], [1], [0], [0], [0, 0, 1, 0], [], []>} : vector<8x8xbf16>, vector<8x8xbf16>, vector<8x8xf32> -> vector<8x8xf32>
    %118 = vector.broadcast %39 : vector<1x8xf32> to vector<8x8xf32>
    %119 = arith.addf %117, %118 : vector<8x8xf32>
    %cst_43 = arith.constant dense<0xFF800000> : vector<8xf32>
    %120 = vector.multi_reduction <maximumf>, %119, %cst_43 [1] : vector<8x8xf32> to vector<8xf32>
    %121 = vector.shape_cast %120 : vector<8xf32> to vector<8x1xf32>
    %122 = vector.broadcast %121 : vector<8x1xf32> to vector<8x8xf32>
    %123 = arith.subf %119, %122 : vector<8x8xf32>
    %124 = math.exp %123 : vector<8x8xf32>
    %cst_44 = arith.constant dense<0.000000e+00> : vector<8xf32>
    %125 = vector.multi_reduction <add>, %124, %cst_44 [1] : vector<8x8xf32> to vector<8xf32>
    %126 = vector.shape_cast %125 : vector<8xf32> to vector<8x1xf32>
    %127 = tpu.reciprocal %126 {approx = true} : vector<8x1xf32> -> vector<8x1xf32>
    %128 = vector.broadcast %127 : vector<8x1xf32> to vector<8x8xf32>
    %129 = arith.mulf %124, %128 : vector<8x8xf32>
    %130 = arith.truncf %129 : vector<8x8xf32> to vector<8x8xbf16>
    %131 = vector.extract_strided_slice %47 {offsets = [0, 24], sizes = [8, 8], strides = [1, 1]} : vector<8x32xbf16> to vector<8x8xbf16>
    %cst_45 = arith.constant dense<0.000000e+00> : vector<8x8xf32>
    %132 = tpu.matmul %130, %131, %cst_45 {dimension_numbers = #tpu.dot_dimension_numbers<[1], [0], [0], [1], [0, 0, 1, 1], [], []>} : vector<8x8xbf16>, vector<8x8xbf16>, vector<8x8xf32> -> vector<8x8xf32>
    %133 = arith.truncf %132 : vector<8x8xf32> to vector<8x8xbf16>
    %c24 = arith.constant 24 : index
    %c0_46 = arith.constant 0 : index
    %134 = vector.load %arg7[%c24, %c0_46] : memref<32x32xbf16, #tpu.memory_space<vmem>>, vector<8x32xbf16>
    %cst_47 = arith.constant dense<0.000000e+00> : vector<8x32xf32>
    %135 = tpu.matmul %133, %134, %cst_47 {dimension_numbers = #tpu.dot_dimension_numbers<[1], [0], [0], [1], [0, 0, 1, 1], [], []>} : vector<8x8xbf16>, vector<8x32xbf16>, vector<8x32xf32> -> vector<8x32xf32>
    %136 = arith.addf %114, %135 : vector<8x32xf32>
    %137 = arith.addf %1, %136 : vector<8x32xf32>
    %c0_48 = arith.constant 0 : index
    %c0_49 = arith.constant 0 : index
    %138 = vector.load %arg8[%c0_48, %c0_49] : memref<1x32xf32, #tpu.memory_space<vmem>>, vector<1x32xf32>
    %139 = vector.broadcast %138 : vector<1x32xf32> to vector<8x32xf32>
    %140 = arith.addf %137, %139 : vector<8x32xf32>
    %c0_50 = arith.constant 0 : index
    %c0_51 = arith.constant 0 : index
    %141 = vector.load %arg9[%c0_50, %c0_51] : memref<1x32xf32, #tpu.memory_space<vmem>>, vector<1x32xf32>
    %c0_52 = arith.constant 0 : index
    %c0_53 = arith.constant 0 : index
    %142 = vector.load %arg10[%c0_52, %c0_53] : memref<1x32xf32, #tpu.memory_space<vmem>>, vector<1x32xf32>
    %cst_54 = arith.constant dense<0.000000e+00> : vector<8xf32>
    %143 = vector.multi_reduction <add>, %140, %cst_54 [1] : vector<8x32xf32> to vector<8xf32>
    %144 = vector.shape_cast %143 : vector<8xf32> to vector<8x1xf32>
    %cst_55 = arith.constant 3.200000e+01 : f32
    %145 = vector.broadcast %cst_55 : f32 to vector<8x1xf32>
    %146 = arith.divf %144, %145 : vector<8x1xf32>
    %147 = vector.broadcast %146 : vector<8x1xf32> to vector<8x32xf32>
    %148 = arith.subf %140, %147 : vector<8x32xf32>
    %149 = arith.mulf %148, %148 : vector<8x32xf32>
    %cst_56 = arith.constant dense<0.000000e+00> : vector<8xf32>
    %150 = vector.multi_reduction <add>, %149, %cst_56 [1] : vector<8x32xf32> to vector<8xf32>
    %151 = vector.shape_cast %150 : vector<8xf32> to vector<8x1xf32>
    %cst_57 = arith.constant 0.0322580636 : f32
    %152 = vector.broadcast %cst_57 : f32 to vector<8x1xf32>
    %153 = arith.mulf %151, %152 : vector<8x1xf32>
    %154 = math.sqrt %153 : vector<8x1xf32>
    %cst_58 = arith.constant 9.99999997E-7 : f32
    %155 = vector.broadcast %cst_58 : f32 to vector<8x1xf32>
    %156 = arith.addf %154, %155 : vector<8x1xf32>
    %157 = tpu.reciprocal %156 {approx = true} : vector<8x1xf32> -> vector<8x1xf32>
    %158 = vector.broadcast %146 : vector<8x1xf32> to vector<8x32xf32>
    %159 = arith.subf %140, %158 : vector<8x32xf32>
    %160 = vector.broadcast %141 : vector<1x32xf32> to vector<8x32xf32>
    %161 = arith.mulf %160, %159 : vector<8x32xf32>
    %162 = vector.broadcast %157 : vector<8x1xf32> to vector<8x32xf32>
    %163 = arith.mulf %161, %162 : vector<8x32xf32>
    %164 = vector.broadcast %142 : vector<1x32xf32> to vector<8x32xf32>
    %165 = arith.addf %163, %164 : vector<8x32xf32>
    %166 = arith.truncf %165 : vector<8x32xf32> to vector<8x32xbf16>
    %c0_59 = arith.constant 0 : index
    %c0_60 = arith.constant 0 : index
    %167 = vector.load %arg11[%c0_59, %c0_60] : memref<32x128xbf16, #tpu.memory_space<vmem>>, vector<32x128xbf16>
    %cst_61 = arith.constant dense<0.000000e+00> : vector<8x128xf32>
    %168 = tpu.matmul %166, %167, %cst_61 {dimension_numbers = #tpu.dot_dimension_numbers<[1], [0], [0], [1], [0, 0, 1, 1], [], []>} : vector<8x32xbf16>, vector<32x128xbf16>, vector<8x128xf32> -> vector<8x128xf32>
    %c0_62 = arith.constant 0 : index
    %c0_63 = arith.constant 0 : index
    %169 = vector.load %arg12[%c0_62, %c0_63] : memref<1x128xf32, #tpu.memory_space<vmem>>, vector<1x128xf32>
    %170 = vector.broadcast %169 : vector<1x128xf32> to vector<8x128xf32>
    %171 = arith.addf %168, %170 : vector<8x128xf32>
    %cst_64 = arith.constant 0.000000e+00 : f32
    %172 = vector.broadcast %cst_64 : f32 to vector<8x128xf32>
    %173 = arith.maximumf %171, %172 : vector<8x128xf32>
    %174 = arith.truncf %173 : vector<8x128xf32> to vector<8x128xbf16>
    %c0_65 = arith.constant 0 : index
    %c0_66 = arith.constant 0 : index
    %175 = vector.load %arg13[%c0_65, %c0_66] : memref<128x32xbf16, #tpu.memory_space<vmem>>, vector<128x32xbf16>
    %cst_67 = arith.constant dense<0.000000e+00> : vector<8x32xf32>
    %176 = tpu.matmul %174, %175, %cst_67 {dimension_numbers = #tpu.dot_dimension_numbers<[1], [0], [0], [1], [0, 0, 1, 1], [], []>} : vector<8x128xbf16>, vector<128x32xbf16>, vector<8x32xf32> -> vector<8x32xf32>
    %c0_68 = arith.constant 0 : index
    %c0_69 = arith.constant 0 : index
    %177 = vector.load %arg14[%c0_68, %c0_69] : memref<1x32xf32, #tpu.memory_space<vmem>>, vector<1x32xf32>
    %178 = vector.broadcast %177 : vector<1x32xf32> to vector<8x32xf32>
    %179 = arith.addf %176, %178 : vector<8x32xf32>
    %180 = arith.addf %140, %179 : vector<8x32xf32>
    %c0_70 = arith.constant 0 : index
    %c0_71 = arith.constant 0 : index
    %c0_72 = arith.constant 0 : index
    %181 = vector.load %arg15[%c0_70, %c0_71, %c0_72] : memref<1x8x32xf32, #tpu.memory_space<vmem>>, vector<1x8x32xf32>
    %182 = vector.shape_cast %181 : vector<1x8x32xf32> to vector<8x32xf32>
    %183 = vector.shape_cast %180 : vector<8x32xf32> to vector<1x8x32xf32>
    tpu.vector_store %arg15[%c0_70, %c0_71, %c0_72], %183 {strides = array<i32>} : memref<1x8x32xf32, #tpu.memory_space<vmem>>, vector<1x8x32xf32>,
    return
  }
  func.func @transform_0(%arg0: i32) -> (i32, i32, i32) {
    %c0_i32 = arith.constant 0 : i32
    %c0_i32_0 = arith.constant 0 : i32
    %c0_i32_1 = arith.constant 0 : i32
    return %arg0, %c0_i32, %c0_i32_0 : i32, i32, i32
  }
  func.func @transform_1(%arg0: i32) -> (i32, i32, i32) {
    %c0_i32 = arith.constant 0 : i32
    %c0_i32_0 = arith.constant 0 : i32
    %c0_i32_1 = arith.constant 0 : i32
    return %arg0, %c0_i32, %c0_i32_0 : i32, i32, i32
  }
  func.func @transform_2(%arg0: i32) -> (i32, i32) {
    %c0_i32 = arith.constant 0 : i32
    %c0_i32_0 = arith.constant 0 : i32
    %c0_i32_1 = arith.constant 0 : i32
    return %c0_i32, %c0_i32_0 : i32, i32
  }
  func.func @transform_3(%arg0: i32) -> (i32, i32) {
    %c0_i32 = arith.constant 0 : i32
    %c0_i32_0 = arith.constant 0 : i32
    %c0_i32_1 = arith.constant 0 : i32
    return %c0_i32, %c0_i32_0 : i32, i32
  }
  func.func @transform_4(%arg0: i32) -> (i32, i32) {
    %c0_i32 = arith.constant 0 : i32
    %c0_i32_0 = arith.constant 0 : i32
    %c0_i32_1 = arith.constant 0 : i32
    return %c0_i32, %c0_i32_0 : i32, i32
  }
  func.func @transform_5(%arg0: i32) -> (i32, i32) {
    %c0_i32 = arith.constant 0 : i32
    %c0_i32_0 = arith.constant 0 : i32
    %c0_i32_1 = arith.constant 0 : i32
    return %c0_i32, %c0_i32_0 : i32, i32
  }
  func.func @transform_6(%arg0: i32) -> (i32, i32) {
    %c0_i32 = arith.constant 0 : i32
    %c0_i32_0 = arith.constant 0 : i32
    %c0_i32_1 = arith.constant 0 : i32
    return %c0_i32, %c0_i32_0 : i32, i32
  }
  func.func @transform_7(%arg0: i32) -> (i32, i32) {
    %c0_i32 = arith.constant 0 : i32
    %c0_i32_0 = arith.constant 0 : i32
    %c0_i32_1 = arith.constant 0 : i32
    return %c0_i32, %c0_i32_0 : i32, i32
  }
  func.func @transform_8(%arg0: i32) -> (i32, i32) {
    %c0_i32 = arith.constant 0 : i32
    %c0_i32_0 = arith.constant 0 : i32
    %c0_i32_1 = arith.constant 0 : i32
    return %c0_i32, %c0_i32_0 : i32, i32
  }
  func.func @transform_9(%arg0: i32) -> (i32, i32) {
    %c0_i32 = arith.constant 0 : i32
    %c0_i32_0 = arith.constant 0 : i32
    %c0_i32_1 = arith.constant 0 : i32
    return %c0_i32, %c0_i32_0 : i32, i32
  }
  func.func @transform_10(%arg0: i32) -> (i32, i32) {
    %c0_i32 = arith.constant 0 : i32
    %c0_i32_0 = arith.constant 0 : i32
    %c0_i32_1 = arith.constant 0 : i32
    return %c0_i32, %c0_i32_0 : i32, i32
  }
  func.func @transform_11(%arg0: i32) -> (i32, i32) {
    %c0_i32 = arith.constant 0 : i32
    %c0_i32_0 = arith.constant 0 : i32
    %c0_i32_1 = arith.constant 0 : i32
    return %c0_i32, %c0_i32_0 : i32, i32
  }
  func.func @transform_12(%arg0: i32) -> (i32, i32) {
    %c0_i32 = arith.constant 0 : i32
    %c0_i32_0 = arith.constant 0 : i32
    %c0_i32_1 = arith.constant 0 : i32
    return %c0_i32, %c0_i32_0 : i32, i32
  }
  func.func @transform_13(%arg0: i32) -> (i32, i32) {
    %c0_i32 = arith.constant 0 : i32
    %c0_i32_0 = arith.constant 0 : i32
    %c0_i32_1 = arith.constant 0 : i32
    return %c0_i32, %c0_i32_0 : i32, i32
  }
  func.func @transform_14(%arg0: i32) -> (i32, i32, i32) {
    %c0_i32 = arith.constant 0 : i32
    %c0_i32_0 = arith.constant 0 : i32
    %c0_i32_1 = arith.constant 0 : i32
    return %arg0, %c0_i32, %c0_i32_0 : i32, i32, i32
  }
}

module attributes {stable_mosaic.version = 11 : i64} {
  func.func @_encoder_layer_kernel(%arg0: i32, %arg1: memref<1x8x32xf32, #tpu.memory_space<vmem>>, %arg2: memref<1x1x8xf32, #tpu.memory_space<vmem>>, %arg3: memref<1x32xf32, #tpu.memory_space<vmem>>, %arg4: memref<1x32xf32, #tpu.memory_space<vmem>>, %arg5: memref<32x96xbf16, #tpu.memory_space<vmem>>, %arg6: memref<1x96xf32, #tpu.memory_space<vmem>>, %arg7: memref<32x32xbf16, #tpu.memory_space<vmem>>, %arg8: memref<1x32xf32, #tpu.memory_space<vmem>>, %arg9: memref<1x32xf32, #tpu.memory_space<vmem>>, %arg10: memref<1x32xf32, #tpu.memory_space<vmem>>, %arg11: memref<32x128xbf16, #tpu.memory_space<vmem>>, %arg12: memref<1x128xf32, #tpu.memory_space<vmem>>, %arg13: memref<128x32xbf16, #tpu.memory_space<vmem>>, %arg14: memref<1x32xf32, #tpu.memory_space<vmem>>, %arg15: memref<1x8x32xf32, #tpu.memory_space<vmem>>) attributes {dimension_semantics = [#tpu.dimension_semantics<parallel>], iteration_bounds = array<i64: 2>, scalar_prefetch = 0 : i64, scratch_operands = 0 : i64, tpu.core_type = #tpu.core_type<tc>, window_params = [{transform_indices = @transform_0, window_bounds = array<i64: 1, 8, 32>}, {transform_indices = @transform_1, window_bounds = array<i64: 1, 1, 8>}, {pipeline_mode = #tpu.pipeline_mode<synchronous>, transform_indices = @transform_2, window_bounds = array<i64: 1, 32>}, {pipeline_mode = #tpu.pipeline_mode<synchronous>, transform_indices = @transform_3, window_bounds = array<i64: 1, 32>}, {pipeline_mode = #tpu.pipeline_mode<synchronous>, transform_indices = @transform_4, window_bounds = array<i64: 32, 96>}, {pipeline_mode = #tpu.pipeline_mode<synchronous>, transform_indices = @transform_5, window_bounds = array<i64: 1, 96>}, {pipeline_mode = #tpu.pipeline_mode<synchronous>, transform_indices = @transform_6, window_bounds = array<i64: 32, 32>}, {pipeline_mode = #tpu.pipeline_mode<synchronous>, transform_indices = @transform_7, window_bounds = array<i64: 1, 32>}, {pipeline_mode = #tpu.pipeline_mode<synchronous>, transform_indices = @transform_8, window_bounds = array<i64: 1, 32>}, {pipeline_mode = #tpu.pipeline_mode<synchronous>, transform_indices = @transform_9, window_bounds = array<i64: 1, 32>}, {pipeline_mode = #tpu.pipeline_mode<synchronous>, transform_indices = @transform_10, window_bounds = array<i64: 32, 128>}, {pipeline_mode = #tpu.pipeline_mode<synchronous>, transform_indices = @transform_11, window_bounds = array<i64: 1, 128>}, {pipeline_mode = #tpu.pipeline_mode<synchronous>, transform_indices = @transform_12, window_bounds = array<i64: 128, 32>}, {pipeline_mode = #tpu.pipeline_mode<synchronous>, transform_indices = @transform_13, window_bounds = array<i64: 1, 32>}, {transform_indices = @transform_14, window_bounds = array<i64: 1, 8, 32>}]} {
    %c0 = arith.constant 0 : index
    %c0_0 = arith.constant 0 : index
    %c0_1 = arith.constant 0 : index
    %0 = vector.load %arg1[%c0, %c0_0, %c0_1] : memref<1x8x32xf32, #tpu.memory_space<vmem>>, vector<1x8x32xf32>
    %1 = vector.shape_cast %0 : vector<1x8x32xf32> to vector<8x32xf32>
    %c0_2 = arith.constant 0 : index
    %c0_3 = arith.constant 0 : index
    %c0_4 = arith.constant 0 : index
    %2 = vector.load %arg2[%c0_2, %c0_3, %c0_4] : memref<1x1x8xf32, #tpu.memory_space<vmem>>, vector<1x1x8xf32>
    %3 = vector.shape_cast %2 : vector<1x1x8xf32> to vector<1x8xf32>
    %c0_5 = arith.constant 0 : index
    %c0_6 = arith.constant 0 : index
    %4 = vector.load %arg3[%c0_5, %c0_6] : memref<1x32xf32, #tpu.memory_space<vmem>>, vector<1x32xf32>
    %c0_7 = arith.constant 0 : index
    %c0_8 = arith.constant 0 : index
    %5 = vector.load %arg4[%c0_7, %c0_8] : memref<1x32xf32, #tpu.memory_space<vmem>>, vector<1x32xf32>
    %cst = arith.constant dense<0.000000e+00> : vector<8xf32>
    %6 = vector.multi_reduction <add>, %1, %cst [1] : vector<8x32xf32> to vector<8xf32>
    %7 = vector.shape_cast %6 : vector<8xf32> to vector<8x1xf32>
    %cst_9 = arith.constant 3.200000e+01 : f32
    %8 = vector.broadcast %cst_9 : f32 to vector<8x1xf32>
    %9 = arith.divf %7, %8 : vector<8x1xf32>
    %10 = vector.broadcast %9 : vector<8x1xf32> to vector<8x32xf32>
    %11 = arith.subf %1, %10 : vector<8x32xf32>
    %12 = arith.mulf %11, %11 : vector<8x32xf32>
    %cst_10 = arith.constant dense<0.000000e+00> : vector<8xf32>
    %13 = vector.multi_reduction <add>, %12, %cst_10 [1] : vector<8x32xf32> to vector<8xf32>
    %14 = vector.shape_cast %13 : vector<8xf32> to vector<8x1xf32>
    %cst_11 = arith.constant 0.0322580636 : f32
    %15 = vector.broadcast %cst_11 : f32 to vector<8x1xf32>
    %16 = arith.mulf %14, %15 : vector<8x1xf32>
    %17 = math.sqrt %16 : vector<8x1xf32>
    %cst_12 = arith.constant 9.99999997E-7 : f32
    %18 = vector.broadcast %cst_12 : f32 to vector<8x1xf32>
    %19 = arith.addf %17, %18 : vector<8x1xf32>
    %20 = tpu.reciprocal %19 {approx = true} : vector<8x1xf32> -> vector<8x1xf32>
    %21 = vector.broadcast %9 : vector<8x1xf32> to vector<8x32xf32>
    %22 = arith.subf %1, %21 : vector<8x32xf32>
    %23 = vector.broadcast %4 : vector<1x32xf32> to vector<8x32xf32>
    %24 = arith.mulf %23, %22 : vector<8x32xf32>
    %25 = vector.broadcast %20 : vector<8x1xf32> to vector<8x32xf32>
    %26 = arith.mulf %24, %25 : vector<8x32xf32>
    %27 = vector.broadcast %5 : vector<1x32xf32> to vector<8x32xf32>
    %28 = arith.addf %26, %27 : vector<8x32xf32>
    %29 = arith.truncf %28 : vector<8x32xf32> to vector<8x32xbf16>
    %c0_13 = arith.constant 0 : index
    %c0_14 = arith.constant 0 : index
    %30 = vector.load %arg5[%c0_13, %c0_14] : memref<32x96xbf16, #tpu.memory_space<vmem>>, vector<32x96xbf16>
    %cst_15 = arith.constant dense<0.000000e+00> : vector<8x96xf32>
    %31 = tpu.matmul %29, %30, %cst_15 {dimension_numbers = #tpu.dot_dimension_numbers<[1], [0], [0], [1], [0, 0, 1, 1], [], []>} : vector<8x32xbf16>, vector<32x96xbf16>, vector<8x96xf32> -> vector<8x96xf32>
    %c0_16 = arith.constant 0 : index
    %c0_17 = arith.constant 0 : index
    %32 = vector.load %arg6[%c0_16, %c0_17] : memref<1x96xf32, #tpu.memory_space<vmem>>, vector<1x96xf32>
    %33 = vector.broadcast %32 : vector<1x96xf32> to vector<8x96xf32>
    %34 = arith.addf %31, %33 : vector<8x96xf32>
    %cst_18 = arith.constant 0.000000e+00 : f32
    %35 = vector.broadcast %cst_18 : f32 to vector<1x8xf32>
    %36 = arith.cmpf oeq, %3, %35 : vector<1x8xf32>
    %cst_19 = arith.constant -1.000000e+09 : f32
    %cst_20 = arith.constant 0.000000e+00 : f32
    %37 = vector.broadcast %cst_19 : f32 to vector<1x8xf32>
    %38 = vector.broadcast %cst_20 : f32 to vector<1x8xf32>
    %39 = arith.select %36, %37, %38 : vector<1x8xi1>, vector<1x8xf32>
    %40 = vector.extract_strided_slice %34 {offsets = [0, 0], sizes = [8, 32], strides = [1, 1]} : vector<8x96xf32> to vector<8x32xf32>
    %cst_21 = arith.constant 0.353553385 : f32
    %41 = vector.broadcast %cst_21 : f32 to vector<8x32xf32>
    %42 = arith.mulf %40, %41 : vector<8x32xf32>
    %43 = arith.truncf %42 : vector<8x32xf32> to vector<8x32xbf16>
    %44 = vector.extract_strided_slice %34 {offsets = [0, 32], sizes = [8, 32], strides = [1, 1]} : vector<8x96xf32> to vector<8x32xf32>
    %45 = arith.truncf %44 : vector<8x32xf32> to vector<8x32xbf16>
    %46 = vector.extract_strided_slice %34 {offsets = [0, 64], sizes = [8, 32], strides = [1, 1]} : vector<8x96xf32> to vector<8x32xf32>
    %47 = arith.truncf %46 : vector<8x32xf32> to vector<8x32xbf16>
    %cst_22 = arith.constant 0.000000e+00 : f32
    %48 = vector.broadcast %cst_22 : f32 to vector<8x32xf32>
    %49 = vector.extract_strided_slice %43 {offsets = [0, 0], sizes = [8, 8], strides = [1, 1]} : vector<8x32xbf16> to vector<8x8xbf16>
    %50 = vector.extract_strided_slice %45 {offsets = [0, 0], sizes = [8, 8], strides = [1, 1]} : vector<8x32xbf16> to vector<8x8xbf16>
    %cst_23 = arith.constant dense<0.000000e+00> : vector<8x8xf32>
    %51 = tpu.matmul %49, %50, %cst_23 {dimension_numbers = #tpu.dot_dimension_numbers<[1], [1], [0], [0], [0, 0, 1, 0], [], []>} : vector<8x8xbf16>, vector<8x8xbf16>, vector<8x8xf32> -> vector<8x8xf32>
    %52 = vector.broadcast %39 : vector<1x8xf32> to vector<8x8xf32>
    %53 = arith.addf %51, %52 : vector<8x8xf32>
    %cst_24 = arith.constant dense<0xFF800000> : vector<8xf32>
    %54 = vector.multi_reduction <maximumf>, %53, %cst_24 [1] : vector<8x8xf32> to vector<8xf32>
    %55 = vector.shape_cast %54 : vector<8xf32> to vector<8x1xf32>
    %56 = vector.broadcast %55 : vector<8x1xf32> to vector<8x8xf32>
    %57 = arith.subf %53, %56 : vector<8x8xf32>
    %58 = math.exp %57 : vector<8x8xf32>
    %cst_25 = arith.constant dense<0.000000e+00> : vector<8xf32>
    %59 = vector.multi_reduction <add>, %58, %cst_25 [1] : vector<8x8xf32> to vector<8xf32>
    %60 = vector.shape_cast %59 : vector<8xf32> to vector<8x1xf32>
    %61 = tpu.reciprocal %60 {approx = true} : vector<8x1xf32> -> vector<8x1xf32>
    %62 = vector.broadcast %61 : vector<8x1xf32> to vector<8x8xf32>
    %63 = arith.mulf %58, %62 : vector<8x8xf32>
    %64 = arith.truncf %63 : vector<8x8xf32> to vector<8x8xbf16>
    %65 = vector.extract_strided_slice %47 {offsets = [0, 0], sizes = [8, 8], strides = [1, 1]} : vector<8x32xbf16> to vector<8x8xbf16>
    %cst_26 = arith.constant dense<0.000000e+00> : vector<8x8xf32>
    %66 = tpu.matmul %64, %65, %cst_26 {dimension_numbers = #tpu.dot_dimension_numbers<[1], [0], [0], [1], [0, 0, 1, 1], [], []>} : vector<8x8xbf16>, vector<8x8xbf16>, vector<8x8xf32> -> vector<8x8xf32>
    %67 = arith.truncf %66 : vector<8x8xf32> to vector<8x8xbf16>
    %c0_27 = arith.constant 0 : index
    %c0_28 = arith.constant 0 : index
    %68 = vector.load %arg7[%c0_27, %c0_28] : memref<32x32xbf16, #tpu.memory_space<vmem>>, vector<8x32xbf16>
    %cst_29 = arith.constant dense<0.000000e+00> : vector<8x32xf32>
    %69 = tpu.matmul %67, %68, %cst_29 {dimension_numbers = #tpu.dot_dimension_numbers<[1], [0], [0], [1], [0, 0, 1, 1], [], []>} : vector<8x8xbf16>, vector<8x32xbf16>, vector<8x32xf32> -> vector<8x32xf32>
    %70 = arith.addf %48, %69 : vector<8x32xf32>
    %71 = vector.extract_strided_slice %43 {offsets = [0, 8], sizes = [8, 8], strides = [1, 1]} : vector<8x32xbf16> to vector<8x8xbf16>
    %72 = vector.extract_strided_slice %45 {offsets = [0, 8], sizes = [8, 8], strides = [1, 1]} : vector<8x32xbf16> to vector<8x8xbf16>
    %cst_30 = arith.constant dense<0.000000e+00> : vector<8x8xf32>
    %73 = tpu.matmul %71, %72, %cst_30 {dimension_numbers = #tpu.dot_dimension_numbers<[1], [1], [0], [0], [0, 0, 1, 0], [], []>} : vector<8x8xbf16>, vector<8x8xbf16>, vector<8x8xf32> -> vector<8x8xf32>
    %74 = vector.broadcast %39 : vector<1x8xf32> to vector<8x8xf32>
    %75 = arith.addf %73, %74 : vector<8x8xf32>
    %cst_31 = arith.constant dense<0xFF800000> : vector<8xf32>
    %76 = vector.multi_reduction <maximumf>, %75, %cst_31 [1] : vector<8x8xf32> to vector<8xf32>
    %77 = vector.shape_cast %76 : vector<8xf32> to vector<8x1xf32>
    %78 = vector.broadcast %77 : vector<8x1xf32> to vector<8x8xf32>
    %79 = arith.subf %75, %78 : vector<8x8xf32>
    %80 = math.exp %79 : vector<8x8xf32>
    %cst_32 = arith.constant dense<0.000000e+00> : vector<8xf32>
    %81 = vector.multi_reduction <add>, %80, %cst_32 [1] : vector<8x8xf32> to vector<8xf32>
    %82 = vector.shape_cast %81 : vector<8xf32> to vector<8x1xf32>
    %83 = tpu.reciprocal %82 {approx = true} : vector<8x1xf32> -> vector<8x1xf32>
    %84 = vector.broadcast %83 : vector<8x1xf32> to vector<8x8xf32>
    %85 = arith.mulf %80, %84 : vector<8x8xf32>
    %86 = arith.truncf %85 : vector<8x8xf32> to vector<8x8xbf16>
    %87 = vector.extract_strided_slice %47 {offsets = [0, 8], sizes = [8, 8], strides = [1, 1]} : vector<8x32xbf16> to vector<8x8xbf16>
    %cst_33 = arith.constant dense<0.000000e+00> : vector<8x8xf32>
    %88 = tpu.matmul %86, %87, %cst_33 {dimension_numbers = #tpu.dot_dimension_numbers<[1], [0], [0], [1], [0, 0, 1, 1], [], []>} : vector<8x8xbf16>, vector<8x8xbf16>, vector<8x8xf32> -> vector<8x8xf32>
    %89 = arith.truncf %88 : vector<8x8xf32> to vector<8x8xbf16>
    %c8 = arith.constant 8 : index
    %c0_34 = arith.constant 0 : index
    %90 = vector.load %arg7[%c8, %c0_34] : memref<32x32xbf16, #tpu.memory_space<vmem>>, vector<8x32xbf16>
    %cst_35 = arith.constant dense<0.000000e+00> : vector<8x32xf32>
    %91 = tpu.matmul %89, %90, %cst_35 {dimension_numbers = #tpu.dot_dimension_numbers<[1], [0], [0], [1], [0, 0, 1, 1], [], []>} : vector<8x8xbf16>, vector<8x32xbf16>, vector<8x32xf32> -> vector<8x32xf32>
    %92 = arith.addf %70, %91 : vector<8x32xf32>
    %93 = vector.extract_strided_slice %43 {offsets = [0, 16], sizes = [8, 8], strides = [1, 1]} : vector<8x32xbf16> to vector<8x8xbf16>
    %94 = vector.extract_strided_slice %45 {offsets = [0, 16], sizes = [8, 8], strides = [1, 1]} : vector<8x32xbf16> to vector<8x8xbf16>
    %cst_36 = arith.constant dense<0.000000e+00> : vector<8x8xf32>
    %95 = tpu.matmul %93, %94, %cst_36 {dimension_numbers = #tpu.dot_dimension_numbers<[1], [1], [0], [0], [0, 0, 1, 0], [], []>} : vector<8x8xbf16>, vector<8x8xbf16>, vector<8x8xf32> -> vector<8x8xf32>
    %96 = vector.broadcast %39 : vector<1x8xf32> to vector<8x8xf32>
    %97 = arith.addf %95, %96 : vector<8x8xf32>
    %cst_37 = arith.constant dense<0xFF800000> : vector<8xf32>
    %98 = vector.multi_reduction <maximumf>, %97, %cst_37 [1] : vector<8x8xf32> to vector<8xf32>
    %99 = vector.shape_cast %98 : vector<8xf32> to vector<8x1xf32>
    %100 = vector.broadcast %99 : vector<8x1xf32> to vector<8x8xf32>
    %101 = arith.subf %97, %100 : vector<8x8xf32>
    %102 = math.exp %101 : vector<8x8xf32>
    %cst_38 = arith.constant dense<0.000000e+00> : vector<8xf32>
    %103 = vector.multi_reduction <add>, %102, %cst_38 [1] : vector<8x8xf32> to vector<8xf32>
    %104 = vector.shape_cast %103 : vector<8xf32> to vector<8x1xf32>
    %105 = tpu.reciprocal %104 {approx = true} : vector<8x1xf32> -> vector<8x1xf32>
    %106 = vector.broadcast %105 : vector<8x1xf32> to vector<8x8xf32>
    %107 = arith.mulf %102, %106 : vector<8x8xf32>
    %108 = arith.truncf %107 : vector<8x8xf32> to vector<8x8xbf16>
    %109 = vector.extract_strided_slice %47 {offsets = [0, 16], sizes = [8, 8], strides = [1, 1]} : vector<8x32xbf16> to vector<8x8xbf16>
    %cst_39 = arith.constant dense<0.000000e+00> : vector<8x8xf32>
    %110 = tpu.matmul %108, %109, %cst_39 {dimension_numbers = #tpu.dot_dimension_numbers<[1], [0], [0], [1], [0, 0, 1, 1], [], []>} : vector<8x8xbf16>, vector<8x8xbf16>, vector<8x8xf32> -> vector<8x8xf32>
    %111 = arith.truncf %110 : vector<8x8xf32> to vector<8x8xbf16>
    %c16 = arith.constant 16 : index
    %c0_40 = arith.constant 0 : index
    %112 = vector.load %arg7[%c16, %c0_40] : memref<32x32xbf16, #tpu.memory_space<vmem>>, vector<8x32xbf16>
    %cst_41 = arith.constant dense<0.000000e+00> : vector<8x32xf32>
    %113 = tpu.matmul %111, %112, %cst_41 {dimension_numbers = #tpu.dot_dimension_numbers<[1], [0], [0], [1], [0, 0, 1, 1], [], []>} : vector<8x8xbf16>, vector<8x32xbf16>, vector<8x32xf32> -> vector<8x32xf32>
    %114 = arith.addf %92, %113 : vector<8x32xf32>
    %115 = vector.extract_strided_slice %43 {offsets = [0, 24], sizes = [8, 8], strides = [1, 1]} : vector<8x32xbf16> to vector<8x8xbf16>
    %116 = vector.extract_strided_slice %45 {offsets = [0, 24], sizes = [8, 8], strides = [1, 1]} : vector<8x32xbf16> to vector<8x8xbf16>
    %cst_42 = arith.constant dense<0.000000e+00> : vector<8x8xf32>
    %117 = tpu.matmul %115, %116, %cst_42 {dimension_numbers = #tpu.dot_dimension_numbers<[1], [1], [0], [0], [0, 0, 1, 0], [], []>} : vector<8x8xbf16>, vector<8x8xbf16>, vector<8x8xf32> -> vector<8x8xf32>
    %118 = vector.broadcast %39 : vector<1x8xf32> to vector<8x8xf32>
    %119 = arith.addf %117, %118 : vector<8x8xf32>
    %cst_43 = arith.constant dense<0xFF800000> : vector<8xf32>
    %120 = vector.multi_reduction <maximumf>, %119, %cst_43 [1] : vector<8x8xf32> to vector<8xf32>
    %121 = vector.shape_cast %120 : vector<8xf32> to vector<8x1xf32>
    %122 = vector.broadcast %121 : vector<8x1xf32> to vector<8x8xf32>
    %123 = arith.subf %119, %122 : vector<8x8xf32>
    %124 = math.exp %123 : vector<8x8xf32>
    %cst_44 = arith.constant dense<0.000000e+00> : vector<8xf32>
    %125 = vector.multi_reduction <add>, %124, %cst_44 [1] : vector<8x8xf32> to vector<8xf32>
    %126 = vector.shape_cast %125 : vector<8xf32> to vector<8x1xf32>
    %127 = tpu.reciprocal %126 {approx = true} : vector<8x1xf32> -> vector<8x1xf32>
    %128 = vector.broadcast %127 : vector<8x1xf32> to vector<8x8xf32>
    %129 = arith.mulf %124, %128 : vector<8x8xf32>
    %130 = arith.truncf %129 : vector<8x8xf32> to vector<8x8xbf16>
    %131 = vector.extract_strided_slice %47 {offsets = [0, 24], sizes = [8, 8], strides = [1, 1]} : vector<8x32xbf16> to vector<8x8xbf16>
    %cst_45 = arith.constant dense<0.000000e+00> : vector<8x8xf32>
    %132 = tpu.matmul %130, %131, %cst_45 {dimension_numbers = #tpu.dot_dimension_numbers<[1], [0], [0], [1], [0, 0, 1, 1], [], []>} : vector<8x8xbf16>, vector<8x8xbf16>, vector<8x8xf32> -> vector<8x8xf32>
    %133 = arith.truncf %132 : vector<8x8xf32> to vector<8x8xbf16>
    %c24 = arith.constant 24 : index
    %c0_46 = arith.constant 0 : index
    %134 = vector.load %arg7[%c24, %c0_46] : memref<32x32xbf16, #tpu.memory_space<vmem>>, vector<8x32xbf16>
    %cst_47 = arith.constant dense<0.000000e+00> : vector<8x32xf32>
    %135 = tpu.matmul %133, %134, %cst_47 {dimension_numbers = #tpu.dot_dimension_numbers<[1], [0], [0], [1], [0, 0, 1, 1], [], []>} : vector<8x8xbf16>, vector<8x32xbf16>, vector<8x32xf32> -> vector<8x32xf32>
    %136 = arith.addf %114, %135 : vector<8x32xf32>
    %137 = arith.addf %1, %136 : vector<8x32xf32>
    %c0_48 = arith.constant 0 : index
    %c0_49 = arith.constant 0 : index
    %138 = vector.load %arg8[%c0_48, %c0_49] : memref<1x32xf32, #tpu.memory_space<vmem>>, vector<1x32xf32>
    %139 = vector.broadcast %138 : vector<1x32xf32> to vector<8x32xf32>
    %140 = arith.addf %137, %139 : vector<8x32xf32>
    %c0_50 = arith.constant 0 : index
    %c0_51 = arith.constant 0 : index
    %141 = vector.load %arg9[%c0_50, %c0_51] : memref<1x32xf32, #tpu.memory_space<vmem>>, vector<1x32xf32>
    %c0_52 = arith.constant 0 : index
    %c0_53 = arith.constant 0 : index
    %142 = vector.load %arg10[%c0_52, %c0_53] : memref<1x32xf32, #tpu.memory_space<vmem>>, vector<1x32xf32>
    %cst_54 = arith.constant dense<0.000000e+00> : vector<8xf32>
    %143 = vector.multi_reduction <add>, %140, %cst_54 [1] : vector<8x32xf32> to vector<8xf32>
    %144 = vector.shape_cast %143 : vector<8xf32> to vector<8x1xf32>
    %cst_55 = arith.constant 3.200000e+01 : f32
    %145 = vector.broadcast %cst_55 : f32 to vector<8x1xf32>
    %146 = arith.divf %144, %145 : vector<8x1xf32>
    %147 = vector.broadcast %146 : vector<8x1xf32> to vector<8x32xf32>
    %148 = arith.subf %140, %147 : vector<8x32xf32>
    %149 = arith.mulf %148, %148 : vector<8x32xf32>
    %cst_56 = arith.constant dense<0.000000e+00> : vector<8xf32>
    %150 = vector.multi_reduction <add>, %149, %cst_56 [1] : vector<8x32xf32> to vector<8xf32>
    %151 = vector.shape_cast %150 : vector<8xf32> to vector<8x1xf32>
    %cst_57 = arith.constant 0.0322580636 : f32
    %152 = vector.broadcast %cst_57 : f32 to vector<8x1xf32>
    %153 = arith.mulf %151, %152 : vector<8x1xf32>
    %154 = math.sqrt %153 : vector<8x1xf32>
    %cst_58 = arith.constant 9.99999997E-7 : f32
    %155 = vector.broadcast %cst_58 : f32 to vector<8x1xf32>
    %156 = arith.addf %154, %155 : vector<8x1xf32>
    %157 = tpu.reciprocal %156 {approx = true} : vector<8x1xf32> -> vector<8x1xf32>
    %158 = vector.broadcast %146 : vector<8x1xf32> to vector<8x32xf32>
    %159 = arith.subf %140, %158 : vector<8x32xf32>
    %160 = vector.broadcast %141 : vector<1x32xf32> to vector<8x32xf32>
    %161 = arith.mulf %160, %159 : vector<8x32xf32>
    %162 = vector.broadcast %157 : vector<8x1xf32> to vector<8x32xf32>
    %163 = arith.mulf %161, %162 : vector<8x32xf32>
    %164 = vector.broadcast %142 : vector<1x32xf32> to vector<8x32xf32>
    %165 = arith.addf %163, %164 : vector<8x32xf32>
    %166 = arith.truncf %165 : vector<8x32xf32> to vector<8x32xbf16>
    %c0_59 = arith.constant 0 : index
    %c0_60 = arith.constant 0 : index
    %167 = vector.load %arg11[%c0_59, %c0_60] : memref<32x128xbf16, #tpu.memory_space<vmem>>, vector<32x128xbf16>
    %cst_61 = arith.constant dense<0.000000e+00> : vector<8x128xf32>
    %168 = tpu.matmul %166, %167, %cst_61 {dimension_numbers = #tpu.dot_dimension_numbers<[1], [0], [0], [1], [0, 0, 1, 1], [], []>} : vector<8x32xbf16>, vector<32x128xbf16>, vector<8x128xf32> -> vector<8x128xf32>
    %c0_62 = arith.constant 0 : index
    %c0_63 = arith.constant 0 : index
    %169 = vector.load %arg12[%c0_62, %c0_63] : memref<1x128xf32, #tpu.memory_space<vmem>>, vector<1x128xf32>
    %170 = vector.broadcast %169 : vector<1x128xf32> to vector<8x128xf32>
    %171 = arith.addf %168, %170 : vector<8x128xf32>
    %cst_64 = arith.constant 0.000000e+00 : f32
    %172 = vector.broadcast %cst_64 : f32 to vector<8x128xf32>
    %173 = arith.maximumf %171, %172 : vector<8x128xf32>
    %174 = arith.truncf %173 : vector<8x128xf32> to vector<8x128xbf16>
    %c0_65 = arith.constant 0 : index
    %c0_66 = arith.constant 0 : index
    %175 = vector.load %arg13[%c0_65, %c0_66] : memref<128x32xbf16, #tpu.memory_space<vmem>>, vector<128x32xbf16>
    %cst_67 = arith.constant dense<0.000000e+00> : vector<8x32xf32>
    %176 = tpu.matmul %174, %175, %cst_67 {dimension_numbers = #tpu.dot_dimension_numbers<[1], [0], [0], [1], [0, 0, 1, 1], [], []>} : vector<8x128xbf16>, vector<128x32xbf16>, vector<8x32xf32> -> vector<8x32xf32>
    %c0_68 = arith.constant 0 : index
    %c0_69 = arith.constant 0 : index
    %177 = vector.load %arg14[%c0_68, %c0_69] : memref<1x32xf32, #tpu.memory_space<vmem>>, vector<1x32xf32>
    %178 = vector.broadcast %177 : vector<1x32xf32> to vector<8x32xf32>
    %179 = arith.addf %176, %178 : vector<8x32xf32>
    %180 = arith.addf %140, %179 : vector<8x32xf32>
    %c0_70 = arith.constant 0 : index
    %c0_71 = arith.constant 0 : index
    %c0_72 = arith.constant 0 : index
    %181 = vector.load %arg15[%c0_70, %c0_71, %c0_72] : memref<1x8x32xf32, #tpu.memory_space<vmem>>, vector<1x8x32xf32>
    %182 = vector.shape_cast %181 : vector<1x8x32xf32> to vector<8x32xf32>
    %183 = vector.shape_cast %180 : vector<8x32xf32> to vector<1x8x32xf32>
    tpu.vector_store %arg15[%c0_70, %c0_71, %c0_72], %183 {strides = array<i32>} : memref<1x8x32xf32, #tpu.memory_space<vmem>>, vector<1x8x32xf32>,
    return
  }
  func.func @transform_0(%arg0: i32) -> (i32, i32, i32) {
    %c0_i32 = arith.constant 0 : i32
    %c0_i32_0 = arith.constant 0 : i32
    %c0_i32_1 = arith.constant 0 : i32
    return %arg0, %c0_i32, %c0_i32_0 : i32, i32, i32
  }
  func.func @transform_1(%arg0: i32) -> (i32, i32, i32) {
    %c0_i32 = arith.constant 0 : i32
    %c0_i32_0 = arith.constant 0 : i32
    %c0_i32_1 = arith.constant 0 : i32
    return %arg0, %c0_i32, %c0_i32_0 : i32, i32, i32
  }
  func.func @transform_2(%arg0: i32) -> (i32, i32) {
    %c0_i32 = arith.constant 0 : i32
    %c0_i32_0 = arith.constant 0 : i32
    %c0_i32_1 = arith.constant 0 : i32
    return %c0_i32, %c0_i32_0 : i32, i32
  }
  func.func @transform_3(%arg0: i32) -> (i32, i32) {
    %c0_i32 = arith.constant 0 : i32
    %c0_i32_0 = arith.constant 0 : i32
    %c0_i32_1 = arith.constant 0 : i32
    return %c0_i32, %c0_i32_0 : i32, i32
  }
  func.func @transform_4(%arg0: i32) -> (i32, i32) {
    %c0_i32 = arith.constant 0 : i32
    %c0_i32_0 = arith.constant 0 : i32
    %c0_i32_1 = arith.constant 0 : i32
    return %c0_i32, %c0_i32_0 : i32, i32
  }
  func.func @transform_5(%arg0: i32) -> (i32, i32) {
    %c0_i32 = arith.constant 0 : i32
    %c0_i32_0 = arith.constant 0 : i32
    %c0_i32_1 = arith.constant 0 : i32
    return %c0_i32, %c0_i32_0 : i32, i32
  }
  func.func @transform_6(%arg0: i32) -> (i32, i32) {
    %c0_i32 = arith.constant 0 : i32
    %c0_i32_0 = arith.constant 0 : i32
    %c0_i32_1 = arith.constant 0 : i32
    return %c0_i32, %c0_i32_0 : i32, i32
  }
  func.func @transform_7(%arg0: i32) -> (i32, i32) {
    %c0_i32 = arith.constant 0 : i32
    %c0_i32_0 = arith.constant 0 : i32
    %c0_i32_1 = arith.constant 0 : i32
    return %c0_i32, %c0_i32_0 : i32, i32
  }
  func.func @transform_8(%arg0: i32) -> (i32, i32) {
    %c0_i32 = arith.constant 0 : i32
    %c0_i32_0 = arith.constant 0 : i32
    %c0_i32_1 = arith.constant 0 : i32
    return %c0_i32, %c0_i32_0 : i32, i32
  }
  func.func @transform_9(%arg0: i32) -> (i32, i32) {
    %c0_i32 = arith.constant 0 : i32
    %c0_i32_0 = arith.constant 0 : i32
    %c0_i32_1 = arith.constant 0 : i32
    return %c0_i32, %c0_i32_0 : i32, i32
  }
  func.func @transform_10(%arg0: i32) -> (i32, i32) {
    %c0_i32 = arith.constant 0 : i32
    %c0_i32_0 = arith.constant 0 : i32
    %c0_i32_1 = arith.constant 0 : i32
    return %c0_i32, %c0_i32_0 : i32, i32
  }
  func.func @transform_11(%arg0: i32) -> (i32, i32) {
    %c0_i32 = arith.constant 0 : i32
    %c0_i32_0 = arith.constant 0 : i32
    %c0_i32_1 = arith.constant 0 : i32
    return %c0_i32, %c0_i32_0 : i32, i32
  }
  func.func @transform_12(%arg0: i32) -> (i32, i32) {
    %c0_i32 = arith.constant 0 : i32
    %c0_i32_0 = arith.constant 0 : i32
    %c0_i32_1 = arith.constant 0 : i32
    return %c0_i32, %c0_i32_0 : i32, i32
  }
  func.func @transform_13(%arg0: i32) -> (i32, i32) {
    %c0_i32 = arith.constant 0 : i32
    %c0_i32_0 = arith.constant 0 : i32
    %c0_i32_1 = arith.constant 0 : i32
    return %c0_i32, %c0_i32_0 : i32, i32
  }
  func.func @transform_14(%arg0: i32) -> (i32, i32, i32) {
    %c0_i32 = arith.constant 0 : i32
    %c0_i32_0 = arith.constant 0 : i32
    %c0_i32_1 = arith.constant 0 : i32
    return %arg0, %c0_i32, %c0_i32_0 : i32, i32, i32
  }
}

</mosaic_0001>

<llo_original>
// kernel: tpu_custom_call.1
$region0: #{tpu_custom_call.1}
  #allocation0 [shape = 'u32[]', space=smem, size = 0x4, offset = 0x4, fixed_abs, tag = 'smem constant byte address 0x4 - core index']
  #allocation1 [shape = 'u32[144,128]{1,0:T(1,128)}', space=vmem, size = 0x12000, scoped, tag = 'internal scratch']
  %s0 = inlined_call_operand.vmem [shape: f32[2,8,32], index: 0, kind: input, shape index: {}]
  %s1 = inlined_call_operand.vmem [shape: f32[2,1,8], index: 1, kind: input, shape index: {}]
  %s2 = inlined_call_operand.vmem [shape: f32[1,32], index: 2, kind: input, shape index: {}]
  %s3 = inlined_call_operand.vmem [shape: f32[1,32], index: 3, kind: input, shape index: {}]
  %s4 = inlined_call_operand.vmem [shape: bf16[32,96], index: 4, kind: input, shape index: {}]
  %s5 = inlined_call_operand.vmem [shape: f32[1,96], index: 5, kind: input, shape index: {}]
  %s6 = inlined_call_operand.vmem [shape: bf16[32,32], index: 6, kind: input, shape index: {}]
  %s7 = inlined_call_operand.vmem [shape: f32[1,32], index: 7, kind: input, shape index: {}]
  %s8 = inlined_call_operand.vmem [shape: f32[1,32], index: 8, kind: input, shape index: {}]
  %s9 = inlined_call_operand.vmem [shape: f32[1,32], index: 9, kind: input, shape index: {}]
  %s10 = inlined_call_operand.vmem [shape: bf16[32,128], index: 10, kind: input, shape index: {}]
  %s11 = inlined_call_operand.vmem [shape: f32[1,128], index: 11, kind: input, shape index: {}]
  %s12 = inlined_call_operand.vmem [shape: bf16[128,32], index: 12, kind: input, shape index: {}]
  %s13 = inlined_call_operand.vmem [shape: f32[1,32], index: 13, kind: input, shape index: {}]
  %s14 = inlined_call_operand.hbm [shape: f32[2,8,32], index: 14, kind: output, shape index: {}]
  %s15 = sld [smem:[#allocation0]]
  $region89: #{tpu_custom_call.1} parent=0
    _
  %s17 = ssub.s32 1, %s15
  %s18 = scalar_select 0, %s17, %s15
  $region1: #{tpu_custom_call.1} parent=0
    #allocation2 [shape = 'u8[8192]{0}', space=vmem, size = 0x2000, scoped, tag = 'output window, operand 0']
    #allocation3 [shape = 's32[2]{0}', space=sflag, size = 0x8, scoped, tag = 'scoped memory for tpu_custom_call.1']
    %19 = vsyncpa [#allocation3], 0
    %s20 = scalar_lea.sflag [#allocation3], 1
    %21 = vsyncpa %s20, 0
    loop: start=0, step=1, limit=4
    $region2: #{tpu_custom_call.1} parent=1 // loop_pre_header
      _
    $region3: #{tpu_custom_call.1} parent=1 // loop_header
      %s23 = sphi 0, %s27
      %p24 = scmp.ge.s32.totalorder %s23, 4
      %s33 = sphi 0, %s35
      %s36 = sphi 0, %s33
      %s37 = sphi 0, %s36
      %s53 = sphi 0, %s37
      %s59 = sphi 0, %s61
      %s62 = sphi 0, %s59
      %s63 = sphi 0, %s62
      %s79 = sphi 0, %s63
      %s83 = sphi 0, %s83
      %s85 = sphi 0, %s83
      %s86 = sphi 0, %s85
      %s100 = sphi 0, %s86
      %s104 = sphi 0, %s104
      %s106 = sphi 0, %s104
      %s107 = sphi 0, %s106
      %s121 = sphi 0, %s107
      %s125 = sphi 0, %s125
      %s127 = sphi 0, %s125
      %s128 = sphi 0, %s127
      %s142 = sphi 0, %s128
      %s146 = sphi 0, %s146
      %s148 = sphi 0, %s146
      %s149 = sphi 0, %s148
      %s163 = sphi 0, %s149
      %s167 = sphi 0, %s167
      %s169 = sphi 0, %s167
      %s170 = sphi 0, %s169
      %s184 = sphi 0, %s170
      %s188 = sphi 0, %s188
      %s190 = sphi 0, %s188
      %s191 = sphi 0, %s190
      %s205 = sphi 0, %s191
      %s209 = sphi 0, %s209
      %s211 = sphi 0, %s209
      %s212 = sphi 0, %s211
      %s226 = sphi 0, %s212
      %s230 = sphi 0, %s230
      %s232 = sphi 0, %s230
      %s233 = sphi 0, %s232
      %s247 = sphi 0, %s233
      %s251 = sphi 0, %s251
      %s253 = sphi 0, %s251
      %s254 = sphi 0, %s253
      %s268 = sphi 0, %s254
      %s272 = sphi 0, %s272
      %s274 = sphi 0, %s272
      %s275 = sphi 0, %s274
      %s289 = sphi 0, %s275
      %s293 = sphi 0, %s293
      %s295 = sphi 0, %s293
      %s296 = sphi 0, %s295
      %s310 = sphi 0, %s296
      %s314 = sphi 0, %s314
      %s316 = sphi 0, %s314
      %s317 = sphi 0, %s316
      %s331 = sphi 0, %s317
      %s337 = sphi 0, %s339
      %s340 = sphi 0, %s337
      %s341 = sphi 0, %s340
      %s357 = sphi 0, %s341
    $region4: #{tpu_custom_call.1} parent=1 // loop_header_branch
      %26 = sbr.rel (%p24) target = $region8
    $region5: #{tpu_custom_call.1} parent=1 // loop_body
      %s28 = ssub.s32 %s23, 1
      %s29 = ssub.s32 %s23, 2
      %s30 = sadd.s32 %s23, 1
      %s31 = ssub.s32 %s23, %s30
      %p32 = scmp.eq.s32.totalorder %s31, 0
      %s34 = sadd.s32 %s33, 1
      %s35 = scalar_select %p32, %s33, %s34
      %p38 = pneg %p32
      %p39 = scmp.eq.s32.totalorder %s23, 1
      %p40 = por %p38, %p39
      %p41 = scmp.ne.s32.totalorder %s33, %s36
      %p42 = scmp.eq.s32.totalorder %s23, 0
      %p43 = por %p41, %p42
      %p44 = scmp.ne.s32.totalorder %s33, %s36
      %p45 = scmp.eq.s32.totalorder %s28, 1
      %p46 = por %p44, %p45
      %p47 = scmp.ne.s32.totalorder %s36, %s37
      %p48 = scmp.eq.s32.totalorder %s28, 0
      %p49 = por %p47, %p48
      %p50 = scmp.ne.s32.totalorder %s36, %s37
      %p51 = scmp.eq.s32.totalorder %s29, 1
      %p52 = por %p50, %p51
      %p54 = scmp.ne.s32.totalorder %s37, %s53
      %p55 = scmp.eq.s32.totalorder %s29, 0
      %p56 = por %p54, %p55
      %s57 = ssub.s32 %s23, %s30
      %p58 = scmp.eq.s32.totalorder %s57, 0
      %s60 = sadd.s32 %s59, 1
      %s61 = scalar_select %p58, %s59, %s60
      %p64 = pneg %p58
      %p65 = scmp.eq.s32.totalorder %s23, 1
      %p66 = por %p64, %p65
      %p67 = scmp.ne.s32.totalorder %s59, %s62
      %p68 = scmp.eq.s32.totalorder %s23, 0
      %p69 = por %p67, %p68
      %p70 = scmp.ne.s32.totalorder %s59, %s62
      %p71 = scmp.eq.s32.totalorder %s28, 1
      %p72 = por %p70, %p71
      %p73 = scmp.ne.s32.totalorder %s62, %s63
      %p74 = scmp.eq.s32.totalorder %s28, 0
      %p75 = por %p73, %p74
      %p76 = scmp.ne.s32.totalorder %s62, %s63
      %p77 = scmp.eq.s32.totalorder %s29, 1
      %p78 = por %p76, %p77
      %p80 = scmp.ne.s32.totalorder %s63, %s79
      %p81 = scmp.eq.s32.totalorder %s29, 0
      %p82 = por %p80, %p81
      %s84 = sadd.s32 %s83, 1
      %p87 = scmp.eq.s32.totalorder %s23, 1
      %p88 = scmp.ne.s32.totalorder %s83, %s85
      %p89 = scmp.eq.s32.totalorder %s23, 0
      %p90 = por %p88, %p89
      %p91 = scmp.ne.s32.totalorder %s83, %s85
      %p92 = scmp.eq.s32.totalorder %s28, 1
      %p93 = por %p91, %p92
      %p94 = scmp.ne.s32.totalorder %s85, %s86
      %p95 = scmp.eq.s32.totalorder %s28, 0
      %p96 = por %p94, %p95
      %p97 = scmp.ne.s32.totalorder %s85, %s86
      %p98 = scmp.eq.s32.totalorder %s29, 1
      %p99 = por %p97, %p98
      %p101 = scmp.ne.s32.totalorder %s86, %s100
      %p102 = scmp.eq.s32.totalorder %s29, 0
      %p103 = por %p101, %p102
      %s105 = sadd.s32 %s104, 1
      %p108 = scmp.eq.s32.totalorder %s23, 1
      %p109 = scmp.ne.s32.totalorder %s104, %s106
      %p110 = scmp.eq.s32.totalorder %s23, 0
      %p111 = por %p109, %p110
      %p112 = scmp.ne.s32.totalorder %s104, %s106
      %p113 = scmp.eq.s32.totalorder %s28, 1
      %p114 = por %p112, %p113
      %p115 = scmp.ne.s32.totalorder %s106, %s107
      %p116 = scmp.eq.s32.totalorder %s28, 0
      %p117 = por %p115, %p116
      %p118 = scmp.ne.s32.totalorder %s106, %s107
      %p119 = scmp.eq.s32.totalorder %s29, 1
      %p120 = por %p118, %p119
      %p122 = scmp.ne.s32.totalorder %s107, %s121
      %p123 = scmp.eq.s32.totalorder %s29, 0
      %p124 = por %p122, %p123
      %s126 = sadd.s32 %s125, 1
      %p129 = scmp.eq.s32.totalorder %s23, 1
      %p130 = scmp.ne.s32.totalorder %s125, %s127
      %p131 = scmp.eq.s32.totalorder %s23, 0
      %p132 = por %p130, %p131
      %p133 = scmp.ne.s32.totalorder %s125, %s127
      %p134 = scmp.eq.s32.totalorder %s28, 1
      %p135 = por %p133, %p134
      %p136 = scmp.ne.s32.totalorder %s127, %s128
      %p137 = scmp.eq.s32.totalorder %s28, 0
      %p138 = por %p136, %p137
      %p139 = scmp.ne.s32.totalorder %s127, %s128
      %p140 = scmp.eq.s32.totalorder %s29, 1
      %p141 = por %p139, %p140
      %p143 = scmp.ne.s32.totalorder %s128, %s142
      %p144 = scmp.eq.s32.totalorder %s29, 0
      %p145 = por %p143, %p144
      %s147 = sadd.s32 %s146, 1
      %p150 = scmp.eq.s32.totalorder %s23, 1
      %p151 = scmp.ne.s32.totalorder %s146, %s148
      %p152 = scmp.eq.s32.totalorder %s23, 0
      %p153 = por %p151, %p152
      %p154 = scmp.ne.s32.totalorder %s146, %s148
      %p155 = scmp.eq.s32.totalorder %s28, 1
      %p156 = por %p154, %p155
      %p157 = scmp.ne.s32.totalorder %s148, %s149
      %p158 = scmp.eq.s32.totalorder %s28, 0
      %p159 = por %p157, %p158
      %p160 = scmp.ne.s32.totalorder %s148, %s149
      %p161 = scmp.eq.s32.totalorder %s29, 1
      %p162 = por %p160, %p161
      %p164 = scmp.ne.s32.totalorder %s149, %s163
      %p165 = scmp.eq.s32.totalorder %s29, 0
      %p166 = por %p164, %p165
      %s168 = sadd.s32 %s167, 1
      %p171 = scmp.eq.s32.totalorder %s23, 1
      %p172 = scmp.ne.s32.totalorder %s167, %s169
      %p173 = scmp.eq.s32.totalorder %s23, 0
      %p174 = por %p172, %p173
      %p175 = scmp.ne.s32.totalorder %s167, %s169
      %p176 = scmp.eq.s32.totalorder %s28, 1
      %p177 = por %p175, %p176
      %p178 = scmp.ne.s32.totalorder %s169, %s170
      %p179 = scmp.eq.s32.totalorder %s28, 0
      %p180 = por %p178, %p179
      %p181 = scmp.ne.s32.totalorder %s169, %s170
      %p182 = scmp.eq.s32.totalorder %s29, 1
      %p183 = por %p181, %p182
      %p185 = scmp.ne.s32.totalorder %s170, %s184
      %p186 = scmp.eq.s32.totalorder %s29, 0
      %p187 = por %p185, %p186
      %s189 = sadd.s32 %s188, 1
      %p192 = scmp.eq.s32.totalorder %s23, 1
      %p193 = scmp.ne.s32.totalorder %s188, %s190
      %p194 = scmp.eq.s32.totalorder %s23, 0
      %p195 = por %p193, %p194
      %p196 = scmp.ne.s32.totalorder %s188, %s190
      %p197 = scmp.eq.s32.totalorder %s28, 1
      %p198 = por %p196, %p197
      %p199 = scmp.ne.s32.totalorder %s190, %s191
      %p200 = scmp.eq.s32.totalorder %s28, 0
      %p201 = por %p199, %p200
      %p202 = scmp.ne.s32.totalorder %s190, %s191
      %p203 = scmp.eq.s32.totalorder %s29, 1
      %p204 = por %p202, %p203
      %p206 = scmp.ne.s32.totalorder %s191, %s205
      %p207 = scmp.eq.s32.totalorder %s29, 0
      %p208 = por %p206, %p207
      %s210 = sadd.s32 %s209, 1
      %p213 = scmp.eq.s32.totalorder %s23, 1
      %p214 = scmp.ne.s32.totalorder %s209, %s211
      %p215 = scmp.eq.s32.totalorder %s23, 0
      %p216 = por %p214, %p215
      %p217 = scmp.ne.s32.totalorder %s209, %s211
      %p218 = scmp.eq.s32.totalorder %s28, 1
      %p219 = por %p217, %p218
      %p220 = scmp.ne.s32.totalorder %s211, %s212
      %p221 = scmp.eq.s32.totalorder %s28, 0
      %p222 = por %p220, %p221
      %p223 = scmp.ne.s32.totalorder %s211, %s212
      %p224 = scmp.eq.s32.totalorder %s29, 1
      %p225 = por %p223, %p224
      %p227 = scmp.ne.s32.totalorder %s212, %s226
      %p228 = scmp.eq.s32.totalorder %s29, 0
      %p229 = por %p227, %p228
      %s231 = sadd.s32 %s230, 1
      %p234 = scmp.eq.s32.totalorder %s23, 1
      %p235 = scmp.ne.s32.totalorder %s230, %s232
      %p236 = scmp.eq.s32.totalorder %s23, 0
      %p237 = por %p235, %p236
      %p238 = scmp.ne.s32.totalorder %s230, %s232
      %p239 = scmp.eq.s32.totalorder %s28, 1
      %p240 = por %p238, %p239
      %p241 = scmp.ne.s32.totalorder %s232, %s233
      %p242 = scmp.eq.s32.totalorder %s28, 0
      %p243 = por %p241, %p242
      %p244 = scmp.ne.s32.totalorder %s232, %s233
      %p245 = scmp.eq.s32.totalorder %s29, 1
      %p246 = por %p244, %p245
      %p248 = scmp.ne.s32.totalorder %s233, %s247
      %p249 = scmp.eq.s32.totalorder %s29, 0
      %p250 = por %p248, %p249
      %s252 = sadd.s32 %s251, 1
      %p255 = scmp.eq.s32.totalorder %s23, 1
      %p256 = scmp.ne.s32.totalorder %s251, %s253
      %p257 = scmp.eq.s32.totalorder %s23, 0
      %p258 = por %p256, %p257
      %p259 = scmp.ne.s32.totalorder %s251, %s253
      %p260 = scmp.eq.s32.totalorder %s28, 1
      %p261 = por %p259, %p260
      %p262 = scmp.ne.s32.totalorder %s253, %s254
      %p263 = scmp.eq.s32.totalorder %s28, 0
      %p264 = por %p262, %p263
      %p265 = scmp.ne.s32.totalorder %s253, %s254
      %p266 = scmp.eq.s32.totalorder %s29, 1
      %p267 = por %p265, %p266
      %p269 = scmp.ne.s32.totalorder %s254, %s268
      %p270 = scmp.eq.s32.totalorder %s29, 0
      %p271 = por %p269, %p270
      %s273 = sadd.s32 %s272, 1
      %p276 = scmp.eq.s32.totalorder %s23, 1
      %p277 = scmp.ne.s32.totalorder %s272, %s274
      %p278 = scmp.eq.s32.totalorder %s23, 0
      %p279 = por %p277, %p278
      %p280 = scmp.ne.s32.totalorder %s272, %s274
      %p281 = scmp.eq.s32.totalorder %s28, 1
      %p282 = por %p280, %p281
      %p283 = scmp.ne.s32.totalorder %s274, %s275
      %p284 = scmp.eq.s32.totalorder %s28, 0
      %p285 = por %p283, %p284
      %p286 = scmp.ne.s32.totalorder %s274, %s275
      %p287 = scmp.eq.s32.totalorder %s29, 1
      %p288 = por %p286, %p287
      %p290 = scmp.ne.s32.totalorder %s275, %s289
      %p291 = scmp.eq.s32.totalorder %s29, 0
      %p292 = por %p290, %p291
      %s294 = sadd.s32 %s293, 1
      %p297 = scmp.eq.s32.totalorder %s23, 1
      %p298 = scmp.ne.s32.totalorder %s293, %s295
      %p299 = scmp.eq.s32.totalorder %s23, 0
      %p300 = por %p298, %p299
      %p301 = scmp.ne.s32.totalorder %s293, %s295
      %p302 = scmp.eq.s32.totalorder %s28, 1
      %p303 = por %p301, %p302
      %p304 = scmp.ne.s32.totalorder %s295, %s296
      %p305 = scmp.eq.s32.totalorder %s28, 0
      %p306 = por %p304, %p305
      %p307 = scmp.ne.s32.totalorder %s295, %s296
      %p308 = scmp.eq.s32.totalorder %s29, 1
      %p309 = por %p307, %p308
      %p311 = scmp.ne.s32.totalorder %s296, %s310
      %p312 = scmp.eq.s32.totalorder %s29, 0
      %p313 = por %p311, %p312
      %s315 = sadd.s32 %s314, 1
      %p318 = scmp.eq.s32.totalorder %s23, 1
      %p319 = scmp.ne.s32.totalorder %s314, %s316
      %p320 = scmp.eq.s32.totalorder %s23, 0
      %p321 = por %p319, %p320
      %p322 = scmp.ne.s32.totalorder %s314, %s316
      %p323 = scmp.eq.s32.totalorder %s28, 1
      %p324 = por %p322, %p323
      %p325 = scmp.ne.s32.totalorder %s316, %s317
      %p326 = scmp.eq.s32.totalorder %s28, 0
      %p327 = por %p325, %p326
      %p328 = scmp.ne.s32.totalorder %s316, %s317
      %p329 = scmp.eq.s32.totalorder %s29, 1
      %p330 = por %p328, %p329
      %p332 = scmp.ne.s32.totalorder %s317, %s331
      %p333 = scmp.eq.s32.totalorder %s29, 0
      %p334 = por %p332, %p333
      %s335 = ssub.s32 %s23, %s30
      %p336 = scmp.eq.s32.totalorder %s335, 0
      %s338 = sadd.s32 %s337, 1
      %s339 = scalar_select %p336, %s337, %s338
      %p342 = pneg %p336
      %p343 = scmp.eq.s32.totalorder %s23, 1
      %p344 = por %p342, %p343
      %p345 = scmp.ne.s32.totalorder %s337, %s340
      %p346 = scmp.eq.s32.totalorder %s23, 0
      %p347 = por %p345, %p346
      %p348 = scmp.ne.s32.totalorder %s337, %s340
      %p349 = scmp.eq.s32.totalorder %s28, 1
      %p350 = por %p348, %p349
      %p351 = scmp.ne.s32.totalorder %s340, %s341
      %p352 = scmp.eq.s32.totalorder %s28, 0
      %p353 = por %p351, %p352
      %p354 = scmp.ne.s32.totalorder %s340, %s341
      %p355 = scmp.eq.s32.totalorder %s29, 1
      %p356 = por %p354, %p355
      %p358 = scmp.ne.s32.totalorder %s341, %s357
      %p359 = scmp.eq.s32.totalorder %s29, 0
      %p360 = por %p358, %p359
      %p361 = scmp.le.s32.totalorder 1, %s23
      %p362 = scmp.lt.s32.totalorder %s23, 3
      %p363 = pnand %p361, %p362
      %p364 = pneg %p363
      // Predicated region
      $region9: #{tpu_custom_call.1} parent=5 // pred_check
        _
      $region10: #{tpu_custom_call.1} parent=5 // pred_check_branch
        %366 = sbr.rel (%p363) target = $region12
      $region11: #{tpu_custom_call.1} parent=5 // pred_region
        %s367 = ssub.s32 %s23, 1
        // Predicated region
        $region13: #{tpu_custom_call.1} parent=11 // pred_check
          %p368 = pneg %p96
        $region14: #{tpu_custom_call.1} parent=11 // pred_check_branch
          %370 = sbr.rel (%p368) target = $region16
        $region15: #{tpu_custom_call.1} parent=11 // pred_region
          _
        $region16: #{tpu_custom_call.1} parent=11 // pred_fallthru
          _
        // Predicated region
        $region17: #{tpu_custom_call.1} parent=11 // pred_check
          %p371 = pneg %p117
        $region18: #{tpu_custom_call.1} parent=11 // pred_check_branch
          %373 = sbr.rel (%p371) target = $region20
        $region19: #{tpu_custom_call.1} parent=11 // pred_region
          _
        $region20: #{tpu_custom_call.1} parent=11 // pred_fallthru
          _
        // Predicated region
        $region21: #{tpu_custom_call.1} parent=11 // pred_check
          %p374 = pneg %p138
        $region22: #{tpu_custom_call.1} parent=11 // pred_check_branch
          %376 = sbr.rel (%p374) target = $region24
        $region23: #{tpu_custom_call.1} parent=11 // pred_region
          _
        $region24: #{tpu_custom_call.1} parent=11 // pred_fallthru
          _
        // Predicated region
        $region25: #{tpu_custom_call.1} parent=11 // pred_check
          %p377 = pneg %p159
        $region26: #{tpu_custom_call.1} parent=11 // pred_check_branch
          %379 = sbr.rel (%p377) target = $region28
        $region27: #{tpu_custom_call.1} parent=11 // pred_region
          _
        $region28: #{tpu_custom_call.1} parent=11 // pred_fallthru
          _
        // Predicated region
        $region29: #{tpu_custom_call.1} parent=11 // pred_check
          %p380 = pneg %p180
        $region30: #{tpu_custom_call.1} parent=11 // pred_check_branch
          %382 = sbr.rel (%p380) target = $region32
        $region31: #{tpu_custom_call.1} parent=11 // pred_region
          _
        $region32: #{tpu_custom_call.1} parent=11 // pred_fallthru
          _
        // Predicated region
        $region33: #{tpu_custom_call.1} parent=11 // pred_check
          %p383 = pneg %p201
        $region34: #{tpu_custom_call.1} parent=11 // pred_check_branch
          %385 = sbr.rel (%p383) target = $region36
        $region35: #{tpu_custom_call.1} parent=11 // pred_region
          _
        $region36: #{tpu_custom_call.1} parent=11 // pred_fallthru
          _
        // Predicated region
        $region37: #{tpu_custom_call.1} parent=11 // pred_check
          %p386 = pneg %p222
        $region38: #{tpu_custom_call.1} parent=11 // pred_check_branch
          %388 = sbr.rel (%p386) target = $region40
        $region39: #{tpu_custom_call.1} parent=11 // pred_region
          _
        $region40: #{tpu_custom_call.1} parent=11 // pred_fallthru
          _
        // Predicated region
        $region41: #{tpu_custom_call.1} parent=11 // pred_check
          %p389 = pneg %p243
        $region42: #{tpu_custom_call.1} parent=11 // pred_check_branch
          %391 = sbr.rel (%p389) target = $region44
        $region43: #{tpu_custom_call.1} parent=11 // pred_region
          _
        $region44: #{tpu_custom_call.1} parent=11 // pred_fallthru
          _
        // Predicated region
        $region45: #{tpu_custom_call.1} parent=11 // pred_check
          %p392 = pneg %p264
        $region46: #{tpu_custom_call.1} parent=11 // pred_check_branch
          %394 = sbr.rel (%p392) target = $region48
        $region47: #{tpu_custom_call.1} parent=11 // pred_region
          _
        $region48: #{tpu_custom_call.1} parent=11 // pred_fallthru
          _
        // Predicated region
        $region49: #{tpu_custom_call.1} parent=11 // pred_check
          %p395 = pneg %p285
        $region50: #{tpu_custom_call.1} parent=11 // pred_check_branch
          %397 = sbr.rel (%p395) target = $region52
        $region51: #{tpu_custom_call.1} parent=11 // pred_region
          _
        $region52: #{tpu_custom_call.1} parent=11 // pred_fallthru
          _
        // Predicated region
        $region53: #{tpu_custom_call.1} parent=11 // pred_check
          %p398 = pneg %p306
        $region54: #{tpu_custom_call.1} parent=11 // pred_check_branch
          %400 = sbr.rel (%p398) target = $region56
        $region55: #{tpu_custom_call.1} parent=11 // pred_region
          _
        $region56: #{tpu_custom_call.1} parent=11 // pred_fallthru
          _
        // Predicated region
        $region57: #{tpu_custom_call.1} parent=11 // pred_check
          %p401 = pneg %p327
        $region58: #{tpu_custom_call.1} parent=11 // pred_check_branch
          %403 = sbr.rel (%p401) target = $region60
        $region59: #{tpu_custom_call.1} parent=11 // pred_region
          _
        $region60: #{tpu_custom_call.1} parent=11 // pred_fallthru
          _
      $region12: #{tpu_custom_call.1} parent=5 // pred_fallthru
        _
      %p404 = scmp.lt.s32.totalorder %s23, 2
      // Predicated region
      $region61: #{tpu_custom_call.1} parent=5 // pred_check
        %p405 = pneg %p404
      $region62: #{tpu_custom_call.1} parent=5 // pred_check_branch
        %407 = sbr.rel (%p405) target = $region64
      $region63: #{tpu_custom_call.1} parent=5 // pred_region
        // Predicated region
        $region65: #{tpu_custom_call.1} parent=63 // pred_check
          %p408 = pneg %p43
        $region66: #{tpu_custom_call.1} parent=63 // pred_check_branch
          %410 = sbr.rel (%p408) target = $region68
        $region67: #{tpu_custom_call.1} parent=63 // pred_region
          %p411 = scmp.lt.s32.totalorder %s23, 1
          %s412 = scalar_select %p411, %s23, 1
          %s413 = smul.addr %s412, 8
          %s414 = scalar_lea.vmem %s0, %s413
        $region68: #{tpu_custom_call.1} parent=63 // pred_fallthru
          _
        // Predicated region
        $region69: #{tpu_custom_call.1} parent=63 // pred_check
          %p415 = pneg %p69
        $region70: #{tpu_custom_call.1} parent=63 // pred_check_branch
          %417 = sbr.rel (%p415) target = $region72
        $region71: #{tpu_custom_call.1} parent=63 // pred_region
          %p418 = scmp.lt.s32.totalorder %s23, 1
          %s419 = scalar_select %p418, %s23, 1
          %s420 = scalar_lea.vmem %s1, %s419
        $region72: #{tpu_custom_call.1} parent=63 // pred_fallthru
          _
      $region64: #{tpu_custom_call.1} parent=5 // pred_fallthru
        _
      %p421 = scmp.le.s32.totalorder 1, %s23
      %p422 = scmp.lt.s32.totalorder %s23, 3
      %p423 = pnand %p421, %p422
      %p424 = pneg %p423
      // Predicated region
      $region73: #{tpu_custom_call.1} parent=5 // pred_check
        _
      $region74: #{tpu_custom_call.1} parent=5 // pred_check_branch
        %426 = sbr.rel (%p423) target = $region76
      $region75: #{tpu_custom_call.1} parent=5 // pred_region
        %s427 = ssub.s32 %s23, 1
        %p428 = scmp.lt.s32.totalorder %s28, 1
        %s429 = scalar_select %p428, %s28, 1
        %s430 = smul.addr %s429, 8
        %s431 = scalar_lea.vmem %s0, %s430
        %p432 = pneg %p49
        %p433 = pneg %p46
        %p434 = scmp.lt.s32.totalorder %s28, 1
        %s435 = scalar_select %p434, %s28, 1
        %s436 = scalar_lea.vmem %s1, %s435
        %p437 = pneg %p75
        %p438 = pneg %p72
        %p439 = pneg %p96
        %p440 = pneg %p93
        %p441 = pneg %p117
        %p442 = pneg %p114
        %p443 = pneg %p138
        %p444 = pneg %p135
        %p445 = pneg %p159
        %p446 = pneg %p156
        %p447 = pneg %p180
        %p448 = pneg %p177
        %p449 = pneg %p201
        %p450 = pneg %p198
        %p451 = pneg %p222
        %p452 = pneg %p219
        %p453 = pneg %p243
        %p454 = pneg %p240
        %p455 = pneg %p264
        %p456 = pneg %p261
        %p457 = pneg %p285
        %p458 = pneg %p282
        %p459 = pneg %p306
        %p460 = pneg %p303
        %p461 = pneg %p327
        %p462 = pneg %p324
        %p463 = pneg %p353
        %p464 = pneg %p350
        %s465 = sand.u32 %s340, 1
        %s466 = scalar_lea.sflag [#allocation3], %s465
        %s467 = sand.u32 %s340, 1
        %s468 = smul.addr %s467, 8
        %s469 = scalar_lea.vmem [#allocation2], %s468
        %p470 = scmp.lt.s32.totalorder %s28, 1
        %s471 = scalar_select %p470, %s28, 1
        %s472 = smul.addr %s471, 8
        %s473 = scalar_lea.vmem %s0, %s472
        %p474 = scmp.lt.s32.totalorder %s28, 1
        %s475 = scalar_select %p474, %s28, 1
        %s476 = scalar_lea.vmem %s1, %s475
        %v478 = vld [vmem:[%s473] sm:$0xff]
        %v479 = vld [vmem:[%s476] sm:$0x1]
        %v480 = vld [vmem:[%s2] sm:$0x1]
        %v481 = vld [vmem:[%s3] sm:$0x1]
        %vm482 = vcmask 261120
        %v483 = vsel %vm482, %v478, 0.0
        %484 = vadd.xlane.f32.xlu0 %v483
        %v485 = vpop.xlane.xlu0 %484
        %v486 = vrcp.pop 32.0
        %v487 = vmul.f32 %v485, %v486
        %v488 = vsub.f32 %v478, %v487
        %v489 = vmul.f32 %v488, %v488
        %v490 = vsel %vm482, %v489, 0.0
        %491 = vadd.xlane.f32.xlu0 %v490
        %v492 = vpop.xlane.xlu0 %491
        %v493 = vmul.f32 %v492, 0.032258064
        %v494 = vrsqrt.pop %v493
        %v495 = vmul.f32 %v493, %v494
        %vm496 = vcmp.eq.f32.partialorder %v493, inf
        %v497 = vsel %vm496, %v493, %v495
        %vm498 = vcmp.eq.f32.partialorder %v493, 0.0
        %v499 = vand.u32 %v493, 2147483648
        %v500 = vsel %vm498, %v499, %v497
        %v501 = vadd.f32 %v500, 1e-06
        %v502 = vrcp.pop %v501
        %v504 = vlaneseq
        %v505 = vshrl.u32 %v504, 7
        %v506 = vsub.s32 0, %v505
        %v507 = vrot.slane %v480, %v506
        %v509 = vmul.f32 %v507, %v488
        %v510 = vmul.f32 %v509, %v502
        %v512 = vlaneseq
        %v513 = vshrl.u32 %v512, 7
        %v514 = vsub.s32 0, %v513
        %v515 = vrot.slane %v481, %v514
        %v517 = vadd.f32 %v510, %v515
        %v518 = vpack.c.bf16 %v517, %v517
        %v519 = vld [vmem:[%s4] sm:$0xf]
        %v520 = vld [vmem:[%s4 + $0x4] sm:$0xf]
        %v521 = vld [vmem:[%s4 + $0x8] sm:$0xf]
        %v522 = vld [vmem:[%s4 + $0xc] sm:$0xf]
        %v523 = vld [vmem:[%s5] sm:$0x1]
        %v525 = vlaneseq
        %v526 = vshrl.u32 %v525, 7
        %v527 = vsub.s32 0, %v526
        %v528 = vrot.slane %v523, %v527
        %v534 = vunpack.c.l.b16 %v519
        %v535 = vunpack.c.l.b16 %v520
        %v536 = vunpack.c.l.b16 %v521
        %v537 = vunpack.c.l.b16 %v522
        %v538 = vpack.c.b16 %v535, %v534
        %v539 = vpack.c.b16 %v537, %v536
        %v543 = vsel %vm482, %v518, 0
        %545 = vmatprep.subr.bf16.mxu0 0
        %546 = vmatpush1.bf16.msra.mxu0 %v538
        %547 = vmatprep.subr.bf16.mxu0 0
        %548 = vmatpush1.bf16.msra.mxu0 %v539
        %549 = vmatprep.subr.bf16.mxu0 0
        %550 = vmatpush1.bf16.msra.mxu0 0
        %551 = vmatprep.subr.bf16.mxu0 0
        %552 = vmatpush1.bf16.msra.mxu0 0
        %553 = vmatprep.subr.bf16.mxu0 0
        %554 = vmatpush1.bf16.msra.mxu0 0
        %555 = vmatprep.subr.bf16.mxu0 0
        %556 = vmatpush1.bf16.msra.mxu0 0
        %557 = vmatprep.subr.bf16.mxu0 0
        %558 = vmatpush1.bf16.msra.mxu0 0
        %559 = vmatprep.subr.bf16.mxu0 0
        %560 = vmatpush1.bf16.msra.mxu0 0
        %561 = vmatprep.subr.bf16.mxu0 0
        %562 = vmatpush1.bf16.msra.mxu0 0
        %563 = vmatprep.subr.bf16.mxu0 0
        %564 = vmatpush1.bf16.msra.mxu0 0
        %565 = vmatprep.subr.bf16.mxu0 0
        %566 = vmatpush1.bf16.msra.mxu0 0
        %567 = vmatprep.subr.bf16.mxu0 0
        %568 = vmatpush1.bf16.msra.mxu0 0
        %569 = vmatprep.subr.bf16.mxu0 0
        %570 = vmatpush1.bf16.msra.mxu0 0
        %571 = vmatprep.subr.bf16.mxu0 0
        %572 = vmatpush1.bf16.msra.mxu0 0
        %573 = vmatprep.subr.bf16.mxu0 0
        %574 = vmatpush1.bf16.msra.mxu0 0
        %575 = vmatprep.subr.bf16.mxu0 0
        %576 = vmatpush1.bf16.msra.mxu0 0
        %577 = vmatprep.mubr.bf16.mxu0 0
        %578 = vmatmul.mubr.bf16.gmra.mrb[0].mxu0 %v543
        %v579 = vpop.f32.mrb[0].mxu0
        %v580 = vadd.f32 %v528, %v579
        %v581 = vpop.f32.mrb[0].mxu0
        %v582 = vpop.f32.mrb[0].mxu0
        %v583 = vpop.f32.mrb[0].mxu0
        %584 = vdwg.mxu0
        %vm585 = vcmp.eq.f32.partialorder %v479, 0.0
        %v586 = vsel %vm585, -1e+09, 0.0
        %v587 = vmul.f32 %v580, 0.35355338
        %v588 = vpack.c.bf16 %v587, %v587
        %v589 = vpack.c.bf16 %v580, %v580
        %v591 = vlaneseq
        %v592 = vshrl.u32 %v591, 7
        %v593 = vsub.s32 0, %v592
        %v594 = vrot.slane %v586, %v593
        %597 = vrot.lane.b32.xlu0 %v589, 96
        %v598 = vpop.permute.xlu0 %597
        %vm599 = vcmask 64512
        %v601 = vsel %vm599, %v588, 0
        %v604 = vsel %vm599, %v598, 0
        %606 = vmatprep.subr.bf16.mxu0 0
        %607 = vmatpush1.bf16.xpose.msra.mxu0 %v604
        %608 = vmatprep.subr.bf16.mxu0 0
        %609 = vmatpush1.bf16.xpose.msra.mxu0 0
        %610 = vmatprep.subr.bf16.mxu0 0
        %611 = vmatpush1.bf16.xpose.msra.mxu0 0
        %612 = vmatprep.subr.bf16.mxu0 0
        %613 = vmatpush1.bf16.xpose.msra.mxu0 0
        %614 = vmatprep.subr.bf16.mxu0 0
        %615 = vmatpush1.bf16.xpose.msra.mxu0 0
        %616 = vmatprep.subr.bf16.mxu0 0
        %617 = vmatpush1.bf16.xpose.msra.mxu0 0
        %618 = vmatprep.subr.bf16.mxu0 0
        %619 = vmatpush1.bf16.xpose.msra.mxu0 0
        %620 = vmatprep.subr.bf16.mxu0 0
        %621 = vmatpush1.bf16.xpose.msra.mxu0 0
        %622 = vmatprep.subr.bf16.mxu0 0
        %623 = vmatpush1.bf16.xpose.msra.mxu0 0
        %624 = vmatprep.subr.bf16.mxu0 0
        %625 = vmatpush1.bf16.xpose.msra.mxu0 0
        %626 = vmatprep.subr.bf16.mxu0 0
        %627 = vmatpush1.bf16.xpose.msra.mxu0 0
        %628 = vmatprep.subr.bf16.mxu0 0
        %629 = vmatpush1.bf16.xpose.msra.mxu0 0
        %630 = vmatprep.subr.bf16.mxu0 0
        %631 = vmatpush1.bf16.xpose.msra.mxu0 0
        %632 = vmatprep.subr.bf16.mxu0 0
        %633 = vmatpush1.bf16.xpose.msra.mxu0 0
        %634 = vmatprep.subr.bf16.mxu0 0
        %635 = vmatpush1.bf16.xpose.msra.mxu0 0
        %636 = vmatprep.subr.bf16.mxu0 0
        %637 = vmatpush1.bf16.xpose.msra.mxu0 0
        %638 = vmatprep.mubr.bf16.mxu0 0
        %639 = vmatmul.mubr.bf16.gmra.mrb[0].mxu0 %v601
        %v640 = vpop.f32.mrb[0].mxu0
        %v641 = vadd.f32 %v594, %v640
        %v642 = vpop.f32.mrb[0].mxu0
        %v643 = vpop.f32.mrb[0].mxu0
        %v644 = vpop.f32.mrb[0].mxu0
        %645 = vdwg.mxu0
        %v646 = vsel %vm599, %v641, -inf
        %647 = vmax.xlane.f32.xlu0 %v646
        %v648 = vpop.xlane.xlu0 %647
        %v649 = vsub.f32 %v641, %v648
        %v650 = vmul.f32 %v649, 1.442695
        %v651 = vpow.pop %v650
        %v652 = vsel %vm599, %v651, 0.0
        %653 = vadd.xlane.f32.xlu0 %v652
        %v654 = vpop.xlane.xlu0 %653
        %v655 = vrcp.pop %v654
        %v656 = vmul.f32 %v651, %v655
        %v657 = vpack.c.bf16 %v656, %v656
        %658 = vrot.lane.b32.xlu0 %v589, 64
        %v659 = vpop.permute.xlu0 %658
        %v661 = vsel %vm599, %v657, 0
        %vm663 = vcmask 1043456
        %v665 = vsel %vm663, %v659, 0
        %667 = vmatprep.subr.bf16.mxu0 0
        %668 = vmatpush1.bf16.msra.mxu0 %v665
        %669 = vmatprep.subr.bf16.mxu0 0
        %670 = vmatpush1.bf16.msra.mxu0 0
        %671 = vmatprep.subr.bf16.mxu0 0
        %672 = vmatpush1.bf16.msra.mxu0 0
        %673 = vmatprep.subr.bf16.mxu0 0
        %674 = vmatpush1.bf16.msra.mxu0 0
        %675 = vmatprep.subr.bf16.mxu0 0
        %676 = vmatpush1.bf16.msra.mxu0 0
        %677 = vmatprep.subr.bf16.mxu0 0
        %678 = vmatpush1.bf16.msra.mxu0 0
        %679 = vmatprep.subr.bf16.mxu0 0
        %680 = vmatpush1.bf16.msra.mxu0 0
        %681 = vmatprep.subr.bf16.mxu0 0
        %682 = vmatpush1.bf16.msra.mxu0 0
        %683 = vmatprep.subr.bf16.mxu0 0
        %684 = vmatpush1.bf16.msra.mxu0 0
        %685 = vmatprep.subr.bf16.mxu0 0
        %686 = vmatpush1.bf16.msra.mxu0 0
        %687 = vmatprep.subr.bf16.mxu0 0
        %688 = vmatpush1.bf16.msra.mxu0 0
        %689 = vmatprep.subr.bf16.mxu0 0
        %690 = vmatpush1.bf16.msra.mxu0 0
        %691 = vmatprep.subr.bf16.mxu0 0
        %692 = vmatpush1.bf16.msra.mxu0 0
        %693 = vmatprep.subr.bf16.mxu0 0
        %694 = vmatpush1.bf16.msra.mxu0 0
        %695 = vmatprep.subr.bf16.mxu0 0
        %696 = vmatpush1.bf16.msra.mxu0 0
        %697 = vmatprep.subr.bf16.mxu0 0
        %698 = vmatpush1.bf16.msra.mxu0 0
        %699 = vmatprep.mubr.bf16.mxu0 0
        %700 = vmatmul.mubr.bf16.gmra.mrb[0].mxu0 %v661
        %v701 = vpop.f32.mrb[0].mxu0
        %v702 = vadd.f32 0.0, %v701
        %v703 = vpop.f32.mrb[0].mxu0
        %v704 = vpop.f32.mrb[0].mxu0
        %v705 = vpop.f32.mrb[0].mxu0
        %706 = vdwg.mxu0
        %v707 = vpack.c.bf16 %v702, %v702
        %v708 = vld [vmem:[%s6] sm:$0xf]
        %710 = vrot.lane.b32.xlu0 %v588, 120
        %v711 = vpop.permute.xlu0 %710
        %712 = vrot.lane.b32.xlu0 %v589, 88
        %v713 = vpop.permute.xlu0 %712
        %v715 = vsel %vm599, %v711, 0
        %v718 = vsel %vm599, %v713, 0
        %720 = vmatprep.subr.bf16.mxu0 0
        %721 = vmatpush1.bf16.xpose.msra.mxu0 %v718
        %722 = vmatprep.subr.bf16.mxu0 0
        %723 = vmatpush1.bf16.xpose.msra.mxu0 0
        %724 = vmatprep.subr.bf16.mxu0 0
        %725 = vmatpush1.bf16.xpose.msra.mxu0 0
        %726 = vmatprep.subr.bf16.mxu0 0
        %727 = vmatpush1.bf16.xpose.msra.mxu0 0
        %728 = vmatprep.subr.bf16.mxu0 0
        %729 = vmatpush1.bf16.xpose.msra.mxu0 0
        %730 = vmatprep.subr.bf16.mxu0 0
        %731 = vmatpush1.bf16.xpose.msra.mxu0 0
        %732 = vmatprep.subr.bf16.mxu0 0
        %733 = vmatpush1.bf16.xpose.msra.mxu0 0
        %734 = vmatprep.subr.bf16.mxu0 0
        %735 = vmatpush1.bf16.xpose.msra.mxu0 0
        %736 = vmatprep.subr.bf16.mxu0 0
        %737 = vmatpush1.bf16.xpose.msra.mxu0 0
        %738 = vmatprep.subr.bf16.mxu0 0
        %739 = vmatpush1.bf16.xpose.msra.mxu0 0
        %740 = vmatprep.subr.bf16.mxu0 0
        %741 = vmatpush1.bf16.xpose.msra.mxu0 0
        %742 = vmatprep.subr.bf16.mxu0 0
        %743 = vmatpush1.bf16.xpose.msra.mxu0 0
        %744 = vmatprep.subr.bf16.mxu0 0
        %745 = vmatpush1.bf16.xpose.msra.mxu0 0
        %746 = vmatprep.subr.bf16.mxu0 0
        %747 = vmatpush1.bf16.xpose.msra.mxu0 0
        %748 = vmatprep.subr.bf16.mxu0 0
        %749 = vmatpush1.bf16.xpose.msra.mxu0 0
        %750 = vmatprep.subr.bf16.mxu0 0
        %751 = vmatpush1.bf16.xpose.msra.mxu0 0
        %752 = vmatprep.mubr.bf16.mxu0 0
        %753 = vmatmul.mubr.bf16.gmra.mrb[0].mxu0 %v715
        %v754 = vpop.f32.mrb[0].mxu0
        %v755 = vadd.f32 %v594, %v754
        %v756 = vpop.f32.mrb[0].mxu0
        %v757 = vpop.f32.mrb[0].mxu0
        %v758 = vpop.f32.mrb[0].mxu0
        %759 = vdwg.mxu0
        %v760 = vsel %vm599, %v755, -inf
        %761 = vmax.xlane.f32.xlu0 %v760
        %v762 = vpop.xlane.xlu0 %761
        %v763 = vsub.f32 %v755, %v762
        %v764 = vmul.f32 %v763, 1.442695
        %v765 = vpow.pop %v764
        %v766 = vsel %vm599, %v765, 0.0
        %767 = vadd.xlane.f32.xlu0 %v766
        %v768 = vpop.xlane.xlu0 %767
        %v769 = vrcp.pop %v768
        %v770 = vmul.f32 %v765, %v769
        %v771 = vpack.c.bf16 %v770, %v770
        %772 = vrot.lane.b32.xlu0 %v589, 56
        %v773 = vpop.permute.xlu0 %772
        %v775 = vsel %vm599, %v771, 0
        %v778 = vsel %vm663, %v773, 0
        %780 = vmatprep.subr.bf16.mxu0 0
        %781 = vmatpush1.bf16.msra.mxu0 %v778
        %782 = vmatprep.subr.bf16.mxu0 0
        %783 = vmatpush1.bf16.msra.mxu0 0
        %784 = vmatprep.subr.bf16.mxu0 0
        %785 = vmatpush1.bf16.msra.mxu0 0
        %786 = vmatprep.subr.bf16.mxu0 0
        %787 = vmatpush1.bf16.msra.mxu0 0
        %788 = vmatprep.subr.bf16.mxu0 0
        %789 = vmatpush1.bf16.msra.mxu0 0
        %790 = vmatprep.subr.bf16.mxu0 0
        %791 = vmatpush1.bf16.msra.mxu0 0
        %792 = vmatprep.subr.bf16.mxu0 0
        %793 = vmatpush1.bf16.msra.mxu0 0
        %794 = vmatprep.subr.bf16.mxu0 0
        %795 = vmatpush1.bf16.msra.mxu0 0
        %796 = vmatprep.subr.bf16.mxu0 0
        %797 = vmatpush1.bf16.msra.mxu0 0
        %798 = vmatprep.subr.bf16.mxu0 0
        %799 = vmatpush1.bf16.msra.mxu0 0
        %800 = vmatprep.subr.bf16.mxu0 0
        %801 = vmatpush1.bf16.msra.mxu0 0
        %802 = vmatprep.subr.bf16.mxu0 0
        %803 = vmatpush1.bf16.msra.mxu0 0
        %804 = vmatprep.subr.bf16.mxu0 0
        %805 = vmatpush1.bf16.msra.mxu0 0
        %806 = vmatprep.subr.bf16.mxu0 0
        %807 = vmatpush1.bf16.msra.mxu0 0
        %808 = vmatprep.subr.bf16.mxu0 0
        %809 = vmatpush1.bf16.msra.mxu0 0
        %810 = vmatprep.subr.bf16.mxu0 0
        %811 = vmatpush1.bf16.msra.mxu0 0
        %812 = vmatprep.mubr.bf16.mxu0 0
        %813 = vmatmul.mubr.bf16.gmra.mrb[0].mxu0 %v775
        %v814 = vpop.f32.mrb[0].mxu0
        %v815 = vadd.f32 0.0, %v814
        %v816 = vpop.f32.mrb[0].mxu0
        %v817 = vpop.f32.mrb[0].mxu0
        %v818 = vpop.f32.mrb[0].mxu0
        %819 = vdwg.mxu0
        %v820 = vpack.c.bf16 %v815, %v815
        %v821 = vld [vmem:[%s6 + $0x4] sm:$0xf]
        %v823 = vsel %vm599, %v820, 0
        %v826 = vsel %vm663, %v821, 0
        %828 = vmatprep.subr.bf16.mxu0 0
        %829 = vmatpush1.bf16.msra.mxu0 %v826
        %830 = vmatprep.subr.bf16.mxu0 0
        %831 = vmatpush1.bf16.msra.mxu0 0
        %832 = vmatprep.subr.bf16.mxu0 0
        %833 = vmatpush1.bf16.msra.mxu0 0
        %834 = vmatprep.subr.bf16.mxu0 0
        %835 = vmatpush1.bf16.msra.mxu0 0
        %836 = vmatprep.subr.bf16.mxu0 0
        %837 = vmatpush1.bf16.msra.mxu0 0
        %838 = vmatprep.subr.bf16.mxu0 0
        %839 = vmatpush1.bf16.msra.mxu0 0
        %840 = vmatprep.subr.bf16.mxu0 0
        %841 = vmatpush1.bf16.msra.mxu0 0
        %842 = vmatprep.subr.bf16.mxu0 0
        %843 = vmatpush1.bf16.msra.mxu0 0
        %844 = vmatprep.subr.bf16.mxu0 0
        %845 = vmatpush1.bf16.msra.mxu0 0
        %846 = vmatprep.subr.bf16.mxu0 0
        %847 = vmatpush1.bf16.msra.mxu0 0
        %848 = vmatprep.subr.bf16.mxu0 0
        %849 = vmatpush1.bf16.msra.mxu0 0
        %850 = vmatprep.subr.bf16.mxu0 0
        %851 = vmatpush1.bf16.msra.mxu0 0
        %852 = vmatprep.subr.bf16.mxu0 0
        %853 = vmatpush1.bf16.msra.mxu0 0
        %854 = vmatprep.subr.bf16.mxu0 0
        %855 = vmatpush1.bf16.msra.mxu0 0
        %856 = vmatprep.subr.bf16.mxu0 0
        %857 = vmatpush1.bf16.msra.mxu0 0
        %858 = vmatprep.subr.bf16.mxu0 0
        %859 = vmatpush1.bf16.msra.mxu0 0
        %860 = vmatprep.mubr.bf16.mxu0 0
        %861 = vmatmul.mubr.bf16.gmra.mrb[0].mxu0 %v823
        %v862 = vpop.f32.mrb[0].mxu0
        %v863 = vadd.f32 0.0, %v862
        %v864 = vpop.f32.mrb[0].mxu0
        %v865 = vpop.f32.mrb[0].mxu0
        %v866 = vpop.f32.mrb[0].mxu0
        %867 = vdwg.mxu0
        %v869 = vsel %vm599, %v707, 0
        %v872 = vsel %vm663, %v708, 0
        %874 = vmatprep.subr.bf16.mxu0 0
        %875 = vmatpush1.bf16.msra.mxu0 %v872
        %876 = vmatprep.subr.bf16.mxu0 0
        %877 = vmatpush1.bf16.msra.mxu0 0
        %878 = vmatprep.subr.bf16.mxu0 0
        %879 = vmatpush1.bf16.msra.mxu0 0
        %880 = vmatprep.subr.bf16.mxu0 0
        %881 = vmatpush1.bf16.msra.mxu0 0
        %882 = vmatprep.subr.bf16.mxu0 0
        %883 = vmatpush1.bf16.msra.mxu0 0
        %884 = vmatprep.subr.bf16.mxu0 0
        %885 = vmatpush1.bf16.msra.mxu0 0
        %886 = vmatprep.subr.bf16.mxu0 0
        %887 = vmatpush1.bf16.msra.mxu0 0
        %888 = vmatprep.subr.bf16.mxu0 0
        %889 = vmatpush1.bf16.msra.mxu0 0
        %890 = vmatprep.subr.bf16.mxu0 0
        %891 = vmatpush1.bf16.msra.mxu0 0
        %892 = vmatprep.subr.bf16.mxu0 0
        %893 = vmatpush1.bf16.msra.mxu0 0
        %894 = vmatprep.subr.bf16.mxu0 0
        %895 = vmatpush1.bf16.msra.mxu0 0
        %896 = vmatprep.subr.bf16.mxu0 0
        %897 = vmatpush1.bf16.msra.mxu0 0
        %898 = vmatprep.subr.bf16.mxu0 0
        %899 = vmatpush1.bf16.msra.mxu0 0
        %900 = vmatprep.subr.bf16.mxu0 0
        %901 = vmatpush1.bf16.msra.mxu0 0
        %902 = vmatprep.subr.bf16.mxu0 0
        %903 = vmatpush1.bf16.msra.mxu0 0
        %904 = vmatprep.subr.bf16.mxu0 0
        %905 = vmatpush1.bf16.msra.mxu0 0
        %906 = vmatprep.mubr.bf16.mxu0 0
        %907 = vmatmul.mubr.bf16.gmra.mrb[0].mxu0 %v869
        %v908 = vpop.f32.mrb[0].mxu0
        %v909 = vadd.f32 %v863, %v908
        %v910 = vpop.f32.mrb[0].mxu0
        %v911 = vpop.f32.mrb[0].mxu0
        %v912 = vpop.f32.mrb[0].mxu0
        %913 = vdwg.mxu0
        %914 = vrot.lane.b32.xlu0 %v588, 112
        %v915 = vpop.permute.xlu0 %914
        %916 = vrot.lane.b32.xlu0 %v589, 80
        %v917 = vpop.permute.xlu0 %916
        %v919 = vsel %vm599, %v915, 0
        %v922 = vsel %vm599, %v917, 0
        %924 = vmatprep.subr.bf16.mxu0 0
        %925 = vmatpush1.bf16.xpose.msra.mxu0 %v922
        %926 = vmatprep.subr.bf16.mxu0 0
        %927 = vmatpush1.bf16.xpose.msra.mxu0 0
        %928 = vmatprep.subr.bf16.mxu0 0
        %929 = vmatpush1.bf16.xpose.msra.mxu0 0
        %930 = vmatprep.subr.bf16.mxu0 0
        %931 = vmatpush1.bf16.xpose.msra.mxu0 0
        %932 = vmatprep.subr.bf16.mxu0 0
        %933 = vmatpush1.bf16.xpose.msra.mxu0 0
        %934 = vmatprep.subr.bf16.mxu0 0
        %935 = vmatpush1.bf16.xpose.msra.mxu0 0
        %936 = vmatprep.subr.bf16.mxu0 0
        %937 = vmatpush1.bf16.xpose.msra.mxu0 0
        %938 = vmatprep.subr.bf16.mxu0 0
        %939 = vmatpush1.bf16.xpose.msra.mxu0 0
        %940 = vmatprep.subr.bf16.mxu0 0
        %941 = vmatpush1.bf16.xpose.msra.mxu0 0
        %942 = vmatprep.subr.bf16.mxu0 0
        %943 = vmatpush1.bf16.xpose.msra.mxu0 0
        %944 = vmatprep.subr.bf16.mxu0 0
        %945 = vmatpush1.bf16.xpose.msra.mxu0 0
        %946 = vmatprep.subr.bf16.mxu0 0
        %947 = vmatpush1.bf16.xpose.msra.mxu0 0
        %948 = vmatprep.subr.bf16.mxu0 0
        %949 = vmatpush1.bf16.xpose.msra.mxu0 0
        %950 = vmatprep.subr.bf16.mxu0 0
        %951 = vmatpush1.bf16.xpose.msra.mxu0 0
        %952 = vmatprep.subr.bf16.mxu0 0
        %953 = vmatpush1.bf16.xpose.msra.mxu0 0
        %954 = vmatprep.subr.bf16.mxu0 0
        %955 = vmatpush1.bf16.xpose.msra.mxu0 0
        %956 = vmatprep.mubr.bf16.mxu0 0
        %957 = vmatmul.mubr.bf16.gmra.mrb[0].mxu0 %v919
        %v958 = vpop.f32.mrb[0].mxu0
        %v959 = vadd.f32 %v594, %v958
        %v960 = vpop.f32.mrb[0].mxu0
        %v961 = vpop.f32.mrb[0].mxu0
        %v962 = vpop.f32.mrb[0].mxu0
        %963 = vdwg.mxu0
        %v964 = vsel %vm599, %v959, -inf
        %965 = vmax.xlane.f32.xlu0 %v964
        %v966 = vpop.xlane.xlu0 %965
        %v967 = vsub.f32 %v959, %v966
        %v968 = vmul.f32 %v967, 1.442695
        %v969 = vpow.pop %v968
        %v970 = vsel %vm599, %v969, 0.0
        %971 = vadd.xlane.f32.xlu0 %v970
        %v972 = vpop.xlane.xlu0 %971
        %v973 = vrcp.pop %v972
        %v974 = vmul.f32 %v969, %v973
        %v975 = vpack.c.bf16 %v974, %v974
        %976 = vrot.lane.b32.xlu0 %v589, 48
        %v977 = vpop.permute.xlu0 %976
        %v979 = vsel %vm599, %v975, 0
        %v982 = vsel %vm663, %v977, 0
        %984 = vmatprep.subr.bf16.mxu0 0
        %985 = vmatpush1.bf16.msra.mxu0 %v982
        %986 = vmatprep.subr.bf16.mxu0 0
        %987 = vmatpush1.bf16.msra.mxu0 0
        %988 = vmatprep.subr.bf16.mxu0 0
        %989 = vmatpush1.bf16.msra.mxu0 0
        %990 = vmatprep.subr.bf16.mxu0 0
        %991 = vmatpush1.bf16.msra.mxu0 0
        %992 = vmatprep.subr.bf16.mxu0 0
        %993 = vmatpush1.bf16.msra.mxu0 0
        %994 = vmatprep.subr.bf16.mxu0 0
        %995 = vmatpush1.bf16.msra.mxu0 0
        %996 = vmatprep.subr.bf16.mxu0 0
        %997 = vmatpush1.bf16.msra.mxu0 0
        %998 = vmatprep.subr.bf16.mxu0 0
        %999 = vmatpush1.bf16.msra.mxu0 0
        %1000 = vmatprep.subr.bf16.mxu0 0
        %1001 = vmatpush1.bf16.msra.mxu0 0
        %1002 = vmatprep.subr.bf16.mxu0 0
        %1003 = vmatpush1.bf16.msra.mxu0 0
        %1004 = vmatprep.subr.bf16.mxu0 0
        %1005 = vmatpush1.bf16.msra.mxu0 0
        %1006 = vmatprep.subr.bf16.mxu0 0
        %1007 = vmatpush1.bf16.msra.mxu0 0
        %1008 = vmatprep.subr.bf16.mxu0 0
        %1009 = vmatpush1.bf16.msra.mxu0 0
        %1010 = vmatprep.subr.bf16.mxu0 0
        %1011 = vmatpush1.bf16.msra.mxu0 0
        %1012 = vmatprep.subr.bf16.mxu0 0
        %1013 = vmatpush1.bf16.msra.mxu0 0
        %1014 = vmatprep.subr.bf16.mxu0 0
        %1015 = vmatpush1.bf16.msra.mxu0 0
        %1016 = vmatprep.mubr.bf16.mxu0 0
        %1017 = vmatmul.mubr.bf16.gmra.mrb[0].mxu0 %v979
        %v1018 = vpop.f32.mrb[0].mxu0
        %v1019 = vadd.f32 0.0, %v1018
        %v1020 = vpop.f32.mrb[0].mxu0
        %v1021 = vpop.f32.mrb[0].mxu0
        %v1022 = vpop.f32.mrb[0].mxu0
        %1023 = vdwg.mxu0
        %v1024 = vpack.c.bf16 %v1019, %v1019
        %v1025 = vld [vmem:[%s6 + $0x8] sm:$0xf]
        %v1027 = vsel %vm599, %v1024, 0
        %v1030 = vsel %vm663, %v1025, 0
        %1032 = vmatprep.subr.bf16.mxu0 0
        %1033 = vmatpush1.bf16.msra.mxu0 %v1030
        %1034 = vmatprep.subr.bf16.mxu0 0
        %1035 = vmatpush1.bf16.msra.mxu0 0
        %1036 = vmatprep.subr.bf16.mxu0 0
        %1037 = vmatpush1.bf16.msra.mxu0 0
        %1038 = vmatprep.subr.bf16.mxu0 0
        %1039 = vmatpush1.bf16.msra.mxu0 0
        %1040 = vmatprep.subr.bf16.mxu0 0
        %1041 = vmatpush1.bf16.msra.mxu0 0
        %1042 = vmatprep.subr.bf16.mxu0 0
        %1043 = vmatpush1.bf16.msra.mxu0 0
        %1044 = vmatprep.subr.bf16.mxu0 0
        %1045 = vmatpush1.bf16.msra.mxu0 0
        %1046 = vmatprep.subr.bf16.mxu0 0
        %1047 = vmatpush1.bf16.msra.mxu0 0
        %1048 = vmatprep.subr.bf16.mxu0 0
        %1049 = vmatpush1.bf16.msra.mxu0 0
        %1050 = vmatprep.subr.bf16.mxu0 0
        %1051 = vmatpush1.bf16.msra.mxu0 0
        %1052 = vmatprep.subr.bf16.mxu0 0
        %1053 = vmatpush1.bf16.msra.mxu0 0
        %1054 = vmatprep.subr.bf16.mxu0 0
        %1055 = vmatpush1.bf16.msra.mxu0 0
        %1056 = vmatprep.subr.bf16.mxu0 0
        %1057 = vmatpush1.bf16.msra.mxu0 0
        %1058 = vmatprep.subr.bf16.mxu0 0
        %1059 = vmatpush1.bf16.msra.mxu0 0
        %1060 = vmatprep.subr.bf16.mxu0 0
        %1061 = vmatpush1.bf16.msra.mxu0 0
        %1062 = vmatprep.subr.bf16.mxu0 0
        %1063 = vmatpush1.bf16.msra.mxu0 0
        %1064 = vmatprep.mubr.bf16.mxu0 0
        %1065 = vmatmul.mubr.bf16.gmra.mrb[0].mxu0 %v1027
        %v1066 = vpop.f32.mrb[0].mxu0
        %v1067 = vadd.f32 0.0, %v1066
        %v1068 = vpop.f32.mrb[0].mxu0
        %v1069 = vpop.f32.mrb[0].mxu0
        %v1070 = vpop.f32.mrb[0].mxu0
        %1071 = vdwg.mxu0
        %v1072 = vadd.f32 %v909, %v1067
        %1073 = vrot.lane.b32.xlu0 %v588, 104
        %v1074 = vpop.permute.xlu0 %1073
        %1075 = vrot.lane.b32.xlu0 %v589, 72
        %v1076 = vpop.permute.xlu0 %1075
        %v1078 = vsel %vm599, %v1074, 0
        %v1081 = vsel %vm599, %v1076, 0
        %1083 = vmatprep.subr.bf16.mxu0 0
        %1084 = vmatpush1.bf16.xpose.msra.mxu0 %v1081
        %1085 = vmatprep.subr.bf16.mxu0 0
        %1086 = vmatpush1.bf16.xpose.msra.mxu0 0
        %1087 = vmatprep.subr.bf16.mxu0 0
        %1088 = vmatpush1.bf16.xpose.msra.mxu0 0
        %1089 = vmatprep.subr.bf16.mxu0 0
        %1090 = vmatpush1.bf16.xpose.msra.mxu0 0
        %1091 = vmatprep.subr.bf16.mxu0 0
        %1092 = vmatpush1.bf16.xpose.msra.mxu0 0
        %1093 = vmatprep.subr.bf16.mxu0 0
        %1094 = vmatpush1.bf16.xpose.msra.mxu0 0
        %1095 = vmatprep.subr.bf16.mxu0 0
        %1096 = vmatpush1.bf16.xpose.msra.mxu0 0
        %1097 = vmatprep.subr.bf16.mxu0 0
        %1098 = vmatpush1.bf16.xpose.msra.mxu0 0
        %1099 = vmatprep.subr.bf16.mxu0 0
        %1100 = vmatpush1.bf16.xpose.msra.mxu0 0
        %1101 = vmatprep.subr.bf16.mxu0 0
        %1102 = vmatpush1.bf16.xpose.msra.mxu0 0
        %1103 = vmatprep.subr.bf16.mxu0 0
        %1104 = vmatpush1.bf16.xpose.msra.mxu0 0
        %1105 = vmatprep.subr.bf16.mxu0 0
        %1106 = vmatpush1.bf16.xpose.msra.mxu0 0
        %1107 = vmatprep.subr.bf16.mxu0 0
        %1108 = vmatpush1.bf16.xpose.msra.mxu0 0
        %1109 = vmatprep.subr.bf16.mxu0 0
        %1110 = vmatpush1.bf16.xpose.msra.mxu0 0
        %1111 = vmatprep.subr.bf16.mxu0 0
        %1112 = vmatpush1.bf16.xpose.msra.mxu0 0
        %1113 = vmatprep.subr.bf16.mxu0 0
        %1114 = vmatpush1.bf16.xpose.msra.mxu0 0
        %1115 = vmatprep.mubr.bf16.mxu0 0
        %1116 = vmatmul.mubr.bf16.gmra.mrb[0].mxu0 %v1078
        %v1117 = vpop.f32.mrb[0].mxu0
        %v1118 = vadd.f32 %v594, %v1117
        %v1119 = vpop.f32.mrb[0].mxu0
        %v1120 = vpop.f32.mrb[0].mxu0
        %v1121 = vpop.f32.mrb[0].mxu0
        %1122 = vdwg.mxu0
        %v1123 = vsel %vm599, %v1118, -inf
        %1124 = vmax.xlane.f32.xlu0 %v1123
        %v1125 = vpop.xlane.xlu0 %1124
        %v1126 = vsub.f32 %v1118, %v1125
        %v1127 = vmul.f32 %v1126, 1.442695
        %v1128 = vpow.pop %v1127
        %v1129 = vsel %vm599, %v1128, 0.0
        %1130 = vadd.xlane.f32.xlu0 %v1129
        %v1131 = vpop.xlane.xlu0 %1130
        %v1132 = vrcp.pop %v1131
        %v1133 = vmul.f32 %v1128, %v1132
        %v1134 = vpack.c.bf16 %v1133, %v1133
        %1135 = vrot.lane.b32.xlu0 %v589, 40
        %v1136 = vpop.permute.xlu0 %1135
        %v1138 = vsel %vm599, %v1134, 0
        %v1141 = vsel %vm663, %v1136, 0
        %1143 = vmatprep.subr.bf16.mxu0 0
        %1144 = vmatpush1.bf16.msra.mxu0 %v1141
        %1145 = vmatprep.subr.bf16.mxu0 0
        %1146 = vmatpush1.bf16.msra.mxu0 0
        %1147 = vmatprep.subr.bf16.mxu0 0
        %1148 = vmatpush1.bf16.msra.mxu0 0
        %1149 = vmatprep.subr.bf16.mxu0 0
        %1150 = vmatpush1.bf16.msra.mxu0 0
        %1151 = vmatprep.subr.bf16.mxu0 0
        %1152 = vmatpush1.bf16.msra.mxu0 0
        %1153 = vmatprep.subr.bf16.mxu0 0
        %1154 = vmatpush1.bf16.msra.mxu0 0
        %1155 = vmatprep.subr.bf16.mxu0 0
        %1156 = vmatpush1.bf16.msra.mxu0 0
        %1157 = vmatprep.subr.bf16.mxu0 0
        %1158 = vmatpush1.bf16.msra.mxu0 0
        %1159 = vmatprep.subr.bf16.mxu0 0
        %1160 = vmatpush1.bf16.msra.mxu0 0
        %1161 = vmatprep.subr.bf16.mxu0 0
        %1162 = vmatpush1.bf16.msra.mxu0 0
        %1163 = vmatprep.subr.bf16.mxu0 0
        %1164 = vmatpush1.bf16.msra.mxu0 0
        %1165 = vmatprep.subr.bf16.mxu0 0
        %1166 = vmatpush1.bf16.msra.mxu0 0
        %1167 = vmatprep.subr.bf16.mxu0 0
        %1168 = vmatpush1.bf16.msra.mxu0 0
        %1169 = vmatprep.subr.bf16.mxu0 0
        %1170 = vmatpush1.bf16.msra.mxu0 0
        %1171 = vmatprep.subr.bf16.mxu0 0
        %1172 = vmatpush1.bf16.msra.mxu0 0
        %1173 = vmatprep.subr.bf16.mxu0 0
        %1174 = vmatpush1.bf16.msra.mxu0 0
        %1175 = vmatprep.mubr.bf16.mxu0 0
        %1176 = vmatmul.mubr.bf16.gmra.mrb[0].mxu0 %v1138
        %v1177 = vpop.f32.mrb[0].mxu0
        %v1178 = vadd.f32 0.0, %v1177
        %v1179 = vpop.f32.mrb[0].mxu0
        %v1180 = vpop.f32.mrb[0].mxu0
        %v1181 = vpop.f32.mrb[0].mxu0
        %1182 = vdwg.mxu0
        %v1183 = vpack.c.bf16 %v1178, %v1178
        %v1184 = vld [vmem:[%s6 + $0xc] sm:$0xf]
        %v1186 = vsel %vm599, %v1183, 0
        %v1189 = vsel %vm663, %v1184, 0
        %1191 = vmatprep.subr.bf16.mxu0 0
        %1192 = vmatpush1.bf16.msra.mxu0 %v1189
        %1193 = vmatprep.subr.bf16.mxu0 0
        %1194 = vmatpush1.bf16.msra.mxu0 0
        %1195 = vmatprep.subr.bf16.mxu0 0
        %1196 = vmatpush1.bf16.msra.mxu0 0
        %1197 = vmatprep.subr.bf16.mxu0 0
        %1198 = vmatpush1.bf16.msra.mxu0 0
        %1199 = vmatprep.subr.bf16.mxu0 0
        %1200 = vmatpush1.bf16.msra.mxu0 0
        %1201 = vmatprep.subr.bf16.mxu0 0
        %1202 = vmatpush1.bf16.msra.mxu0 0
        %1203 = vmatprep.subr.bf16.mxu0 0
        %1204 = vmatpush1.bf16.msra.mxu0 0
        %1205 = vmatprep.subr.bf16.mxu0 0
        %1206 = vmatpush1.bf16.msra.mxu0 0
        %1207 = vmatprep.subr.bf16.mxu0 0
        %1208 = vmatpush1.bf16.msra.mxu0 0
        %1209 = vmatprep.subr.bf16.mxu0 0
        %1210 = vmatpush1.bf16.msra.mxu0 0
        %1211 = vmatprep.subr.bf16.mxu0 0
        %1212 = vmatpush1.bf16.msra.mxu0 0
        %1213 = vmatprep.subr.bf16.mxu0 0
        %1214 = vmatpush1.bf16.msra.mxu0 0
        %1215 = vmatprep.subr.bf16.mxu0 0
        %1216 = vmatpush1.bf16.msra.mxu0 0
        %1217 = vmatprep.subr.bf16.mxu0 0
        %1218 = vmatpush1.bf16.msra.mxu0 0
        %1219 = vmatprep.subr.bf16.mxu0 0
        %1220 = vmatpush1.bf16.msra.mxu0 0
        %1221 = vmatprep.subr.bf16.mxu0 0
        %1222 = vmatpush1.bf16.msra.mxu0 0
        %1223 = vmatprep.mubr.bf16.mxu0 0
        %1224 = vmatmul.mubr.bf16.gmra.mrb[0].mxu0 %v1186
        %v1225 = vpop.f32.mrb[0].mxu0
        %v1226 = vadd.f32 0.0, %v1225
        %v1227 = vpop.f32.mrb[0].mxu0
        %v1228 = vpop.f32.mrb[0].mxu0
        %v1229 = vpop.f32.mrb[0].mxu0
        %1230 = vdwg.mxu0
        %v1231 = vadd.f32 %v1072, %v1226
        %v1232 = vadd.f32 %v478, %v1231
        %v1233 = vld [vmem:[%s7] sm:$0x1]
        %v1235 = vlaneseq
        %v1236 = vshrl.u32 %v1235, 7
        %v1237 = vsub.s32 0, %v1236
        %v1238 = vrot.slane %v1233, %v1237
        %v1240 = vadd.f32 %v1232, %v1238
        %v1241 = vld [vmem:[%s8] sm:$0x1]
        %v1242 = vld [vmem:[%s9] sm:$0x1]
        %v1243 = vsel %vm482, %v1240, 0.0
        %1244 = vadd.xlane.f32.xlu0 %v1243
        %v1245 = vpop.xlane.xlu0 %1244
        %v1246 = vmul.f32 %v1245, %v486
        %v1247 = vsub.f32 %v1240, %v1246
        %v1248 = vmul.f32 %v1247, %v1247
        %v1249 = vsel %vm482, %v1248, 0.0
        %1250 = vadd.xlane.f32.xlu0 %v1249
        %v1251 = vpop.xlane.xlu0 %1250
        %v1252 = vmul.f32 %v1251, 0.032258064
        %v1253 = vrsqrt.pop %v1252
        %v1254 = vmul.f32 %v1252, %v1253
        %vm1255 = vcmp.eq.f32.partialorder %v1252, inf
        %v1256 = vsel %vm1255, %v1252, %v1254
        %vm1257 = vcmp.eq.f32.partialorder %v1252, 0.0
        %v1258 = vand.u32 %v1252, 2147483648
        %v1259 = vsel %vm1257, %v1258, %v1256
        %v1260 = vadd.f32 %v1259, 1e-06
        %v1261 = vrcp.pop %v1260
        %v1263 = vlaneseq
        %v1264 = vshrl.u32 %v1263, 7
        %v1265 = vsub.s32 0, %v1264
        %v1266 = vrot.slane %v1241, %v1265
        %v1268 = vmul.f32 %v1266, %v1247
        %v1269 = vmul.f32 %v1268, %v1261
        %v1271 = vlaneseq
        %v1272 = vshrl.u32 %v1271, 7
        %v1273 = vsub.s32 0, %v1272
        %v1274 = vrot.slane %v1242, %v1273
        %v1276 = vadd.f32 %v1269, %v1274
        %v1277 = vpack.c.bf16 %v1276, %v1276
        %v1278 = vld [vmem:[%s10] sm:$0xf]
        %v1279 = vld [vmem:[%s10 + $0x4] sm:$0xf]
        %v1280 = vld [vmem:[%s10 + $0x8] sm:$0xf]
        %v1281 = vld [vmem:[%s10 + $0xc] sm:$0xf]
        %v1282 = vld [vmem:[%s11] sm:$0x1]
        %v1284 = vlaneseq
        %v1285 = vshrl.u32 %v1284, 7
        %v1286 = vsub.s32 0, %v1285
        %v1287 = vrot.slane %v1282, %v1286
        %v1293 = vunpack.c.l.b16 %v1278
        %v1294 = vunpack.c.l.b16 %v1279
        %v1295 = vunpack.c.l.b16 %v1280
        %v1296 = vunpack.c.l.b16 %v1281
        %v1297 = vpack.c.b16 %v1294, %v1293
        %v1298 = vpack.c.b16 %v1296, %v1295
        %v1302 = vsel %vm482, %v1277, 0
        %1304 = vmatprep.subr.bf16.mxu0 0
        %1305 = vmatpush1.bf16.msra.mxu0 %v1297
        %1306 = vmatprep.subr.bf16.mxu0 0
        %1307 = vmatpush1.bf16.msra.mxu0 %v1298
        %1308 = vmatprep.subr.bf16.mxu0 0
        %1309 = vmatpush1.bf16.msra.mxu0 0
        %1310 = vmatprep.subr.bf16.mxu0 0
        %1311 = vmatpush1.bf16.msra.mxu0 0
        %1312 = vmatprep.subr.bf16.mxu0 0
        %1313 = vmatpush1.bf16.msra.mxu0 0
        %1314 = vmatprep.subr.bf16.mxu0 0
        %1315 = vmatpush1.bf16.msra.mxu0 0
        %1316 = vmatprep.subr.bf16.mxu0 0
        %1317 = vmatpush1.bf16.msra.mxu0 0
        %1318 = vmatprep.subr.bf16.mxu0 0
        %1319 = vmatpush1.bf16.msra.mxu0 0
        %1320 = vmatprep.subr.bf16.mxu0 0
        %1321 = vmatpush1.bf16.msra.mxu0 0
        %1322 = vmatprep.subr.bf16.mxu0 0
        %1323 = vmatpush1.bf16.msra.mxu0 0
        %1324 = vmatprep.subr.bf16.mxu0 0
        %1325 = vmatpush1.bf16.msra.mxu0 0
        %1326 = vmatprep.subr.bf16.mxu0 0
        %1327 = vmatpush1.bf16.msra.mxu0 0
        %1328 = vmatprep.subr.bf16.mxu0 0
        %1329 = vmatpush1.bf16.msra.mxu0 0
        %1330 = vmatprep.subr.bf16.mxu0 0
        %1331 = vmatpush1.bf16.msra.mxu0 0
        %1332 = vmatprep.subr.bf16.mxu0 0
        %1333 = vmatpush1.bf16.msra.mxu0 0
        %1334 = vmatprep.subr.bf16.mxu0 0
        %1335 = vmatpush1.bf16.msra.mxu0 0
        %1336 = vmatprep.mubr.bf16.mxu0 0
        %1337 = vmatmul.mubr.bf16.gmra.mrb[0].mxu0 %v1302
        %v1338 = vpop.f32.mrb[0].mxu0
        %v1339 = vadd.f32 %v1287, %v1338
        %v1340 = vpop.f32.mrb[0].mxu0
        %v1341 = vpop.f32.mrb[0].mxu0
        %v1342 = vpop.f32.mrb[0].mxu0
        %1343 = vdwg.mxu0
        %v1344 = vmax.f32 %v1339, 0.0
        %v1345 = vpack.c.bf16 %v1344, %v1344
        %v1346 = vld [vmem:[%s12] sm:$0xf]
        %v1347 = vld [vmem:[%s12 + $0x4] sm:$0xf]
        %v1348 = vld [vmem:[%s12 + $0x8] sm:$0xf]
        %v1349 = vld [vmem:[%s12 + $0xc] sm:$0xf]
        %v1350 = vld [vmem:[%s12 + $0x10] sm:$0xf]
        %v1351 = vld [vmem:[%s12 + $0x14] sm:$0xf]
        %v1352 = vld [vmem:[%s12 + $0x18] sm:$0xf]
        %v1353 = vld [vmem:[%s12 + $0x1c] sm:$0xf]
        %v1354 = vld [vmem:[%s12 + $0x20] sm:$0xf]
        %v1355 = vld [vmem:[%s12 + $0x24] sm:$0xf]
        %v1356 = vld [vmem:[%s12 + $0x28] sm:$0xf]
        %v1357 = vld [vmem:[%s12 + $0x2c] sm:$0xf]
        %v1358 = vld [vmem:[%s12 + $0x30] sm:$0xf]
        %v1359 = vld [vmem:[%s12 + $0x34] sm:$0xf]
        %v1360 = vld [vmem:[%s12 + $0x38] sm:$0xf]
        %v1361 = vld [vmem:[%s12 + $0x3c] sm:$0xf]
        %v1362 = vld [vmem:[%s13] sm:$0x1]
        %v1364 = vlaneseq
        %v1365 = vshrl.u32 %v1364, 7
        %v1366 = vsub.s32 0, %v1365
        %v1367 = vrot.slane %v1362, %v1366
        %v1385 = vunpack.c.l.b16 %v1346
        %v1386 = vunpack.c.l.b16 %v1347
        %v1387 = vunpack.c.l.b16 %v1348
        %v1388 = vunpack.c.l.b16 %v1349
        %v1389 = vunpack.c.l.b16 %v1350
        %v1390 = vunpack.c.l.b16 %v1351
        %v1391 = vunpack.c.l.b16 %v1352
        %v1392 = vunpack.c.l.b16 %v1353
        %v1393 = vunpack.c.l.b16 %v1354
        %v1394 = vunpack.c.l.b16 %v1355
        %v1395 = vunpack.c.l.b16 %v1356
        %v1396 = vunpack.c.l.b16 %v1357
        %v1397 = vunpack.c.l.b16 %v1358
        %v1398 = vunpack.c.l.b16 %v1359
        %v1399 = vunpack.c.l.b16 %v1360
        %v1400 = vunpack.c.l.b16 %v1361
        %v1401 = vpack.c.b16 %v1386, %v1385
        %v1402 = vpack.c.b16 %v1388, %v1387
        %v1403 = vpack.c.b16 %v1390, %v1389
        %v1404 = vpack.c.b16 %v1392, %v1391
        %v1405 = vpack.c.b16 %v1394, %v1393
        %v1406 = vpack.c.b16 %v1396, %v1395
        %v1407 = vpack.c.b16 %v1398, %v1397
        %v1408 = vpack.c.b16 %v1400, %v1399
        %1417 = vmatprep.subr.bf16.mxu0 0
        %1418 = vmatpush1.bf16.msra.mxu0 %v1401
        %1419 = vmatprep.subr.bf16.mxu0 0
        %1420 = vmatpush1.bf16.msra.mxu0 %v1402
        %1421 = vmatprep.subr.bf16.mxu0 0
        %1422 = vmatpush1.bf16.msra.mxu0 %v1403
        %1423 = vmatprep.subr.bf16.mxu0 0
        %1424 = vmatpush1.bf16.msra.mxu0 %v1404
        %1425 = vmatprep.subr.bf16.mxu0 0
        %1426 = vmatpush1.bf16.msra.mxu0 %v1405
        %1427 = vmatprep.subr.bf16.mxu0 0
        %1428 = vmatpush1.bf16.msra.mxu0 %v1406
        %1429 = vmatprep.subr.bf16.mxu0 0
        %1430 = vmatpush1.bf16.msra.mxu0 %v1407
        %1431 = vmatprep.subr.bf16.mxu0 0
        %1432 = vmatpush1.bf16.msra.mxu0 %v1408
        %1433 = vmatprep.subr.bf16.mxu0 0
        %1434 = vmatpush1.bf16.msra.mxu0 0
        %1435 = vmatprep.subr.bf16.mxu0 0
        %1436 = vmatpush1.bf16.msra.mxu0 0
        %1437 = vmatprep.subr.bf16.mxu0 0
        %1438 = vmatpush1.bf16.msra.mxu0 0
        %1439 = vmatprep.subr.bf16.mxu0 0
        %1440 = vmatpush1.bf16.msra.mxu0 0
        %1441 = vmatprep.subr.bf16.mxu0 0
        %1442 = vmatpush1.bf16.msra.mxu0 0
        %1443 = vmatprep.subr.bf16.mxu0 0
        %1444 = vmatpush1.bf16.msra.mxu0 0
        %1445 = vmatprep.subr.bf16.mxu0 0
        %1446 = vmatpush1.bf16.msra.mxu0 0
        %1447 = vmatprep.subr.bf16.mxu0 0
        %1448 = vmatpush1.bf16.msra.mxu0 0
        %1449 = vmatprep.mubr.bf16.mxu0 0
        %1450 = vmatmul.mubr.bf16.gmra.mrb[0].mxu0 %v1345
        %v1451 = vpop.f32.mrb[0].mxu0
        %v1452 = vadd.f32 %v1367, %v1451
        %v1453 = vpop.f32.mrb[0].mxu0
        %v1454 = vpop.f32.mrb[0].mxu0
        %v1455 = vpop.f32.mrb[0].mxu0
        %1456 = vdwg.mxu0
        %v1457 = vadd.f32 %v1240, %v1452
        %1458 = vst.msk [vmem:[%s469] sm:$0xff] %vm482, %v1457
        %s1459 = sand.u32 %s340, 1
        %s1460 = scalar_lea.sflag [#allocation3], %s1459
        %s1461 = sand.u32 %s340, 1
        %s1462 = smul.addr %s1461, 8
        %s1463 = scalar_lea.vmem [#allocation2], %s1462
        // Predicated region
        $region77: #{tpu_custom_call.1} parent=75 // pred_check
          %p1464 = pneg %p350
        $region78: #{tpu_custom_call.1} parent=75 // pred_check_branch
          %1466 = sbr.rel (%p1464) target = $region80
        $region79: #{tpu_custom_call.1} parent=75 // pred_region
          %s1468 = ssub.s32 128, 128
          %1469 = vsyncadd %s1460, %s1468
          %s1470 = smul.addr %s28, 128
          %s1471 = scalar_lea.hbm %s14, %s1470
          %s1473 = sshll.u32 %s1463, 4
          %s1474 = int_to_ptr.vmem [resolvable:$true] %s1473
          %1476 = dma.vmem_to_hbm [thread:$0]  %s1474, 128, %s1471, %s1460
        $region80: #{tpu_custom_call.1} parent=75 // pred_fallthru
          _
      $region76: #{tpu_custom_call.1} parent=5 // pred_fallthru
        _
      %p1477 = scmp.le.s32.totalorder 2, %s23
      // Predicated region
      $region81: #{tpu_custom_call.1} parent=5 // pred_check
        %p1478 = pneg %p1477
      $region82: #{tpu_custom_call.1} parent=5 // pred_check_branch
        %1480 = sbr.rel (%p1478) target = $region84
      $region83: #{tpu_custom_call.1} parent=5 // pred_region
        %s1481 = ssub.s32 %s23, 2
        // Predicated region
        $region85: #{tpu_custom_call.1} parent=83 // pred_check
          %p1482 = pneg %p356
        $region86: #{tpu_custom_call.1} parent=83 // pred_check_branch
          %1484 = sbr.rel (%p1482) target = $region88
        $region87: #{tpu_custom_call.1} parent=83 // pred_region
          %s1485 = sand.u32 %s341, 1
          %s1486 = scalar_lea.sflag [#allocation3], %s1485
          %s1487 = sand.u32 %s341, 1
          %s1488 = smul.addr %s1487, 8
          %s1489 = scalar_lea.vmem [#allocation2], %s1488
          %1490 = dma.done %s1486, 128
        $region88: #{tpu_custom_call.1} parent=83 // pred_fallthru
          _
      $region84: #{tpu_custom_call.1} parent=5 // pred_fallthru
        _
    $region6: #{tpu_custom_call.1} parent=1 // loop_footer
      %s27 = sadd.s32 1, %s23
    $region7: #{tpu_custom_call.1} parent=1 // loop_footer_branch
      %22 = sbr.rel target = $region3
    $region8: #{tpu_custom_call.1} parent=1 // loop_exit
      _
    %1491 = vsyncpa [#allocation3], 1
    %s1492 = scalar_lea.sflag [#allocation3], 1
    %1493 = vsyncpa %s1492, 1

// kernel: tpu_custom_call.1
$region0: #{tpu_custom_call.1}
  #allocation0 [shape = 'u32[]', space=smem, size = 0x4, offset = 0x4, fixed_abs, tag = 'smem constant byte address 0x4 - core index']
  #allocation1 [shape = 'u32[144,128]{1,0:T(1,128)}', space=vmem, size = 0x12000, scoped, tag = 'internal scratch']
  %s0 = inlined_call_operand.vmem [shape: f32[2,8,32], index: 0, kind: input, shape index: {}]
  %s1 = inlined_call_operand.vmem [shape: f32[2,1,8], index: 1, kind: input, shape index: {}]
  %s2 = inlined_call_operand.vmem [shape: f32[1,32], index: 2, kind: input, shape index: {}]
  %s3 = inlined_call_operand.vmem [shape: f32[1,32], index: 3, kind: input, shape index: {}]
  %s4 = inlined_call_operand.vmem [shape: bf16[32,96], index: 4, kind: input, shape index: {}]
  %s5 = inlined_call_operand.vmem [shape: f32[1,96], index: 5, kind: input, shape index: {}]
  %s6 = inlined_call_operand.vmem [shape: bf16[32,32], index: 6, kind: input, shape index: {}]
  %s7 = inlined_call_operand.vmem [shape: f32[1,32], index: 7, kind: input, shape index: {}]
  %s8 = inlined_call_operand.vmem [shape: f32[1,32], index: 8, kind: input, shape index: {}]
  %s9 = inlined_call_operand.vmem [shape: f32[1,32], index: 9, kind: input, shape index: {}]
  %s10 = inlined_call_operand.vmem [shape: bf16[32,128], index: 10, kind: input, shape index: {}]
  %s11 = inlined_call_operand.vmem [shape: f32[1,128], index: 11, kind: input, shape index: {}]
  %s12 = inlined_call_operand.vmem [shape: bf16[128,32], index: 12, kind: input, shape index: {}]
  %s13 = inlined_call_operand.vmem [shape: f32[1,32], index: 13, kind: input, shape index: {}]
  %s14 = inlined_call_operand.hbm [shape: f32[2,8,32], index: 14, kind: output, shape index: {}]
  %s15 = sld [smem:[#allocation0]]
  $region89: #{tpu_custom_call.1} parent=0
    _
  %s17 = ssub.s32 1, %s15
  %s18 = scalar_select 0, %s17, %s15
  $region1: #{tpu_custom_call.1} parent=0
    #allocation2 [shape = 'u8[8192]{0}', space=vmem, size = 0x2000, scoped, tag = 'output window, operand 0']
    #allocation3 [shape = 's32[2]{0}', space=sflag, size = 0x8, scoped, tag = 'scoped memory for tpu_custom_call.1']
    %19 = vsyncpa [#allocation3], 0
    %s20 = scalar_lea.sflag [#allocation3], 1
    %21 = vsyncpa %s20, 0
    loop: start=0, step=1, limit=4
    $region2: #{tpu_custom_call.1} parent=1 // loop_pre_header
      _
    $region3: #{tpu_custom_call.1} parent=1 // loop_header
      %s23 = sphi 0, %s27
      %p24 = scmp.ge.s32.totalorder %s23, 4
      %s33 = sphi 0, %s35
      %s36 = sphi 0, %s33
      %s37 = sphi 0, %s36
      %s53 = sphi 0, %s37
      %s59 = sphi 0, %s61
      %s62 = sphi 0, %s59
      %s63 = sphi 0, %s62
      %s79 = sphi 0, %s63
      %s83 = sphi 0, %s83
      %s85 = sphi 0, %s83
      %s86 = sphi 0, %s85
      %s100 = sphi 0, %s86
      %s104 = sphi 0, %s104
      %s106 = sphi 0, %s104
      %s107 = sphi 0, %s106
      %s121 = sphi 0, %s107
      %s125 = sphi 0, %s125
      %s127 = sphi 0, %s125
      %s128 = sphi 0, %s127
      %s142 = sphi 0, %s128
      %s146 = sphi 0, %s146
      %s148 = sphi 0, %s146
      %s149 = sphi 0, %s148
      %s163 = sphi 0, %s149
      %s167 = sphi 0, %s167
      %s169 = sphi 0, %s167
      %s170 = sphi 0, %s169
      %s184 = sphi 0, %s170
      %s188 = sphi 0, %s188
      %s190 = sphi 0, %s188
      %s191 = sphi 0, %s190
      %s205 = sphi 0, %s191
      %s209 = sphi 0, %s209
      %s211 = sphi 0, %s209
      %s212 = sphi 0, %s211
      %s226 = sphi 0, %s212
      %s230 = sphi 0, %s230
      %s232 = sphi 0, %s230
      %s233 = sphi 0, %s232
      %s247 = sphi 0, %s233
      %s251 = sphi 0, %s251
      %s253 = sphi 0, %s251
      %s254 = sphi 0, %s253
      %s268 = sphi 0, %s254
      %s272 = sphi 0, %s272
      %s274 = sphi 0, %s272
      %s275 = sphi 0, %s274
      %s289 = sphi 0, %s275
      %s293 = sphi 0, %s293
      %s295 = sphi 0, %s293
      %s296 = sphi 0, %s295
      %s310 = sphi 0, %s296
      %s314 = sphi 0, %s314
      %s316 = sphi 0, %s314
      %s317 = sphi 0, %s316
      %s331 = sphi 0, %s317
      %s337 = sphi 0, %s339
      %s340 = sphi 0, %s337
      %s341 = sphi 0, %s340
      %s357 = sphi 0, %s341
    $region4: #{tpu_custom_call.1} parent=1 // loop_header_branch
      %26 = sbr.rel (%p24) target = $region8
    $region5: #{tpu_custom_call.1} parent=1 // loop_body
      %s28 = ssub.s32 %s23, 1
      %s29 = ssub.s32 %s23, 2
      %s30 = sadd.s32 %s23, 1
      %s31 = ssub.s32 %s23, %s30
      %p32 = scmp.eq.s32.totalorder %s31, 0
      %s34 = sadd.s32 %s33, 1
      %s35 = scalar_select %p32, %s33, %s34
      %p38 = pneg %p32
      %p39 = scmp.eq.s32.totalorder %s23, 1
      %p40 = por %p38, %p39
      %p41 = scmp.ne.s32.totalorder %s33, %s36
      %p42 = scmp.eq.s32.totalorder %s23, 0
      %p43 = por %p41, %p42
      %p44 = scmp.ne.s32.totalorder %s33, %s36
      %p45 = scmp.eq.s32.totalorder %s28, 1
      %p46 = por %p44, %p45
      %p47 = scmp.ne.s32.totalorder %s36, %s37
      %p48 = scmp.eq.s32.totalorder %s28, 0
      %p49 = por %p47, %p48
      %p50 = scmp.ne.s32.totalorder %s36, %s37
      %p51 = scmp.eq.s32.totalorder %s29, 1
      %p52 = por %p50, %p51
      %p54 = scmp.ne.s32.totalorder %s37, %s53
      %p55 = scmp.eq.s32.totalorder %s29, 0
      %p56 = por %p54, %p55
      %s57 = ssub.s32 %s23, %s30
      %p58 = scmp.eq.s32.totalorder %s57, 0
      %s60 = sadd.s32 %s59, 1
      %s61 = scalar_select %p58, %s59, %s60
      %p64 = pneg %p58
      %p65 = scmp.eq.s32.totalorder %s23, 1
      %p66 = por %p64, %p65
      %p67 = scmp.ne.s32.totalorder %s59, %s62
      %p68 = scmp.eq.s32.totalorder %s23, 0
      %p69 = por %p67, %p68
      %p70 = scmp.ne.s32.totalorder %s59, %s62
      %p71 = scmp.eq.s32.totalorder %s28, 1
      %p72 = por %p70, %p71
      %p73 = scmp.ne.s32.totalorder %s62, %s63
      %p74 = scmp.eq.s32.totalorder %s28, 0
      %p75 = por %p73, %p74
      %p76 = scmp.ne.s32.totalorder %s62, %s63
      %p77 = scmp.eq.s32.totalorder %s29, 1
      %p78 = por %p76, %p77
      %p80 = scmp.ne.s32.totalorder %s63, %s79
      %p81 = scmp.eq.s32.totalorder %s29, 0
      %p82 = por %p80, %p81
      %s84 = sadd.s32 %s83, 1
      %p87 = scmp.eq.s32.totalorder %s23, 1
      %p88 = scmp.ne.s32.totalorder %s83, %s85
      %p89 = scmp.eq.s32.totalorder %s23, 0
      %p90 = por %p88, %p89
      %p91 = scmp.ne.s32.totalorder %s83, %s85
      %p92 = scmp.eq.s32.totalorder %s28, 1
      %p93 = por %p91, %p92
      %p94 = scmp.ne.s32.totalorder %s85, %s86
      %p95 = scmp.eq.s32.totalorder %s28, 0
      %p96 = por %p94, %p95
      %p97 = scmp.ne.s32.totalorder %s85, %s86
      %p98 = scmp.eq.s32.totalorder %s29, 1
      %p99 = por %p97, %p98
      %p101 = scmp.ne.s32.totalorder %s86, %s100
      %p102 = scmp.eq.s32.totalorder %s29, 0
      %p103 = por %p101, %p102
      %s105 = sadd.s32 %s104, 1
      %p108 = scmp.eq.s32.totalorder %s23, 1
      %p109 = scmp.ne.s32.totalorder %s104, %s106
      %p110 = scmp.eq.s32.totalorder %s23, 0
      %p111 = por %p109, %p110
      %p112 = scmp.ne.s32.totalorder %s104, %s106
      %p113 = scmp.eq.s32.totalorder %s28, 1
      %p114 = por %p112, %p113
      %p115 = scmp.ne.s32.totalorder %s106, %s107
      %p116 = scmp.eq.s32.totalorder %s28, 0
      %p117 = por %p115, %p116
      %p118 = scmp.ne.s32.totalorder %s106, %s107
      %p119 = scmp.eq.s32.totalorder %s29, 1
      %p120 = por %p118, %p119
      %p122 = scmp.ne.s32.totalorder %s107, %s121
      %p123 = scmp.eq.s32.totalorder %s29, 0
      %p124 = por %p122, %p123
      %s126 = sadd.s32 %s125, 1
      %p129 = scmp.eq.s32.totalorder %s23, 1
      %p130 = scmp.ne.s32.totalorder %s125, %s127
      %p131 = scmp.eq.s32.totalorder %s23, 0
      %p132 = por %p130, %p131
      %p133 = scmp.ne.s32.totalorder %s125, %s127
      %p134 = scmp.eq.s32.totalorder %s28, 1
      %p135 = por %p133, %p134
      %p136 = scmp.ne.s32.totalorder %s127, %s128
      %p137 = scmp.eq.s32.totalorder %s28, 0
      %p138 = por %p136, %p137
      %p139 = scmp.ne.s32.totalorder %s127, %s128
      %p140 = scmp.eq.s32.totalorder %s29, 1
      %p141 = por %p139, %p140
      %p143 = scmp.ne.s32.totalorder %s128, %s142
      %p144 = scmp.eq.s32.totalorder %s29, 0
      %p145 = por %p143, %p144
      %s147 = sadd.s32 %s146, 1
      %p150 = scmp.eq.s32.totalorder %s23, 1
      %p151 = scmp.ne.s32.totalorder %s146, %s148
      %p152 = scmp.eq.s32.totalorder %s23, 0
      %p153 = por %p151, %p152
      %p154 = scmp.ne.s32.totalorder %s146, %s148
      %p155 = scmp.eq.s32.totalorder %s28, 1
      %p156 = por %p154, %p155
      %p157 = scmp.ne.s32.totalorder %s148, %s149
      %p158 = scmp.eq.s32.totalorder %s28, 0
      %p159 = por %p157, %p158
      %p160 = scmp.ne.s32.totalorder %s148, %s149
      %p161 = scmp.eq.s32.totalorder %s29, 1
      %p162 = por %p160, %p161
      %p164 = scmp.ne.s32.totalorder %s149, %s163
      %p165 = scmp.eq.s32.totalorder %s29, 0
      %p166 = por %p164, %p165
      %s168 = sadd.s32 %s167, 1
      %p171 = scmp.eq.s32.totalorder %s23, 1
      %p172 = scmp.ne.s32.totalorder %s167, %s169
      %p173 = scmp.eq.s32.totalorder %s23, 0
      %p174 = por %p172, %p173
      %p175 = scmp.ne.s32.totalorder %s167, %s169
      %p176 = scmp.eq.s32.totalorder %s28, 1
      %p177 = por %p175, %p176
      %p178 = scmp.ne.s32.totalorder %s169, %s170
      %p179 = scmp.eq.s32.totalorder %s28, 0
      %p180 = por %p178, %p179
      %p181 = scmp.ne.s32.totalorder %s169, %s170
      %p182 = scmp.eq.s32.totalorder %s29, 1
      %p183 = por %p181, %p182
      %p185 = scmp.ne.s32.totalorder %s170, %s184
      %p186 = scmp.eq.s32.totalorder %s29, 0
      %p187 = por %p185, %p186
      %s189 = sadd.s32 %s188, 1
      %p192 = scmp.eq.s32.totalorder %s23, 1
      %p193 = scmp.ne.s32.totalorder %s188, %s190
      %p194 = scmp.eq.s32.totalorder %s23, 0
      %p195 = por %p193, %p194
      %p196 = scmp.ne.s32.totalorder %s188, %s190
      %p197 = scmp.eq.s32.totalorder %s28, 1
      %p198 = por %p196, %p197
      %p199 = scmp.ne.s32.totalorder %s190, %s191
      %p200 = scmp.eq.s32.totalorder %s28, 0
      %p201 = por %p199, %p200
      %p202 = scmp.ne.s32.totalorder %s190, %s191
      %p203 = scmp.eq.s32.totalorder %s29, 1
      %p204 = por %p202, %p203
      %p206 = scmp.ne.s32.totalorder %s191, %s205
      %p207 = scmp.eq.s32.totalorder %s29, 0
      %p208 = por %p206, %p207
      %s210 = sadd.s32 %s209, 1
      %p213 = scmp.eq.s32.totalorder %s23, 1
      %p214 = scmp.ne.s32.totalorder %s209, %s211
      %p215 = scmp.eq.s32.totalorder %s23, 0
      %p216 = por %p214, %p215
      %p217 = scmp.ne.s32.totalorder %s209, %s211
      %p218 = scmp.eq.s32.totalorder %s28, 1
      %p219 = por %p217, %p218
      %p220 = scmp.ne.s32.totalorder %s211, %s212
      %p221 = scmp.eq.s32.totalorder %s28, 0
      %p222 = por %p220, %p221
      %p223 = scmp.ne.s32.totalorder %s211, %s212
      %p224 = scmp.eq.s32.totalorder %s29, 1
      %p225 = por %p223, %p224
      %p227 = scmp.ne.s32.totalorder %s212, %s226
      %p228 = scmp.eq.s32.totalorder %s29, 0
      %p229 = por %p227, %p228
      %s231 = sadd.s32 %s230, 1
      %p234 = scmp.eq.s32.totalorder %s23, 1
      %p235 = scmp.ne.s32.totalorder %s230, %s232
      %p236 = scmp.eq.s32.totalorder %s23, 0
      %p237 = por %p235, %p236
      %p238 = scmp.ne.s32.totalorder %s230, %s232
      %p239 = scmp.eq.s32.totalorder %s28, 1
      %p240 = por %p238, %p239
      %p241 = scmp.ne.s32.totalorder %s232, %s233
      %p242 = scmp.eq.s32.totalorder %s28, 0
      %p243 = por %p241, %p242
      %p244 = scmp.ne.s32.totalorder %s232, %s233
      %p245 = scmp.eq.s32.totalorder %s29, 1
      %p246 = por %p244, %p245
      %p248 = scmp.ne.s32.totalorder %s233, %s247
      %p249 = scmp.eq.s32.totalorder %s29, 0
      %p250 = por %p248, %p249
      %s252 = sadd.s32 %s251, 1
      %p255 = scmp.eq.s32.totalorder %s23, 1
      %p256 = scmp.ne.s32.totalorder %s251, %s253
      %p257 = scmp.eq.s32.totalorder %s23, 0
      %p258 = por %p256, %p257
      %p259 = scmp.ne.s32.totalorder %s251, %s253
      %p260 = scmp.eq.s32.totalorder %s28, 1
      %p261 = por %p259, %p260
      %p262 = scmp.ne.s32.totalorder %s253, %s254
      %p263 = scmp.eq.s32.totalorder %s28, 0
      %p264 = por %p262, %p263
      %p265 = scmp.ne.s32.totalorder %s253, %s254
      %p266 = scmp.eq.s32.totalorder %s29, 1
      %p267 = por %p265, %p266
      %p269 = scmp.ne.s32.totalorder %s254, %s268
      %p270 = scmp.eq.s32.totalorder %s29, 0
      %p271 = por %p269, %p270
      %s273 = sadd.s32 %s272, 1
      %p276 = scmp.eq.s32.totalorder %s23, 1
      %p277 = scmp.ne.s32.totalorder %s272, %s274
      %p278 = scmp.eq.s32.totalorder %s23, 0
      %p279 = por %p277, %p278
      %p280 = scmp.ne.s32.totalorder %s272, %s274
      %p281 = scmp.eq.s32.totalorder %s28, 1
      %p282 = por %p280, %p281
      %p283 = scmp.ne.s32.totalorder %s274, %s275
      %p284 = scmp.eq.s32.totalorder %s28, 0
      %p285 = por %p283, %p284
      %p286 = scmp.ne.s32.totalorder %s274, %s275
      %p287 = scmp.eq.s32.totalorder %s29, 1
      %p288 = por %p286, %p287
      %p290 = scmp.ne.s32.totalorder %s275, %s289
      %p291 = scmp.eq.s32.totalorder %s29, 0
      %p292 = por %p290, %p291
      %s294 = sadd.s32 %s293, 1
      %p297 = scmp.eq.s32.totalorder %s23, 1
      %p298 = scmp.ne.s32.totalorder %s293, %s295
      %p299 = scmp.eq.s32.totalorder %s23, 0
      %p300 = por %p298, %p299
      %p301 = scmp.ne.s32.totalorder %s293, %s295
      %p302 = scmp.eq.s32.totalorder %s28, 1
      %p303 = por %p301, %p302
      %p304 = scmp.ne.s32.totalorder %s295, %s296
      %p305 = scmp.eq.s32.totalorder %s28, 0
      %p306 = por %p304, %p305
      %p307 = scmp.ne.s32.totalorder %s295, %s296
      %p308 = scmp.eq.s32.totalorder %s29, 1
      %p309 = por %p307, %p308
      %p311 = scmp.ne.s32.totalorder %s296, %s310
      %p312 = scmp.eq.s32.totalorder %s29, 0
      %p313 = por %p311, %p312
      %s315 = sadd.s32 %s314, 1
      %p318 = scmp.eq.s32.totalorder %s23, 1
      %p319 = scmp.ne.s32.totalorder %s314, %s316
      %p320 = scmp.eq.s32.totalorder %s23, 0
      %p321 = por %p319, %p320
      %p322 = scmp.ne.s32.totalorder %s314, %s316
      %p323 = scmp.eq.s32.totalorder %s28, 1
      %p324 = por %p322, %p323
      %p325 = scmp.ne.s32.totalorder %s316, %s317
      %p326 = scmp.eq.s32.totalorder %s28, 0
      %p327 = por %p325, %p326
      %p328 = scmp.ne.s32.totalorder %s316, %s317
      %p329 = scmp.eq.s32.totalorder %s29, 1
      %p330 = por %p328, %p329
      %p332 = scmp.ne.s32.totalorder %s317, %s331
      %p333 = scmp.eq.s32.totalorder %s29, 0
      %p334 = por %p332, %p333
      %s335 = ssub.s32 %s23, %s30
      %p336 = scmp.eq.s32.totalorder %s335, 0
      %s338 = sadd.s32 %s337, 1
      %s339 = scalar_select %p336, %s337, %s338
      %p342 = pneg %p336
      %p343 = scmp.eq.s32.totalorder %s23, 1
      %p344 = por %p342, %p343
      %p345 = scmp.ne.s32.totalorder %s337, %s340
      %p346 = scmp.eq.s32.totalorder %s23, 0
      %p347 = por %p345, %p346
      %p348 = scmp.ne.s32.totalorder %s337, %s340
      %p349 = scmp.eq.s32.totalorder %s28, 1
      %p350 = por %p348, %p349
      %p351 = scmp.ne.s32.totalorder %s340, %s341
      %p352 = scmp.eq.s32.totalorder %s28, 0
      %p353 = por %p351, %p352
      %p354 = scmp.ne.s32.totalorder %s340, %s341
      %p355 = scmp.eq.s32.totalorder %s29, 1
      %p356 = por %p354, %p355
      %p358 = scmp.ne.s32.totalorder %s341, %s357
      %p359 = scmp.eq.s32.totalorder %s29, 0
      %p360 = por %p358, %p359
      %p361 = scmp.le.s32.totalorder 1, %s23
      %p362 = scmp.lt.s32.totalorder %s23, 3
      %p363 = pnand %p361, %p362
      %p364 = pneg %p363
      // Predicated region
      $region9: #{tpu_custom_call.1} parent=5 // pred_check
        _
      $region10: #{tpu_custom_call.1} parent=5 // pred_check_branch
        %366 = sbr.rel (%p363) target = $region12
      $region11: #{tpu_custom_call.1} parent=5 // pred_region
        %s367 = ssub.s32 %s23, 1
        // Predicated region
        $region13: #{tpu_custom_call.1} parent=11 // pred_check
          %p368 = pneg %p96
        $region14: #{tpu_custom_call.1} parent=11 // pred_check_branch
          %370 = sbr.rel (%p368) target = $region16
        $region15: #{tpu_custom_call.1} parent=11 // pred_region
          _
        $region16: #{tpu_custom_call.1} parent=11 // pred_fallthru
          _
        // Predicated region
        $region17: #{tpu_custom_call.1} parent=11 // pred_check
          %p371 = pneg %p117
        $region18: #{tpu_custom_call.1} parent=11 // pred_check_branch
          %373 = sbr.rel (%p371) target = $region20
        $region19: #{tpu_custom_call.1} parent=11 // pred_region
          _
        $region20: #{tpu_custom_call.1} parent=11 // pred_fallthru
          _
        // Predicated region
        $region21: #{tpu_custom_call.1} parent=11 // pred_check
          %p374 = pneg %p138
        $region22: #{tpu_custom_call.1} parent=11 // pred_check_branch
          %376 = sbr.rel (%p374) target = $region24
        $region23: #{tpu_custom_call.1} parent=11 // pred_region
          _
        $region24: #{tpu_custom_call.1} parent=11 // pred_fallthru
          _
        // Predicated region
        $region25: #{tpu_custom_call.1} parent=11 // pred_check
          %p377 = pneg %p159
        $region26: #{tpu_custom_call.1} parent=11 // pred_check_branch
          %379 = sbr.rel (%p377) target = $region28
        $region27: #{tpu_custom_call.1} parent=11 // pred_region
          _
        $region28: #{tpu_custom_call.1} parent=11 // pred_fallthru
          _
        // Predicated region
        $region29: #{tpu_custom_call.1} parent=11 // pred_check
          %p380 = pneg %p180
        $region30: #{tpu_custom_call.1} parent=11 // pred_check_branch
          %382 = sbr.rel (%p380) target = $region32
        $region31: #{tpu_custom_call.1} parent=11 // pred_region
          _
        $region32: #{tpu_custom_call.1} parent=11 // pred_fallthru
          _
        // Predicated region
        $region33: #{tpu_custom_call.1} parent=11 // pred_check
          %p383 = pneg %p201
        $region34: #{tpu_custom_call.1} parent=11 // pred_check_branch
          %385 = sbr.rel (%p383) target = $region36
        $region35: #{tpu_custom_call.1} parent=11 // pred_region
          _
        $region36: #{tpu_custom_call.1} parent=11 // pred_fallthru
          _
        // Predicated region
        $region37: #{tpu_custom_call.1} parent=11 // pred_check
          %p386 = pneg %p222
        $region38: #{tpu_custom_call.1} parent=11 // pred_check_branch
          %388 = sbr.rel (%p386) target = $region40
        $region39: #{tpu_custom_call.1} parent=11 // pred_region
          _
        $region40: #{tpu_custom_call.1} parent=11 // pred_fallthru
          _
        // Predicated region
        $region41: #{tpu_custom_call.1} parent=11 // pred_check
          %p389 = pneg %p243
        $region42: #{tpu_custom_call.1} parent=11 // pred_check_branch
          %391 = sbr.rel (%p389) target = $region44
        $region43: #{tpu_custom_call.1} parent=11 // pred_region
          _
        $region44: #{tpu_custom_call.1} parent=11 // pred_fallthru
          _
        // Predicated region
        $region45: #{tpu_custom_call.1} parent=11 // pred_check
          %p392 = pneg %p264
        $region46: #{tpu_custom_call.1} parent=11 // pred_check_branch
          %394 = sbr.rel (%p392) target = $region48
        $region47: #{tpu_custom_call.1} parent=11 // pred_region
          _
        $region48: #{tpu_custom_call.1} parent=11 // pred_fallthru
          _
        // Predicated region
        $region49: #{tpu_custom_call.1} parent=11 // pred_check
          %p395 = pneg %p285
        $region50: #{tpu_custom_call.1} parent=11 // pred_check_branch
          %397 = sbr.rel (%p395) target = $region52
        $region51: #{tpu_custom_call.1} parent=11 // pred_region
          _
        $region52: #{tpu_custom_call.1} parent=11 // pred_fallthru
          _
        // Predicated region
        $region53: #{tpu_custom_call.1} parent=11 // pred_check
          %p398 = pneg %p306
        $region54: #{tpu_custom_call.1} parent=11 // pred_check_branch
          %400 = sbr.rel (%p398) target = $region56
        $region55: #{tpu_custom_call.1} parent=11 // pred_region
          _
        $region56: #{tpu_custom_call.1} parent=11 // pred_fallthru
          _
        // Predicated region
        $region57: #{tpu_custom_call.1} parent=11 // pred_check
          %p401 = pneg %p327
        $region58: #{tpu_custom_call.1} parent=11 // pred_check_branch
          %403 = sbr.rel (%p401) target = $region60
        $region59: #{tpu_custom_call.1} parent=11 // pred_region
          _
        $region60: #{tpu_custom_call.1} parent=11 // pred_fallthru
          _
      $region12: #{tpu_custom_call.1} parent=5 // pred_fallthru
        _
      %p404 = scmp.lt.s32.totalorder %s23, 2
      // Predicated region
      $region61: #{tpu_custom_call.1} parent=5 // pred_check
        %p405 = pneg %p404
      $region62: #{tpu_custom_call.1} parent=5 // pred_check_branch
        %407 = sbr.rel (%p405) target = $region64
      $region63: #{tpu_custom_call.1} parent=5 // pred_region
        // Predicated region
        $region65: #{tpu_custom_call.1} parent=63 // pred_check
          %p408 = pneg %p43
        $region66: #{tpu_custom_call.1} parent=63 // pred_check_branch
          %410 = sbr.rel (%p408) target = $region68
        $region67: #{tpu_custom_call.1} parent=63 // pred_region
          %p411 = scmp.lt.s32.totalorder %s23, 1
          %s412 = scalar_select %p411, %s23, 1
          %s413 = smul.addr %s412, 8
          %s414 = scalar_lea.vmem %s0, %s413
        $region68: #{tpu_custom_call.1} parent=63 // pred_fallthru
          _
        // Predicated region
        $region69: #{tpu_custom_call.1} parent=63 // pred_check
          %p415 = pneg %p69
        $region70: #{tpu_custom_call.1} parent=63 // pred_check_branch
          %417 = sbr.rel (%p415) target = $region72
        $region71: #{tpu_custom_call.1} parent=63 // pred_region
          %p418 = scmp.lt.s32.totalorder %s23, 1
          %s419 = scalar_select %p418, %s23, 1
          %s420 = scalar_lea.vmem %s1, %s419
        $region72: #{tpu_custom_call.1} parent=63 // pred_fallthru
          _
      $region64: #{tpu_custom_call.1} parent=5 // pred_fallthru
        _
      %p421 = scmp.le.s32.totalorder 1, %s23
      %p422 = scmp.lt.s32.totalorder %s23, 3
      %p423 = pnand %p421, %p422
      %p424 = pneg %p423
      // Predicated region
      $region73: #{tpu_custom_call.1} parent=5 // pred_check
        _
      $region74: #{tpu_custom_call.1} parent=5 // pred_check_branch
        %426 = sbr.rel (%p423) target = $region76
      $region75: #{tpu_custom_call.1} parent=5 // pred_region
        %s427 = ssub.s32 %s23, 1
        %p428 = scmp.lt.s32.totalorder %s28, 1
        %s429 = scalar_select %p428, %s28, 1
        %s430 = smul.addr %s429, 8
        %s431 = scalar_lea.vmem %s0, %s430
        %p432 = pneg %p49
        %p433 = pneg %p46
        %p434 = scmp.lt.s32.totalorder %s28, 1
        %s435 = scalar_select %p434, %s28, 1
        %s436 = scalar_lea.vmem %s1, %s435
        %p437 = pneg %p75
        %p438 = pneg %p72
        %p439 = pneg %p96
        %p440 = pneg %p93
        %p441 = pneg %p117
        %p442 = pneg %p114
        %p443 = pneg %p138
        %p444 = pneg %p135
        %p445 = pneg %p159
        %p446 = pneg %p156
        %p447 = pneg %p180
        %p448 = pneg %p177
        %p449 = pneg %p201
        %p450 = pneg %p198
        %p451 = pneg %p222
        %p452 = pneg %p219
        %p453 = pneg %p243
        %p454 = pneg %p240
        %p455 = pneg %p264
        %p456 = pneg %p261
        %p457 = pneg %p285
        %p458 = pneg %p282
        %p459 = pneg %p306
        %p460 = pneg %p303
        %p461 = pneg %p327
        %p462 = pneg %p324
        %p463 = pneg %p353
        %p464 = pneg %p350
        %s465 = sand.u32 %s340, 1
        %s466 = scalar_lea.sflag [#allocation3], %s465
        %s467 = sand.u32 %s340, 1
        %s468 = smul.addr %s467, 8
        %s469 = scalar_lea.vmem [#allocation2], %s468
        %p470 = scmp.lt.s32.totalorder %s28, 1
        %s471 = scalar_select %p470, %s28, 1
        %s472 = smul.addr %s471, 8
        %s473 = scalar_lea.vmem %s0, %s472
        %p474 = scmp.lt.s32.totalorder %s28, 1
        %s475 = scalar_select %p474, %s28, 1
        %s476 = scalar_lea.vmem %s1, %s475
        %v478 = vld [vmem:[%s473] sm:$0xff]
        %v479 = vld [vmem:[%s476] sm:$0x1]
        %v480 = vld [vmem:[%s2] sm:$0x1]
        %v481 = vld [vmem:[%s3] sm:$0x1]
        %vm482 = vcmask 261120
        %v483 = vsel %vm482, %v478, 0.0
        %484 = vadd.xlane.f32.xlu0 %v483
        %v485 = vpop.xlane.xlu0 %484
        %v486 = vrcp.pop 32.0
        %v487 = vmul.f32 %v485, %v486
        %v488 = vsub.f32 %v478, %v487
        %v489 = vmul.f32 %v488, %v488
        %v490 = vsel %vm482, %v489, 0.0
        %491 = vadd.xlane.f32.xlu0 %v490
        %v492 = vpop.xlane.xlu0 %491
        %v493 = vmul.f32 %v492, 0.032258064
        %v494 = vrsqrt.pop %v493
        %v495 = vmul.f32 %v493, %v494
        %vm496 = vcmp.eq.f32.partialorder %v493, inf
        %v497 = vsel %vm496, %v493, %v495
        %vm498 = vcmp.eq.f32.partialorder %v493, 0.0
        %v499 = vand.u32 %v493, 2147483648
        %v500 = vsel %vm498, %v499, %v497
        %v501 = vadd.f32 %v500, 1e-06
        %v502 = vrcp.pop %v501
        %v504 = vlaneseq
        %v505 = vshrl.u32 %v504, 7
        %v506 = vsub.s32 0, %v505
        %v507 = vrot.slane %v480, %v506
        %v509 = vmul.f32 %v507, %v488
        %v510 = vmul.f32 %v509, %v502
        %v512 = vlaneseq
        %v513 = vshrl.u32 %v512, 7
        %v514 = vsub.s32 0, %v513
        %v515 = vrot.slane %v481, %v514
        %v517 = vadd.f32 %v510, %v515
        %v518 = vpack.c.bf16 %v517, %v517
        %v519 = vld [vmem:[%s4] sm:$0xf]
        %v520 = vld [vmem:[%s4 + $0x4] sm:$0xf]
        %v521 = vld [vmem:[%s4 + $0x8] sm:$0xf]
        %v522 = vld [vmem:[%s4 + $0xc] sm:$0xf]
        %v523 = vld [vmem:[%s5] sm:$0x1]
        %v525 = vlaneseq
        %v526 = vshrl.u32 %v525, 7
        %v527 = vsub.s32 0, %v526
        %v528 = vrot.slane %v523, %v527
        %v534 = vunpack.c.l.b16 %v519
        %v535 = vunpack.c.l.b16 %v520
        %v536 = vunpack.c.l.b16 %v521
        %v537 = vunpack.c.l.b16 %v522
        %v538 = vpack.c.b16 %v535, %v534
        %v539 = vpack.c.b16 %v537, %v536
        %v543 = vsel %vm482, %v518, 0
        %545 = vmatprep.subr.bf16.mxu0 0
        %546 = vmatpush1.bf16.msra.mxu0 %v538
        %547 = vmatprep.subr.bf16.mxu0 0
        %548 = vmatpush1.bf16.msra.mxu0 %v539
        %549 = vmatprep.subr.bf16.mxu0 0
        %550 = vmatpush1.bf16.msra.mxu0 0
        %551 = vmatprep.subr.bf16.mxu0 0
        %552 = vmatpush1.bf16.msra.mxu0 0
        %553 = vmatprep.subr.bf16.mxu0 0
        %554 = vmatpush1.bf16.msra.mxu0 0
        %555 = vmatprep.subr.bf16.mxu0 0
        %556 = vmatpush1.bf16.msra.mxu0 0
        %557 = vmatprep.subr.bf16.mxu0 0
        %558 = vmatpush1.bf16.msra.mxu0 0
        %559 = vmatprep.subr.bf16.mxu0 0
        %560 = vmatpush1.bf16.msra.mxu0 0
        %561 = vmatprep.subr.bf16.mxu0 0
        %562 = vmatpush1.bf16.msra.mxu0 0
        %563 = vmatprep.subr.bf16.mxu0 0
        %564 = vmatpush1.bf16.msra.mxu0 0
        %565 = vmatprep.subr.bf16.mxu0 0
        %566 = vmatpush1.bf16.msra.mxu0 0
        %567 = vmatprep.subr.bf16.mxu0 0
        %568 = vmatpush1.bf16.msra.mxu0 0
        %569 = vmatprep.subr.bf16.mxu0 0
        %570 = vmatpush1.bf16.msra.mxu0 0
        %571 = vmatprep.subr.bf16.mxu0 0
        %572 = vmatpush1.bf16.msra.mxu0 0
        %573 = vmatprep.subr.bf16.mxu0 0
        %574 = vmatpush1.bf16.msra.mxu0 0
        %575 = vmatprep.subr.bf16.mxu0 0
        %576 = vmatpush1.bf16.msra.mxu0 0
        %577 = vmatprep.mubr.bf16.mxu0 0
        %578 = vmatmul.mubr.bf16.gmra.mrb[0].mxu0 %v543
        %v579 = vpop.f32.mrb[0].mxu0
        %v580 = vadd.f32 %v528, %v579
        %v581 = vpop.f32.mrb[0].mxu0
        %v582 = vpop.f32.mrb[0].mxu0
        %v583 = vpop.f32.mrb[0].mxu0
        %584 = vdwg.mxu0
        %vm585 = vcmp.eq.f32.partialorder %v479, 0.0
        %v586 = vsel %vm585, -1e+09, 0.0
        %v587 = vmul.f32 %v580, 0.35355338
        %v588 = vpack.c.bf16 %v587, %v587
        %v589 = vpack.c.bf16 %v580, %v580
        %v591 = vlaneseq
        %v592 = vshrl.u32 %v591, 7
        %v593 = vsub.s32 0, %v592
        %v594 = vrot.slane %v586, %v593
        %597 = vrot.lane.b32.xlu0 %v589, 96
        %v598 = vpop.permute.xlu0 %597
        %vm599 = vcmask 64512
        %v601 = vsel %vm599, %v588, 0
        %v604 = vsel %vm599, %v598, 0
        %606 = vmatprep.subr.bf16.mxu0 0
        %607 = vmatpush1.bf16.xpose.msra.mxu0 %v604
        %608 = vmatprep.subr.bf16.mxu0 0
        %609 = vmatpush1.bf16.xpose.msra.mxu0 0
        %610 = vmatprep.subr.bf16.mxu0 0
        %611 = vmatpush1.bf16.xpose.msra.mxu0 0
        %612 = vmatprep.subr.bf16.mxu0 0
        %613 = vmatpush1.bf16.xpose.msra.mxu0 0
        %614 = vmatprep.subr.bf16.mxu0 0
        %615 = vmatpush1.bf16.xpose.msra.mxu0 0
        %616 = vmatprep.subr.bf16.mxu0 0
        %617 = vmatpush1.bf16.xpose.msra.mxu0 0
        %618 = vmatprep.subr.bf16.mxu0 0
        %619 = vmatpush1.bf16.xpose.msra.mxu0 0
        %620 = vmatprep.subr.bf16.mxu0 0
        %621 = vmatpush1.bf16.xpose.msra.mxu0 0
        %622 = vmatprep.subr.bf16.mxu0 0
        %623 = vmatpush1.bf16.xpose.msra.mxu0 0
        %624 = vmatprep.subr.bf16.mxu0 0
        %625 = vmatpush1.bf16.xpose.msra.mxu0 0
        %626 = vmatprep.subr.bf16.mxu0 0
        %627 = vmatpush1.bf16.xpose.msra.mxu0 0
        %628 = vmatprep.subr.bf16.mxu0 0
        %629 = vmatpush1.bf16.xpose.msra.mxu0 0
        %630 = vmatprep.subr.bf16.mxu0 0
        %631 = vmatpush1.bf16.xpose.msra.mxu0 0
        %632 = vmatprep.subr.bf16.mxu0 0
        %633 = vmatpush1.bf16.xpose.msra.mxu0 0
        %634 = vmatprep.subr.bf16.mxu0 0
        %635 = vmatpush1.bf16.xpose.msra.mxu0 0
        %636 = vmatprep.subr.bf16.mxu0 0
        %637 = vmatpush1.bf16.xpose.msra.mxu0 0
        %638 = vmatprep.mubr.bf16.mxu0 0
        %639 = vmatmul.mubr.bf16.gmra.mrb[0].mxu0 %v601
        %v640 = vpop.f32.mrb[0].mxu0
        %v641 = vadd.f32 %v594, %v640
        %v642 = vpop.f32.mrb[0].mxu0
        %v643 = vpop.f32.mrb[0].mxu0
        %v644 = vpop.f32.mrb[0].mxu0
        %645 = vdwg.mxu0
        %v646 = vsel %vm599, %v641, -inf
        %647 = vmax.xlane.f32.xlu0 %v646
        %v648 = vpop.xlane.xlu0 %647
        %v649 = vsub.f32 %v641, %v648
        %v650 = vmul.f32 %v649, 1.442695
        %v651 = vpow.pop %v650
        %v652 = vsel %vm599, %v651, 0.0
        %653 = vadd.xlane.f32.xlu0 %v652
        %v654 = vpop.xlane.xlu0 %653
        %v655 = vrcp.pop %v654
        %v656 = vmul.f32 %v651, %v655
        %v657 = vpack.c.bf16 %v656, %v656
        %658 = vrot.lane.b32.xlu0 %v589, 64
        %v659 = vpop.permute.xlu0 %658
        %v661 = vsel %vm599, %v657, 0
        %vm663 = vcmask 1043456
        %v665 = vsel %vm663, %v659, 0
        %667 = vmatprep.subr.bf16.mxu0 0
        %668 = vmatpush1.bf16.msra.mxu0 %v665
        %669 = vmatprep.subr.bf16.mxu0 0
        %670 = vmatpush1.bf16.msra.mxu0 0
        %671 = vmatprep.subr.bf16.mxu0 0
        %672 = vmatpush1.bf16.msra.mxu0 0
        %673 = vmatprep.subr.bf16.mxu0 0
        %674 = vmatpush1.bf16.msra.mxu0 0
        %675 = vmatprep.subr.bf16.mxu0 0
        %676 = vmatpush1.bf16.msra.mxu0 0
        %677 = vmatprep.subr.bf16.mxu0 0
        %678 = vmatpush1.bf16.msra.mxu0 0
        %679 = vmatprep.subr.bf16.mxu0 0
        %680 = vmatpush1.bf16.msra.mxu0 0
        %681 = vmatprep.subr.bf16.mxu0 0
        %682 = vmatpush1.bf16.msra.mxu0 0
        %683 = vmatprep.subr.bf16.mxu0 0
        %684 = vmatpush1.bf16.msra.mxu0 0
        %685 = vmatprep.subr.bf16.mxu0 0
        %686 = vmatpush1.bf16.msra.mxu0 0
        %687 = vmatprep.subr.bf16.mxu0 0
        %688 = vmatpush1.bf16.msra.mxu0 0
        %689 = vmatprep.subr.bf16.mxu0 0
        %690 = vmatpush1.bf16.msra.mxu0 0
        %691 = vmatprep.subr.bf16.mxu0 0
        %692 = vmatpush1.bf16.msra.mxu0 0
        %693 = vmatprep.subr.bf16.mxu0 0
        %694 = vmatpush1.bf16.msra.mxu0 0
        %695 = vmatprep.subr.bf16.mxu0 0
        %696 = vmatpush1.bf16.msra.mxu0 0
        %697 = vmatprep.subr.bf16.mxu0 0
        %698 = vmatpush1.bf16.msra.mxu0 0
        %699 = vmatprep.mubr.bf16.mxu0 0
        %700 = vmatmul.mubr.bf16.gmra.mrb[0].mxu0 %v661
        %v701 = vpop.f32.mrb[0].mxu0
        %v702 = vadd.f32 0.0, %v701
        %v703 = vpop.f32.mrb[0].mxu0
        %v704 = vpop.f32.mrb[0].mxu0
        %v705 = vpop.f32.mrb[0].mxu0
        %706 = vdwg.mxu0
        %v707 = vpack.c.bf16 %v702, %v702
        %v708 = vld [vmem:[%s6] sm:$0xf]
        %710 = vrot.lane.b32.xlu0 %v588, 120
        %v711 = vpop.permute.xlu0 %710
        %712 = vrot.lane.b32.xlu0 %v589, 88
        %v713 = vpop.permute.xlu0 %712
        %v715 = vsel %vm599, %v711, 0
        %v718 = vsel %vm599, %v713, 0
        %720 = vmatprep.subr.bf16.mxu0 0
        %721 = vmatpush1.bf16.xpose.msra.mxu0 %v718
        %722 = vmatprep.subr.bf16.mxu0 0
        %723 = vmatpush1.bf16.xpose.msra.mxu0 0
        %724 = vmatprep.subr.bf16.mxu0 0
        %725 = vmatpush1.bf16.xpose.msra.mxu0 0
        %726 = vmatprep.subr.bf16.mxu0 0
        %727 = vmatpush1.bf16.xpose.msra.mxu0 0
        %728 = vmatprep.subr.bf16.mxu0 0
        %729 = vmatpush1.bf16.xpose.msra.mxu0 0
        %730 = vmatprep.subr.bf16.mxu0 0
        %731 = vmatpush1.bf16.xpose.msra.mxu0 0
        %732 = vmatprep.subr.bf16.mxu0 0
        %733 = vmatpush1.bf16.xpose.msra.mxu0 0
        %734 = vmatprep.subr.bf16.mxu0 0
        %735 = vmatpush1.bf16.xpose.msra.mxu0 0
        %736 = vmatprep.subr.bf16.mxu0 0
        %737 = vmatpush1.bf16.xpose.msra.mxu0 0
        %738 = vmatprep.subr.bf16.mxu0 0
        %739 = vmatpush1.bf16.xpose.msra.mxu0 0
        %740 = vmatprep.subr.bf16.mxu0 0
        %741 = vmatpush1.bf16.xpose.msra.mxu0 0
        %742 = vmatprep.subr.bf16.mxu0 0
        %743 = vmatpush1.bf16.xpose.msra.mxu0 0
        %744 = vmatprep.subr.bf16.mxu0 0
        %745 = vmatpush1.bf16.xpose.msra.mxu0 0
        %746 = vmatprep.subr.bf16.mxu0 0
        %747 = vmatpush1.bf16.xpose.msra.mxu0 0
        %748 = vmatprep.subr.bf16.mxu0 0
        %749 = vmatpush1.bf16.xpose.msra.mxu0 0
        %750 = vmatprep.subr.bf16.mxu0 0
        %751 = vmatpush1.bf16.xpose.msra.mxu0 0
        %752 = vmatprep.mubr.bf16.mxu0 0
        %753 = vmatmul.mubr.bf16.gmra.mrb[0].mxu0 %v715
        %v754 = vpop.f32.mrb[0].mxu0
        %v755 = vadd.f32 %v594, %v754
        %v756 = vpop.f32.mrb[0].mxu0
        %v757 = vpop.f32.mrb[0].mxu0
        %v758 = vpop.f32.mrb[0].mxu0
        %759 = vdwg.mxu0
        %v760 = vsel %vm599, %v755, -inf
        %761 = vmax.xlane.f32.xlu0 %v760
        %v762 = vpop.xlane.xlu0 %761
        %v763 = vsub.f32 %v755, %v762
        %v764 = vmul.f32 %v763, 1.442695
        %v765 = vpow.pop %v764
        %v766 = vsel %vm599, %v765, 0.0
        %767 = vadd.xlane.f32.xlu0 %v766
        %v768 = vpop.xlane.xlu0 %767
        %v769 = vrcp.pop %v768
        %v770 = vmul.f32 %v765, %v769
        %v771 = vpack.c.bf16 %v770, %v770
        %772 = vrot.lane.b32.xlu0 %v589, 56
        %v773 = vpop.permute.xlu0 %772
        %v775 = vsel %vm599, %v771, 0
        %v778 = vsel %vm663, %v773, 0
        %780 = vmatprep.subr.bf16.mxu0 0
        %781 = vmatpush1.bf16.msra.mxu0 %v778
        %782 = vmatprep.subr.bf16.mxu0 0
        %783 = vmatpush1.bf16.msra.mxu0 0
        %784 = vmatprep.subr.bf16.mxu0 0
        %785 = vmatpush1.bf16.msra.mxu0 0
        %786 = vmatprep.subr.bf16.mxu0 0
        %787 = vmatpush1.bf16.msra.mxu0 0
        %788 = vmatprep.subr.bf16.mxu0 0
        %789 = vmatpush1.bf16.msra.mxu0 0
        %790 = vmatprep.subr.bf16.mxu0 0
        %791 = vmatpush1.bf16.msra.mxu0 0
        %792 = vmatprep.subr.bf16.mxu0 0
        %793 = vmatpush1.bf16.msra.mxu0 0
        %794 = vmatprep.subr.bf16.mxu0 0
        %795 = vmatpush1.bf16.msra.mxu0 0
        %796 = vmatprep.subr.bf16.mxu0 0
        %797 = vmatpush1.bf16.msra.mxu0 0
        %798 = vmatprep.subr.bf16.mxu0 0
        %799 = vmatpush1.bf16.msra.mxu0 0
        %800 = vmatprep.subr.bf16.mxu0 0
        %801 = vmatpush1.bf16.msra.mxu0 0
        %802 = vmatprep.subr.bf16.mxu0 0
        %803 = vmatpush1.bf16.msra.mxu0 0
        %804 = vmatprep.subr.bf16.mxu0 0
        %805 = vmatpush1.bf16.msra.mxu0 0
        %806 = vmatprep.subr.bf16.mxu0 0
        %807 = vmatpush1.bf16.msra.mxu0 0
        %808 = vmatprep.subr.bf16.mxu0 0
        %809 = vmatpush1.bf16.msra.mxu0 0
        %810 = vmatprep.subr.bf16.mxu0 0
        %811 = vmatpush1.bf16.msra.mxu0 0
        %812 = vmatprep.mubr.bf16.mxu0 0
        %813 = vmatmul.mubr.bf16.gmra.mrb[0].mxu0 %v775
        %v814 = vpop.f32.mrb[0].mxu0
        %v815 = vadd.f32 0.0, %v814
        %v816 = vpop.f32.mrb[0].mxu0
        %v817 = vpop.f32.mrb[0].mxu0
        %v818 = vpop.f32.mrb[0].mxu0
        %819 = vdwg.mxu0
        %v820 = vpack.c.bf16 %v815, %v815
        %v821 = vld [vmem:[%s6 + $0x4] sm:$0xf]
        %v823 = vsel %vm599, %v820, 0
        %v826 = vsel %vm663, %v821, 0
        %828 = vmatprep.subr.bf16.mxu0 0
        %829 = vmatpush1.bf16.msra.mxu0 %v826
        %830 = vmatprep.subr.bf16.mxu0 0
        %831 = vmatpush1.bf16.msra.mxu0 0
        %832 = vmatprep.subr.bf16.mxu0 0
        %833 = vmatpush1.bf16.msra.mxu0 0
        %834 = vmatprep.subr.bf16.mxu0 0
        %835 = vmatpush1.bf16.msra.mxu0 0
        %836 = vmatprep.subr.bf16.mxu0 0
        %837 = vmatpush1.bf16.msra.mxu0 0
        %838 = vmatprep.subr.bf16.mxu0 0
        %839 = vmatpush1.bf16.msra.mxu0 0
        %840 = vmatprep.subr.bf16.mxu0 0
        %841 = vmatpush1.bf16.msra.mxu0 0
        %842 = vmatprep.subr.bf16.mxu0 0
        %843 = vmatpush1.bf16.msra.mxu0 0
        %844 = vmatprep.subr.bf16.mxu0 0
        %845 = vmatpush1.bf16.msra.mxu0 0
        %846 = vmatprep.subr.bf16.mxu0 0
        %847 = vmatpush1.bf16.msra.mxu0 0
        %848 = vmatprep.subr.bf16.mxu0 0
        %849 = vmatpush1.bf16.msra.mxu0 0
        %850 = vmatprep.subr.bf16.mxu0 0
        %851 = vmatpush1.bf16.msra.mxu0 0
        %852 = vmatprep.subr.bf16.mxu0 0
        %853 = vmatpush1.bf16.msra.mxu0 0
        %854 = vmatprep.subr.bf16.mxu0 0
        %855 = vmatpush1.bf16.msra.mxu0 0
        %856 = vmatprep.subr.bf16.mxu0 0
        %857 = vmatpush1.bf16.msra.mxu0 0
        %858 = vmatprep.subr.bf16.mxu0 0
        %859 = vmatpush1.bf16.msra.mxu0 0
        %860 = vmatprep.mubr.bf16.mxu0 0
        %861 = vmatmul.mubr.bf16.gmra.mrb[0].mxu0 %v823
        %v862 = vpop.f32.mrb[0].mxu0
        %v863 = vadd.f32 0.0, %v862
        %v864 = vpop.f32.mrb[0].mxu0
        %v865 = vpop.f32.mrb[0].mxu0
        %v866 = vpop.f32.mrb[0].mxu0
        %867 = vdwg.mxu0
        %v869 = vsel %vm599, %v707, 0
        %v872 = vsel %vm663, %v708, 0
        %874 = vmatprep.subr.bf16.mxu0 0
        %875 = vmatpush1.bf16.msra.mxu0 %v872
        %876 = vmatprep.subr.bf16.mxu0 0
        %877 = vmatpush1.bf16.msra.mxu0 0
        %878 = vmatprep.subr.bf16.mxu0 0
        %879 = vmatpush1.bf16.msra.mxu0 0
        %880 = vmatprep.subr.bf16.mxu0 0
        %881 = vmatpush1.bf16.msra.mxu0 0
        %882 = vmatprep.subr.bf16.mxu0 0
        %883 = vmatpush1.bf16.msra.mxu0 0
        %884 = vmatprep.subr.bf16.mxu0 0
        %885 = vmatpush1.bf16.msra.mxu0 0
        %886 = vmatprep.subr.bf16.mxu0 0
        %887 = vmatpush1.bf16.msra.mxu0 0
        %888 = vmatprep.subr.bf16.mxu0 0
        %889 = vmatpush1.bf16.msra.mxu0 0
        %890 = vmatprep.subr.bf16.mxu0 0
        %891 = vmatpush1.bf16.msra.mxu0 0
        %892 = vmatprep.subr.bf16.mxu0 0
        %893 = vmatpush1.bf16.msra.mxu0 0
        %894 = vmatprep.subr.bf16.mxu0 0
        %895 = vmatpush1.bf16.msra.mxu0 0
        %896 = vmatprep.subr.bf16.mxu0 0
        %897 = vmatpush1.bf16.msra.mxu0 0
        %898 = vmatprep.subr.bf16.mxu0 0
        %899 = vmatpush1.bf16.msra.mxu0 0
        %900 = vmatprep.subr.bf16.mxu0 0
        %901 = vmatpush1.bf16.msra.mxu0 0
        %902 = vmatprep.subr.bf16.mxu0 0
        %903 = vmatpush1.bf16.msra.mxu0 0
        %904 = vmatprep.subr.bf16.mxu0 0
        %905 = vmatpush1.bf16.msra.mxu0 0
        %906 = vmatprep.mubr.bf16.mxu0 0
        %907 = vmatmul.mubr.bf16.gmra.mrb[0].mxu0 %v869
        %v908 = vpop.f32.mrb[0].mxu0
        %v909 = vadd.f32 %v863, %v908
        %v910 = vpop.f32.mrb[0].mxu0
        %v911 = vpop.f32.mrb[0].mxu0
        %v912 = vpop.f32.mrb[0].mxu0
        %913 = vdwg.mxu0
        %914 = vrot.lane.b32.xlu0 %v588, 112
        %v915 = vpop.permute.xlu0 %914
        %916 = vrot.lane.b32.xlu0 %v589, 80
        %v917 = vpop.permute.xlu0 %916
        %v919 = vsel %vm599, %v915, 0
        %v922 = vsel %vm599, %v917, 0
        %924 = vmatprep.subr.bf16.mxu0 0
        %925 = vmatpush1.bf16.xpose.msra.mxu0 %v922
        %926 = vmatprep.subr.bf16.mxu0 0
        %927 = vmatpush1.bf16.xpose.msra.mxu0 0
        %928 = vmatprep.subr.bf16.mxu0 0
        %929 = vmatpush1.bf16.xpose.msra.mxu0 0
        %930 = vmatprep.subr.bf16.mxu0 0
        %931 = vmatpush1.bf16.xpose.msra.mxu0 0
        %932 = vmatprep.subr.bf16.mxu0 0
        %933 = vmatpush1.bf16.xpose.msra.mxu0 0
        %934 = vmatprep.subr.bf16.mxu0 0
        %935 = vmatpush1.bf16.xpose.msra.mxu0 0
        %936 = vmatprep.subr.bf16.mxu0 0
        %937 = vmatpush1.bf16.xpose.msra.mxu0 0
        %938 = vmatprep.subr.bf16.mxu0 0
        %939 = vmatpush1.bf16.xpose.msra.mxu0 0
        %940 = vmatprep.subr.bf16.mxu0 0
        %941 = vmatpush1.bf16.xpose.msra.mxu0 0
        %942 = vmatprep.subr.bf16.mxu0 0
        %943 = vmatpush1.bf16.xpose.msra.mxu0 0
        %944 = vmatprep.subr.bf16.mxu0 0
        %945 = vmatpush1.bf16.xpose.msra.mxu0 0
        %946 = vmatprep.subr.bf16.mxu0 0
        %947 = vmatpush1.bf16.xpose.msra.mxu0 0
        %948 = vmatprep.subr.bf16.mxu0 0
        %949 = vmatpush1.bf16.xpose.msra.mxu0 0
        %950 = vmatprep.subr.bf16.mxu0 0
        %951 = vmatpush1.bf16.xpose.msra.mxu0 0
        %952 = vmatprep.subr.bf16.mxu0 0
        %953 = vmatpush1.bf16.xpose.msra.mxu0 0
        %954 = vmatprep.subr.bf16.mxu0 0
        %955 = vmatpush1.bf16.xpose.msra.mxu0 0
        %956 = vmatprep.mubr.bf16.mxu0 0
        %957 = vmatmul.mubr.bf16.gmra.mrb[0].mxu0 %v919
        %v958 = vpop.f32.mrb[0].mxu0
        %v959 = vadd.f32 %v594, %v958
        %v960 = vpop.f32.mrb[0].mxu0
        %v961 = vpop.f32.mrb[0].mxu0
        %v962 = vpop.f32.mrb[0].mxu0
        %963 = vdwg.mxu0
        %v964 = vsel %vm599, %v959, -inf
        %965 = vmax.xlane.f32.xlu0 %v964
        %v966 = vpop.xlane.xlu0 %965
        %v967 = vsub.f32 %v959, %v966
        %v968 = vmul.f32 %v967, 1.442695
        %v969 = vpow.pop %v968
        %v970 = vsel %vm599, %v969, 0.0
        %971 = vadd.xlane.f32.xlu0 %v970
        %v972 = vpop.xlane.xlu0 %971
        %v973 = vrcp.pop %v972
        %v974 = vmul.f32 %v969, %v973
        %v975 = vpack.c.bf16 %v974, %v974
        %976 = vrot.lane.b32.xlu0 %v589, 48
        %v977 = vpop.permute.xlu0 %976
        %v979 = vsel %vm599, %v975, 0
        %v982 = vsel %vm663, %v977, 0
        %984 = vmatprep.subr.bf16.mxu0 0
        %985 = vmatpush1.bf16.msra.mxu0 %v982
        %986 = vmatprep.subr.bf16.mxu0 0
        %987 = vmatpush1.bf16.msra.mxu0 0
        %988 = vmatprep.subr.bf16.mxu0 0
        %989 = vmatpush1.bf16.msra.mxu0 0
        %990 = vmatprep.subr.bf16.mxu0 0
        %991 = vmatpush1.bf16.msra.mxu0 0
        %992 = vmatprep.subr.bf16.mxu0 0
        %993 = vmatpush1.bf16.msra.mxu0 0
        %994 = vmatprep.subr.bf16.mxu0 0
        %995 = vmatpush1.bf16.msra.mxu0 0
        %996 = vmatprep.subr.bf16.mxu0 0
        %997 = vmatpush1.bf16.msra.mxu0 0
        %998 = vmatprep.subr.bf16.mxu0 0
        %999 = vmatpush1.bf16.msra.mxu0 0
        %1000 = vmatprep.subr.bf16.mxu0 0
        %1001 = vmatpush1.bf16.msra.mxu0 0
        %1002 = vmatprep.subr.bf16.mxu0 0
        %1003 = vmatpush1.bf16.msra.mxu0 0
        %1004 = vmatprep.subr.bf16.mxu0 0
        %1005 = vmatpush1.bf16.msra.mxu0 0
        %1006 = vmatprep.subr.bf16.mxu0 0
        %1007 = vmatpush1.bf16.msra.mxu0 0
        %1008 = vmatprep.subr.bf16.mxu0 0
        %1009 = vmatpush1.bf16.msra.mxu0 0
        %1010 = vmatprep.subr.bf16.mxu0 0
        %1011 = vmatpush1.bf16.msra.mxu0 0
        %1012 = vmatprep.subr.bf16.mxu0 0
        %1013 = vmatpush1.bf16.msra.mxu0 0
        %1014 = vmatprep.subr.bf16.mxu0 0
        %1015 = vmatpush1.bf16.msra.mxu0 0
        %1016 = vmatprep.mubr.bf16.mxu0 0
        %1017 = vmatmul.mubr.bf16.gmra.mrb[0].mxu0 %v979
        %v1018 = vpop.f32.mrb[0].mxu0
        %v1019 = vadd.f32 0.0, %v1018
        %v1020 = vpop.f32.mrb[0].mxu0
        %v1021 = vpop.f32.mrb[0].mxu0
        %v1022 = vpop.f32.mrb[0].mxu0
        %1023 = vdwg.mxu0
        %v1024 = vpack.c.bf16 %v1019, %v1019
        %v1025 = vld [vmem:[%s6 + $0x8] sm:$0xf]
        %v1027 = vsel %vm599, %v1024, 0
        %v1030 = vsel %vm663, %v1025, 0
        %1032 = vmatprep.subr.bf16.mxu0 0
        %1033 = vmatpush1.bf16.msra.mxu0 %v1030
        %1034 = vmatprep.subr.bf16.mxu0 0
        %1035 = vmatpush1.bf16.msra.mxu0 0
        %1036 = vmatprep.subr.bf16.mxu0 0
        %1037 = vmatpush1.bf16.msra.mxu0 0
        %1038 = vmatprep.subr.bf16.mxu0 0
        %1039 = vmatpush1.bf16.msra.mxu0 0
        %1040 = vmatprep.subr.bf16.mxu0 0
        %1041 = vmatpush1.bf16.msra.mxu0 0
        %1042 = vmatprep.subr.bf16.mxu0 0
        %1043 = vmatpush1.bf16.msra.mxu0 0
        %1044 = vmatprep.subr.bf16.mxu0 0
        %1045 = vmatpush1.bf16.msra.mxu0 0
        %1046 = vmatprep.subr.bf16.mxu0 0
        %1047 = vmatpush1.bf16.msra.mxu0 0
        %1048 = vmatprep.subr.bf16.mxu0 0
        %1049 = vmatpush1.bf16.msra.mxu0 0
        %1050 = vmatprep.subr.bf16.mxu0 0
        %1051 = vmatpush1.bf16.msra.mxu0 0
        %1052 = vmatprep.subr.bf16.mxu0 0
        %1053 = vmatpush1.bf16.msra.mxu0 0
        %1054 = vmatprep.subr.bf16.mxu0 0
        %1055 = vmatpush1.bf16.msra.mxu0 0
        %1056 = vmatprep.subr.bf16.mxu0 0
        %1057 = vmatpush1.bf16.msra.mxu0 0
        %1058 = vmatprep.subr.bf16.mxu0 0
        %1059 = vmatpush1.bf16.msra.mxu0 0
        %1060 = vmatprep.subr.bf16.mxu0 0
        %1061 = vmatpush1.bf16.msra.mxu0 0
        %1062 = vmatprep.subr.bf16.mxu0 0
        %1063 = vmatpush1.bf16.msra.mxu0 0
        %1064 = vmatprep.mubr.bf16.mxu0 0
        %1065 = vmatmul.mubr.bf16.gmra.mrb[0].mxu0 %v1027
        %v1066 = vpop.f32.mrb[0].mxu0
        %v1067 = vadd.f32 0.0, %v1066
        %v1068 = vpop.f32.mrb[0].mxu0
        %v1069 = vpop.f32.mrb[0].mxu0
        %v1070 = vpop.f32.mrb[0].mxu0
        %1071 = vdwg.mxu0
        %v1072 = vadd.f32 %v909, %v1067
        %1073 = vrot.lane.b32.xlu0 %v588, 104
        %v1074 = vpop.permute.xlu0 %1073
        %1075 = vrot.lane.b32.xlu0 %v589, 72
        %v1076 = vpop.permute.xlu0 %1075
        %v1078 = vsel %vm599, %v1074, 0
        %v1081 = vsel %vm599, %v1076, 0
        %1083 = vmatprep.subr.bf16.mxu0 0
        %1084 = vmatpush1.bf16.xpose.msra.mxu0 %v1081
        %1085 = vmatprep.subr.bf16.mxu0 0
        %1086 = vmatpush1.bf16.xpose.msra.mxu0 0
        %1087 = vmatprep.subr.bf16.mxu0 0
        %1088 = vmatpush1.bf16.xpose.msra.mxu0 0
        %1089 = vmatprep.subr.bf16.mxu0 0
        %1090 = vmatpush1.bf16.xpose.msra.mxu0 0
        %1091 = vmatprep.subr.bf16.mxu0 0
        %1092 = vmatpush1.bf16.xpose.msra.mxu0 0
        %1093 = vmatprep.subr.bf16.mxu0 0
        %1094 = vmatpush1.bf16.xpose.msra.mxu0 0
        %1095 = vmatprep.subr.bf16.mxu0 0
        %1096 = vmatpush1.bf16.xpose.msra.mxu0 0
        %1097 = vmatprep.subr.bf16.mxu0 0
        %1098 = vmatpush1.bf16.xpose.msra.mxu0 0
        %1099 = vmatprep.subr.bf16.mxu0 0
        %1100 = vmatpush1.bf16.xpose.msra.mxu0 0
        %1101 = vmatprep.subr.bf16.mxu0 0
        %1102 = vmatpush1.bf16.xpose.msra.mxu0 0
        %1103 = vmatprep.subr.bf16.mxu0 0
        %1104 = vmatpush1.bf16.xpose.msra.mxu0 0
        %1105 = vmatprep.subr.bf16.mxu0 0
        %1106 = vmatpush1.bf16.xpose.msra.mxu0 0
        %1107 = vmatprep.subr.bf16.mxu0 0
        %1108 = vmatpush1.bf16.xpose.msra.mxu0 0
        %1109 = vmatprep.subr.bf16.mxu0 0
        %1110 = vmatpush1.bf16.xpose.msra.mxu0 0
        %1111 = vmatprep.subr.bf16.mxu0 0
        %1112 = vmatpush1.bf16.xpose.msra.mxu0 0
        %1113 = vmatprep.subr.bf16.mxu0 0
        %1114 = vmatpush1.bf16.xpose.msra.mxu0 0
        %1115 = vmatprep.mubr.bf16.mxu0 0
        %1116 = vmatmul.mubr.bf16.gmra.mrb[0].mxu0 %v1078
        %v1117 = vpop.f32.mrb[0].mxu0
        %v1118 = vadd.f32 %v594, %v1117
        %v1119 = vpop.f32.mrb[0].mxu0
        %v1120 = vpop.f32.mrb[0].mxu0
        %v1121 = vpop.f32.mrb[0].mxu0
        %1122 = vdwg.mxu0
        %v1123 = vsel %vm599, %v1118, -inf
        %1124 = vmax.xlane.f32.xlu0 %v1123
        %v1125 = vpop.xlane.xlu0 %1124
        %v1126 = vsub.f32 %v1118, %v1125
        %v1127 = vmul.f32 %v1126, 1.442695
        %v1128 = vpow.pop %v1127
        %v1129 = vsel %vm599, %v1128, 0.0
        %1130 = vadd.xlane.f32.xlu0 %v1129
        %v1131 = vpop.xlane.xlu0 %1130
        %v1132 = vrcp.pop %v1131
        %v1133 = vmul.f32 %v1128, %v1132
        %v1134 = vpack.c.bf16 %v1133, %v1133
        %1135 = vrot.lane.b32.xlu0 %v589, 40
        %v1136 = vpop.permute.xlu0 %1135
        %v1138 = vsel %vm599, %v1134, 0
        %v1141 = vsel %vm663, %v1136, 0
        %1143 = vmatprep.subr.bf16.mxu0 0
        %1144 = vmatpush1.bf16.msra.mxu0 %v1141
        %1145 = vmatprep.subr.bf16.mxu0 0
        %1146 = vmatpush1.bf16.msra.mxu0 0
        %1147 = vmatprep.subr.bf16.mxu0 0
        %1148 = vmatpush1.bf16.msra.mxu0 0
        %1149 = vmatprep.subr.bf16.mxu0 0
        %1150 = vmatpush1.bf16.msra.mxu0 0
        %1151 = vmatprep.subr.bf16.mxu0 0
        %1152 = vmatpush1.bf16.msra.mxu0 0
        %1153 = vmatprep.subr.bf16.mxu0 0
        %1154 = vmatpush1.bf16.msra.mxu0 0
        %1155 = vmatprep.subr.bf16.mxu0 0
        %1156 = vmatpush1.bf16.msra.mxu0 0
        %1157 = vmatprep.subr.bf16.mxu0 0
        %1158 = vmatpush1.bf16.msra.mxu0 0
        %1159 = vmatprep.subr.bf16.mxu0 0
        %1160 = vmatpush1.bf16.msra.mxu0 0
        %1161 = vmatprep.subr.bf16.mxu0 0
        %1162 = vmatpush1.bf16.msra.mxu0 0
        %1163 = vmatprep.subr.bf16.mxu0 0
        %1164 = vmatpush1.bf16.msra.mxu0 0
        %1165 = vmatprep.subr.bf16.mxu0 0
        %1166 = vmatpush1.bf16.msra.mxu0 0
        %1167 = vmatprep.subr.bf16.mxu0 0
        %1168 = vmatpush1.bf16.msra.mxu0 0
        %1169 = vmatprep.subr.bf16.mxu0 0
        %1170 = vmatpush1.bf16.msra.mxu0 0
        %1171 = vmatprep.subr.bf16.mxu0 0
        %1172 = vmatpush1.bf16.msra.mxu0 0
        %1173 = vmatprep.subr.bf16.mxu0 0
        %1174 = vmatpush1.bf16.msra.mxu0 0
        %1175 = vmatprep.mubr.bf16.mxu0 0
        %1176 = vmatmul.mubr.bf16.gmra.mrb[0].mxu0 %v1138
        %v1177 = vpop.f32.mrb[0].mxu0
        %v1178 = vadd.f32 0.0, %v1177
        %v1179 = vpop.f32.mrb[0].mxu0
        %v1180 = vpop.f32.mrb[0].mxu0
        %v1181 = vpop.f32.mrb[0].mxu0
        %1182 = vdwg.mxu0
        %v1183 = vpack.c.bf16 %v1178, %v1178
        %v1184 = vld [vmem:[%s6 + $0xc] sm:$0xf]
        %v1186 = vsel %vm599, %v1183, 0
        %v1189 = vsel %vm663, %v1184, 0
        %1191 = vmatprep.subr.bf16.mxu0 0
        %1192 = vmatpush1.bf16.msra.mxu0 %v1189
        %1193 = vmatprep.subr.bf16.mxu0 0
        %1194 = vmatpush1.bf16.msra.mxu0 0
        %1195 = vmatprep.subr.bf16.mxu0 0
        %1196 = vmatpush1.bf16.msra.mxu0 0
        %1197 = vmatprep.subr.bf16.mxu0 0
        %1198 = vmatpush1.bf16.msra.mxu0 0
        %1199 = vmatprep.subr.bf16.mxu0 0
        %1200 = vmatpush1.bf16.msra.mxu0 0
        %1201 = vmatprep.subr.bf16.mxu0 0
        %1202 = vmatpush1.bf16.msra.mxu0 0
        %1203 = vmatprep.subr.bf16.mxu0 0
        %1204 = vmatpush1.bf16.msra.mxu0 0
        %1205 = vmatprep.subr.bf16.mxu0 0
        %1206 = vmatpush1.bf16.msra.mxu0 0
        %1207 = vmatprep.subr.bf16.mxu0 0
        %1208 = vmatpush1.bf16.msra.mxu0 0
        %1209 = vmatprep.subr.bf16.mxu0 0
        %1210 = vmatpush1.bf16.msra.mxu0 0
        %1211 = vmatprep.subr.bf16.mxu0 0
        %1212 = vmatpush1.bf16.msra.mxu0 0
        %1213 = vmatprep.subr.bf16.mxu0 0
        %1214 = vmatpush1.bf16.msra.mxu0 0
        %1215 = vmatprep.subr.bf16.mxu0 0
        %1216 = vmatpush1.bf16.msra.mxu0 0
        %1217 = vmatprep.subr.bf16.mxu0 0
        %1218 = vmatpush1.bf16.msra.mxu0 0
        %1219 = vmatprep.subr.bf16.mxu0 0
        %1220 = vmatpush1.bf16.msra.mxu0 0
        %1221 = vmatprep.subr.bf16.mxu0 0
        %1222 = vmatpush1.bf16.msra.mxu0 0
        %1223 = vmatprep.mubr.bf16.mxu0 0
        %1224 = vmatmul.mubr.bf16.gmra.mrb[0].mxu0 %v1186
        %v1225 = vpop.f32.mrb[0].mxu0
        %v1226 = vadd.f32 0.0, %v1225
        %v1227 = vpop.f32.mrb[0].mxu0
        %v1228 = vpop.f32.mrb[0].mxu0
        %v1229 = vpop.f32.mrb[0].mxu0
        %1230 = vdwg.mxu0
        %v1231 = vadd.f32 %v1072, %v1226
        %v1232 = vadd.f32 %v478, %v1231
        %v1233 = vld [vmem:[%s7] sm:$0x1]
        %v1235 = vlaneseq
        %v1236 = vshrl.u32 %v1235, 7
        %v1237 = vsub.s32 0, %v1236
        %v1238 = vrot.slane %v1233, %v1237
        %v1240 = vadd.f32 %v1232, %v1238
        %v1241 = vld [vmem:[%s8] sm:$0x1]
        %v1242 = vld [vmem:[%s9] sm:$0x1]
        %v1243 = vsel %vm482, %v1240, 0.0
        %1244 = vadd.xlane.f32.xlu0 %v1243
        %v1245 = vpop.xlane.xlu0 %1244
        %v1246 = vmul.f32 %v1245, %v486
        %v1247 = vsub.f32 %v1240, %v1246
        %v1248 = vmul.f32 %v1247, %v1247
        %v1249 = vsel %vm482, %v1248, 0.0
        %1250 = vadd.xlane.f32.xlu0 %v1249
        %v1251 = vpop.xlane.xlu0 %1250
        %v1252 = vmul.f32 %v1251, 0.032258064
        %v1253 = vrsqrt.pop %v1252
        %v1254 = vmul.f32 %v1252, %v1253
        %vm1255 = vcmp.eq.f32.partialorder %v1252, inf
        %v1256 = vsel %vm1255, %v1252, %v1254
        %vm1257 = vcmp.eq.f32.partialorder %v1252, 0.0
        %v1258 = vand.u32 %v1252, 2147483648
        %v1259 = vsel %vm1257, %v1258, %v1256
        %v1260 = vadd.f32 %v1259, 1e-06
        %v1261 = vrcp.pop %v1260
        %v1263 = vlaneseq
        %v1264 = vshrl.u32 %v1263, 7
        %v1265 = vsub.s32 0, %v1264
        %v1266 = vrot.slane %v1241, %v1265
        %v1268 = vmul.f32 %v1266, %v1247
        %v1269 = vmul.f32 %v1268, %v1261
        %v1271 = vlaneseq
        %v1272 = vshrl.u32 %v1271, 7
        %v1273 = vsub.s32 0, %v1272
        %v1274 = vrot.slane %v1242, %v1273
        %v1276 = vadd.f32 %v1269, %v1274
        %v1277 = vpack.c.bf16 %v1276, %v1276
        %v1278 = vld [vmem:[%s10] sm:$0xf]
        %v1279 = vld [vmem:[%s10 + $0x4] sm:$0xf]
        %v1280 = vld [vmem:[%s10 + $0x8] sm:$0xf]
        %v1281 = vld [vmem:[%s10 + $0xc] sm:$0xf]
        %v1282 = vld [vmem:[%s11] sm:$0x1]
        %v1284 = vlaneseq
        %v1285 = vshrl.u32 %v1284, 7
        %v1286 = vsub.s32 0, %v1285
        %v1287 = vrot.slane %v1282, %v1286
        %v1293 = vunpack.c.l.b16 %v1278
        %v1294 = vunpack.c.l.b16 %v1279
        %v1295 = vunpack.c.l.b16 %v1280
        %v1296 = vunpack.c.l.b16 %v1281
        %v1297 = vpack.c.b16 %v1294, %v1293
        %v1298 = vpack.c.b16 %v1296, %v1295
        %v1302 = vsel %vm482, %v1277, 0
        %1304 = vmatprep.subr.bf16.mxu0 0
        %1305 = vmatpush1.bf16.msra.mxu0 %v1297
        %1306 = vmatprep.subr.bf16.mxu0 0
        %1307 = vmatpush1.bf16.msra.mxu0 %v1298
        %1308 = vmatprep.subr.bf16.mxu0 0
        %1309 = vmatpush1.bf16.msra.mxu0 0
        %1310 = vmatprep.subr.bf16.mxu0 0
        %1311 = vmatpush1.bf16.msra.mxu0 0
        %1312 = vmatprep.subr.bf16.mxu0 0
        %1313 = vmatpush1.bf16.msra.mxu0 0
        %1314 = vmatprep.subr.bf16.mxu0 0
        %1315 = vmatpush1.bf16.msra.mxu0 0
        %1316 = vmatprep.subr.bf16.mxu0 0
        %1317 = vmatpush1.bf16.msra.mxu0 0
        %1318 = vmatprep.subr.bf16.mxu0 0
        %1319 = vmatpush1.bf16.msra.mxu0 0
        %1320 = vmatprep.subr.bf16.mxu0 0
        %1321 = vmatpush1.bf16.msra.mxu0 0
        %1322 = vmatprep.subr.bf16.mxu0 0
        %1323 = vmatpush1.bf16.msra.mxu0 0
        %1324 = vmatprep.subr.bf16.mxu0 0
        %1325 = vmatpush1.bf16.msra.mxu0 0
        %1326 = vmatprep.subr.bf16.mxu0 0
        %1327 = vmatpush1.bf16.msra.mxu0 0
        %1328 = vmatprep.subr.bf16.mxu0 0
        %1329 = vmatpush1.bf16.msra.mxu0 0
        %1330 = vmatprep.subr.bf16.mxu0 0
        %1331 = vmatpush1.bf16.msra.mxu0 0
        %1332 = vmatprep.subr.bf16.mxu0 0
        %1333 = vmatpush1.bf16.msra.mxu0 0
        %1334 = vmatprep.subr.bf16.mxu0 0
        %1335 = vmatpush1.bf16.msra.mxu0 0
        %1336 = vmatprep.mubr.bf16.mxu0 0
        %1337 = vmatmul.mubr.bf16.gmra.mrb[0].mxu0 %v1302
        %v1338 = vpop.f32.mrb[0].mxu0
        %v1339 = vadd.f32 %v1287, %v1338
        %v1340 = vpop.f32.mrb[0].mxu0
        %v1341 = vpop.f32.mrb[0].mxu0
        %v1342 = vpop.f32.mrb[0].mxu0
        %1343 = vdwg.mxu0
        %v1344 = vmax.f32 %v1339, 0.0
        %v1345 = vpack.c.bf16 %v1344, %v1344
        %v1346 = vld [vmem:[%s12] sm:$0xf]
        %v1347 = vld [vmem:[%s12 + $0x4] sm:$0xf]
        %v1348 = vld [vmem:[%s12 + $0x8] sm:$0xf]
        %v1349 = vld [vmem:[%s12 + $0xc] sm:$0xf]
        %v1350 = vld [vmem:[%s12 + $0x10] sm:$0xf]
        %v1351 = vld [vmem:[%s12 + $0x14] sm:$0xf]
        %v1352 = vld [vmem:[%s12 + $0x18] sm:$0xf]
        %v1353 = vld [vmem:[%s12 + $0x1c] sm:$0xf]
        %v1354 = vld [vmem:[%s12 + $0x20] sm:$0xf]
        %v1355 = vld [vmem:[%s12 + $0x24] sm:$0xf]
        %v1356 = vld [vmem:[%s12 + $0x28] sm:$0xf]
        %v1357 = vld [vmem:[%s12 + $0x2c] sm:$0xf]
        %v1358 = vld [vmem:[%s12 + $0x30] sm:$0xf]
        %v1359 = vld [vmem:[%s12 + $0x34] sm:$0xf]
        %v1360 = vld [vmem:[%s12 + $0x38] sm:$0xf]
        %v1361 = vld [vmem:[%s12 + $0x3c] sm:$0xf]
        %v1362 = vld [vmem:[%s13] sm:$0x1]
        %v1364 = vlaneseq
        %v1365 = vshrl.u32 %v1364, 7
        %v1366 = vsub.s32 0, %v1365
        %v1367 = vrot.slane %v1362, %v1366
        %v1385 = vunpack.c.l.b16 %v1346
        %v1386 = vunpack.c.l.b16 %v1347
        %v1387 = vunpack.c.l.b16 %v1348
        %v1388 = vunpack.c.l.b16 %v1349
        %v1389 = vunpack.c.l.b16 %v1350
        %v1390 = vunpack.c.l.b16 %v1351
        %v1391 = vunpack.c.l.b16 %v1352
        %v1392 = vunpack.c.l.b16 %v1353
        %v1393 = vunpack.c.l.b16 %v1354
        %v1394 = vunpack.c.l.b16 %v1355
        %v1395 = vunpack.c.l.b16 %v1356
        %v1396 = vunpack.c.l.b16 %v1357
        %v1397 = vunpack.c.l.b16 %v1358
        %v1398 = vunpack.c.l.b16 %v1359
        %v1399 = vunpack.c.l.b16 %v1360
        %v1400 = vunpack.c.l.b16 %v1361
        %v1401 = vpack.c.b16 %v1386, %v1385
        %v1402 = vpack.c.b16 %v1388, %v1387
        %v1403 = vpack.c.b16 %v1390, %v1389
        %v1404 = vpack.c.b16 %v1392, %v1391
        %v1405 = vpack.c.b16 %v1394, %v1393
        %v1406 = vpack.c.b16 %v1396, %v1395
        %v1407 = vpack.c.b16 %v1398, %v1397
        %v1408 = vpack.c.b16 %v1400, %v1399
        %1417 = vmatprep.subr.bf16.mxu0 0
        %1418 = vmatpush1.bf16.msra.mxu0 %v1401
        %1419 = vmatprep.subr.bf16.mxu0 0
        %1420 = vmatpush1.bf16.msra.mxu0 %v1402
        %1421 = vmatprep.subr.bf16.mxu0 0
        %1422 = vmatpush1.bf16.msra.mxu0 %v1403
        %1423 = vmatprep.subr.bf16.mxu0 0
        %1424 = vmatpush1.bf16.msra.mxu0 %v1404
        %1425 = vmatprep.subr.bf16.mxu0 0
        %1426 = vmatpush1.bf16.msra.mxu0 %v1405
        %1427 = vmatprep.subr.bf16.mxu0 0
        %1428 = vmatpush1.bf16.msra.mxu0 %v1406
        %1429 = vmatprep.subr.bf16.mxu0 0
        %1430 = vmatpush1.bf16.msra.mxu0 %v1407
        %1431 = vmatprep.subr.bf16.mxu0 0
        %1432 = vmatpush1.bf16.msra.mxu0 %v1408
        %1433 = vmatprep.subr.bf16.mxu0 0
        %1434 = vmatpush1.bf16.msra.mxu0 0
        %1435 = vmatprep.subr.bf16.mxu0 0
        %1436 = vmatpush1.bf16.msra.mxu0 0
        %1437 = vmatprep.subr.bf16.mxu0 0
        %1438 = vmatpush1.bf16.msra.mxu0 0
        %1439 = vmatprep.subr.bf16.mxu0 0
        %1440 = vmatpush1.bf16.msra.mxu0 0
        %1441 = vmatprep.subr.bf16.mxu0 0
        %1442 = vmatpush1.bf16.msra.mxu0 0
        %1443 = vmatprep.subr.bf16.mxu0 0
        %1444 = vmatpush1.bf16.msra.mxu0 0
        %1445 = vmatprep.subr.bf16.mxu0 0
        %1446 = vmatpush1.bf16.msra.mxu0 0
        %1447 = vmatprep.subr.bf16.mxu0 0
        %1448 = vmatpush1.bf16.msra.mxu0 0
        %1449 = vmatprep.mubr.bf16.mxu0 0
        %1450 = vmatmul.mubr.bf16.gmra.mrb[0].mxu0 %v1345
        %v1451 = vpop.f32.mrb[0].mxu0
        %v1452 = vadd.f32 %v1367, %v1451
        %v1453 = vpop.f32.mrb[0].mxu0
        %v1454 = vpop.f32.mrb[0].mxu0
        %v1455 = vpop.f32.mrb[0].mxu0
        %1456 = vdwg.mxu0
        %v1457 = vadd.f32 %v1240, %v1452
        %1458 = vst.msk [vmem:[%s469] sm:$0xff] %vm482, %v1457
        %s1459 = sand.u32 %s340, 1
        %s1460 = scalar_lea.sflag [#allocation3], %s1459
        %s1461 = sand.u32 %s340, 1
        %s1462 = smul.addr %s1461, 8
        %s1463 = scalar_lea.vmem [#allocation2], %s1462
        // Predicated region
        $region77: #{tpu_custom_call.1} parent=75 // pred_check
          %p1464 = pneg %p350
        $region78: #{tpu_custom_call.1} parent=75 // pred_check_branch
          %1466 = sbr.rel (%p1464) target = $region80
        $region79: #{tpu_custom_call.1} parent=75 // pred_region
          %s1468 = ssub.s32 128, 128
          %1469 = vsyncadd %s1460, %s1468
          %s1470 = smul.addr %s28, 128
          %s1471 = scalar_lea.hbm %s14, %s1470
          %s1473 = sshll.u32 %s1463, 4
          %s1474 = int_to_ptr.vmem [resolvable:$true] %s1473
          %1476 = dma.vmem_to_hbm [thread:$0]  %s1474, 128, %s1471, %s1460
        $region80: #{tpu_custom_call.1} parent=75 // pred_fallthru
          _
      $region76: #{tpu_custom_call.1} parent=5 // pred_fallthru
        _
      %p1477 = scmp.le.s32.totalorder 2, %s23
      // Predicated region
      $region81: #{tpu_custom_call.1} parent=5 // pred_check
        %p1478 = pneg %p1477
      $region82: #{tpu_custom_call.1} parent=5 // pred_check_branch
        %1480 = sbr.rel (%p1478) target = $region84
      $region83: #{tpu_custom_call.1} parent=5 // pred_region
        %s1481 = ssub.s32 %s23, 2
        // Predicated region
        $region85: #{tpu_custom_call.1} parent=83 // pred_check
          %p1482 = pneg %p356
        $region86: #{tpu_custom_call.1} parent=83 // pred_check_branch
          %1484 = sbr.rel (%p1482) target = $region88
        $region87: #{tpu_custom_call.1} parent=83 // pred_region
          %s1485 = sand.u32 %s341, 1
          %s1486 = scalar_lea.sflag [#allocation3], %s1485
          %s1487 = sand.u32 %s341, 1
          %s1488 = smul.addr %s1487, 8
          %s1489 = scalar_lea.vmem [#allocation2], %s1488
          %1490 = dma.done %s1486, 128
        $region88: #{tpu_custom_call.1} parent=83 // pred_fallthru
          _
      $region84: #{tpu_custom_call.1} parent=5 // pred_fallthru
        _
    $region6: #{tpu_custom_call.1} parent=1 // loop_footer
      %s27 = sadd.s32 1, %s23
    $region7: #{tpu_custom_call.1} parent=1 // loop_footer_branch
      %22 = sbr.rel target = $region3
    $region8: #{tpu_custom_call.1} parent=1 // loop_exit
      _
    %1491 = vsyncpa [#allocation3], 1
    %s1492 = scalar_lea.sflag [#allocation3], 1
    %1493 = vsyncpa %s1492, 1

</llo_original>
